<compile_context>
chip_gen: v5e
topology: v5e:2x2
jax: 0.10.0
libtpu: 0.0.40
codegen_flags: <defaults>
</compile_context>

<pallas_src>
import math
import numpy as np
import jax
import jax.numpy as jnp
from jax import lax
from jax.experimental import pallas as pl
from jax.experimental.pallas import tpu as pltpu


def _round_up(x, m):
    return (x + m - 1) // m * m


def _tpu_budget_and_cores():
    """Physical VMEM bytes and #TensorCores per chip (conservative defaults)."""
    vmem_phys = 64 << 20          # conservative default (v7x per-TensorCore VMEM)
    n_cores = 2                   # assume 2 TCs unless clearly a single-core chip
    try:
        vmem_phys = int(pltpu.get_tpu_info().vmem_capacity_bytes)
    except Exception:
        pass
    try:
        kind = jax.devices()[0].device_kind.lower()
        if "lite" in kind or "v5e" in kind or "v6e" in kind:
            n_cores = 1           # v5e / v6e: single TensorCore per chip
    except Exception:
        pass
    return vmem_phys, n_cores


def _make_kernel(Nb, C_in, C_out, H, W, ksize, pad):
    HW = H * W

    def kernel(p_ref, x_ref, w_ref, mask_ref, scale_ref, off_ref, out_ref, patch_ref):
        # p_ref     : (N_pad,) f32 SMEM   TEBN p[t] per flattened image (scalar prefetch)
        # x_ref     : (Nb*C_in, HW)       lane-dense activations, full-sublane tiles
        # w_ref     : (C_out, KK*C_in)    im2col conv weight
        # mask_ref  : (KK, HW)            0/1 halo masks, one per conv tap
        # scale_ref : (C_out, 1)          gamma * rsqrt(var + eps)
        # off_ref   : (C_out, 1)          beta + (conv_bias - mean) * scale
        # out_ref   : (Nb*C_out, HW)
        # patch_ref : (KK*C_in, Nb*HW)    im2col scratch (images side by side in lanes)
        mask = mask_ref[...]
        # Build im2col patches: one block-wide roll + mask per tap, then copy each
        # image's (C_in, HW) slab into that tap's row band / the image's lane slice.
        for dh in range(ksize):
            a = dh - pad
            for dw in range(ksize):
                b = dw - pad
                kidx = dh * ksize + dw
                shift = (-(a * W + b)) % HW          # tap[p] = x[p + a*W + b] (halo masked)
                x_blk = x_ref[...]
                tap = pltpu.roll(x_blk, shift, 1) if shift else x_blk
                if not (a == 0 and b == 0):
                    tap = tap * mask[kidx:kidx + 1, :]
                for n in range(Nb):
                    patch_ref[kidx * C_in:(kidx + 1) * C_in,
                              n * HW:(n + 1) * HW] = tap[n * C_in:(n + 1) * C_in, :]
        # One MXU matmul for the whole block: (C_out, KK*C_in) @ (KK*C_in, Nb*HW).
        conv = jnp.dot(w_ref[...], patch_ref[...], preferred_element_type=jnp.float32)
        scale = scale_ref[...]                       # (C_out, 1)
        off = off_ref[...]                           # (C_out, 1)
        base = pl.program_id(0) * Nb
        for n in range(Nb):
            p_n = p_ref[base + n]                    # per-image TEBN scalar from SMEM
            y = (conv[:, n * HW:(n + 1) * HW] * scale + off) * p_n
            out_ref[n * C_out:(n + 1) * C_out, :] = y.astype(out_ref.dtype)

    return kernel


@jax.jit
def tebn_layer_forward(x, conv_w, conv_b, gamma, beta, run_mean, run_var, p, eps=1e-5):
    """TEBNLayer forward.  x: (B, T, C_in, H, W) f32 -> (B, T, C_out, H, W)."""
    B, T, C_in, H, W = x.shape
    C_out, C_in_w, kh, kw = conv_w.shape
    assert C_in_w == C_in and kh == kw and kh % 2 == 1, "square odd 'same' conv expected"
    ksize, pad = kh, kh // 2
    KK = ksize * ksize
    HW = H * W
    N = B * T

    # ---- fold conv bias + inference BatchNorm into per-channel scale / offset columns ---
    inv_std = lax.rsqrt(run_var + eps)
    bn_scale = gamma * inv_std                                      # (C_out,)
    bn_off = beta + (conv_b - run_mean) * bn_scale                  # (C_out,)
    scale_col = bn_scale.reshape(C_out, 1).astype(jnp.float32)
    off_col = bn_off.reshape(C_out, 1).astype(jnp.float32)
    # im2col weight, contraction index ordered (dh, dw, c_in).
    w_mat = jnp.transpose(conv_w, (0, 2, 3, 1)).reshape(C_out, KK * C_in).astype(jnp.float32)
    # Per-image TEBN scale p[t]; flattened image index g = b*T + t.
    p_img = jnp.tile(p.reshape(T).astype(jnp.float32), B)           # (N,)

    # ---- 0/1 halo masks per conv tap (host-built, tiny, DMA'd once) ---------------------
    mask_np = np.zeros((KK, HW), np.float32)
    for dh in range(ksize):
        a = dh - pad
        for dw in range(ksize):
            b = dw - pad
            m = np.zeros((H, W), np.float32)
            m[max(0, -a):min(H, H - a), max(0, -b):min(W, W - b)] = 1.0
            mask_np[dh * ksize + dw] = m.reshape(HW)
    masks = jnp.asarray(mask_np)

    # ---- block sizing: padded-VMEM accounting, core count, sublane alignment -----------
    vmem_phys, n_cores = _tpu_budget_and_cores()
    # Nb*C_in and Nb*C_out must be sublane (8) aligned for full-sublane 2D tiles.
    align = 1
    for c in (C_in, C_out):
        a = 8 // math.gcd(c, 8)
        align = align * a // math.gcd(align, a)
    HW_pad = _round_up(HW, 128)
    # double-buffered input + output blocks + im2col scratch (per image, padded tiles)
    per_img_bytes = 4 * HW_pad * (2 * C_in + 2 * C_out + _round_up(KK * C_in, 8))
    fixed_bytes = 4 * (2 * _round_up(C_out, 8) * _round_up(KK * C_in, 128)   # weight
                       + 2 * _round_up(KK, 8) * HW_pad                       # halo masks
                       + 4 * _round_up(C_out, 8) * 128)                      # scale/off cols
    budget = max(per_img_bytes, min(vmem_phys // 4, 24 << 20) - fixed_bytes)
    cap = max(align, min(32, budget // per_img_bytes) // align * align)      # 32: unroll cap
    steps = max(n_cores, pl.cdiv(N, cap))
    steps = _round_up(steps, n_cores)               # even split across TensorCores
    Nb = _round_up(pl.cdiv(N, steps), align)
    N_pad = steps * Nb

    # ---- lane-dense flat views (free contiguous reshapes); pad images if needed --------
    x2d = x.reshape(N * C_in, HW)
    if N_pad > N:
        x2d = jnp.pad(x2d, ((0, (N_pad - N) * C_in), (0, 0)))
        p_img = jnp.pad(p_img, (0, N_pad - N))

    kernel = _make_kernel(Nb, C_in, C_out, H, W, ksize, pad)

    est_vmem = fixed_bytes + per_img_bytes * Nb + (1 << 20)
    vmem_limit = int(min(max(2 * est_vmem, 16 << 20), int(vmem_phys * 0.9)))

    cost = pl.CostEstimate(
        flops=2 * N_pad * C_out * KK * C_in * HW,
        transcendentals=0,
        bytes_accessed=4 * (N_pad * C_in * HW + N_pad * C_out * HW + C_out * KK * C_in))

    out2d = pl.pallas_call(
        kernel,
        out_shape=jax.ShapeDtypeStruct((N_pad * C_out, HW), x.dtype),
        grid_spec=pltpu.PrefetchScalarGridSpec(
            num_scalar_prefetch=1,
            grid=(steps,),
            in_specs=[
                pl.BlockSpec((Nb * C_in, HW), lambda i, _: (i, 0)),
                pl.BlockSpec((C_out, KK * C_in), lambda i, _: (0, 0)),
                pl.BlockSpec((KK, HW), lambda i, _: (0, 0)),
                pl.BlockSpec((C_out, 1), lambda i, _: (0, 0)),
                pl.BlockSpec((C_out, 1), lambda i, _: (0, 0)),
            ],
            out_specs=pl.BlockSpec((Nb * C_out, HW), lambda i, _: (i, 0)),
            scratch_shapes=[pltpu.VMEM((KK * C_in, Nb * HW), jnp.float32)],
        ),
        compiler_params=pltpu.CompilerParams(
            dimension_semantics=("parallel",),
            vmem_limit_bytes=vmem_limit),
        cost_estimate=cost,
    )(p_img, x2d, w_mat, masks, scale_col, off_col)

    return out2d[:N * C_out].reshape(B, T, C_out, H, W)


def _reference(x, conv_w, conv_b, gamma, beta, run_mean, run_var, p, eps=1e-5):
    """Pure-JAX reference of TEBNLayer.forward (eval-mode BatchNorm)."""
    B, T, C_in, H, W = x.shape
    C_out, _, k, _ = conv_w.shape
    pad = k // 2
    f = x.reshape(B * T, C_in, H, W)
    f = lax.conv_general_dilated(
        f, conv_w, window_strides=(1, 1), padding=((pad, pad), (pad, pad)),
        dimension_numbers=("NCHW", "OIHW", "NCHW")) + conv_b[None, :, None, None]
    f = (f - run_mean[None, :, None, None]) / jnp.sqrt(run_var[None, :, None, None] + eps)
    f = f * gamma[None, :, None, None] + beta[None, :, None, None]
    f = f.reshape(B, T, C_out, H, W)
    # TEBN: transpose to (T,B,...), multiply by p (T,1,1,1,1), transpose back == scale
    # along the time axis.
    return f * p.reshape(1, T, 1, 1, 1)


if __name__ == "__main__":
    # TEBN hard-codes a 10-entry per-timestep parameter p, so T = 10.
    B, T, C_in, C_out, H, W = 2, 10, 4, 8, 16, 16

    key = jax.random.PRNGKey(0)
    kx, kw, kb, kg, kbe, km, kv, kp = jax.random.split(key, 8)

    def bf16_exact(v):
        # Quantize matmul operands to bf16-representable values so the correctness check
        # is insensitive to whether the MXU runs f32 or bf16-pass multiplications.
        return v.astype(jnp.bfloat16).astype(jnp.float32)

    x = bf16_exact(jax.random.normal(kx, (B, T, C_in, H, W), dtype=jnp.float32))
    # Conv2d(C_in -> C_out, k=3, s=1, p=1)
    conv_w = bf16_exact(jax.random.normal(kw, (C_out, C_in, 3, 3), dtype=jnp.float32) * 0.1)
    conv_b = jax.random.normal(kb, (C_out,), dtype=jnp.float32) * 0.1
    # BatchNorm2d(C_out) parameters / running stats (inference mode)
    gamma = 1.0 + 0.1 * jax.random.normal(kg, (C_out,), dtype=jnp.float32)
    beta = 0.1 * jax.random.normal(kbe, (C_out,), dtype=jnp.float32)
    run_mean = 0.1 * jax.random.normal(km, (C_out,), dtype=jnp.float32)
    run_var = jax.random.uniform(kv, (C_out,), dtype=jnp.float32, minval=0.5, maxval=1.5)
    # TEBN.p is initialised to ones; use non-trivial values to actually exercise it.
    p = 1.0 + 0.1 * jax.random.normal(kp, (T,), dtype=jnp.float32)

    out = tebn_layer_forward(x, conv_w, conv_b, gamma, beta, run_mean, run_var, p)
    out = jax.block_until_ready(out)

    ref = _reference(x, conv_w, conv_b, gamma, beta, run_mean, run_var, p)
    assert out.shape == (B, T, C_out, H, W)
    assert jnp.allclose(out, ref, atol=1e-4, rtol=1e-4), "mismatch vs JAX reference"

    print("KERNEL_OK")
</pallas_src>

<mosaic_0001>
module attributes {stable_mosaic.version = 11 : i64} {
  func.func @kernel(%arg0: i32, %arg1: memref<20xf32, #tpu.memory_space<smem>>, %arg2: memref<40x256xf32, #tpu.memory_space<vmem>>, %arg3: memref<8x36xf32, #tpu.memory_space<vmem>>, %arg4: memref<9x256xf32, #tpu.memory_space<vmem>>, %arg5: memref<8x1xf32, #tpu.memory_space<vmem>>, %arg6: memref<8x1xf32, #tpu.memory_space<vmem>>, %arg7: memref<80x256xf32, #tpu.memory_space<vmem>>, %arg8: memref<36x2560xf32, #tpu.memory_space<vmem>>) attributes {dimension_semantics = [#tpu.dimension_semantics<parallel>], iteration_bounds = array<i64: 2>, scalar_prefetch = 1 : i64, scratch_operands = 1 : i64, tpu.core_type = #tpu.core_type<tc>, window_params = [{transform_indices = @transform_0, window_bounds = array<i64: 40, 256>}, {pipeline_mode = #tpu.pipeline_mode<synchronous>, transform_indices = @transform_1, window_bounds = array<i64: 8, 36>}, {pipeline_mode = #tpu.pipeline_mode<synchronous>, transform_indices = @transform_2, window_bounds = array<i64: 9, 256>}, {pipeline_mode = #tpu.pipeline_mode<synchronous>, transform_indices = @transform_3, window_bounds = array<i64: 8, 1>}, {pipeline_mode = #tpu.pipeline_mode<synchronous>, transform_indices = @transform_4, window_bounds = array<i64: 8, 1>}, {transform_indices = @transform_5, window_bounds = array<i64: 80, 256>}]} {
    %c0 = arith.constant 0 : index
    %c0_0 = arith.constant 0 : index
    %0 = vector.load %arg4[%c0, %c0_0] : memref<9x256xf32, #tpu.memory_space<vmem>>, vector<9x256xf32>
    %c0_1 = arith.constant 0 : index
    %c0_2 = arith.constant 0 : index
    %1 = vector.load %arg2[%c0_1, %c0_2] : memref<40x256xf32, #tpu.memory_space<vmem>>, vector<40x256xf32>
    %c17_i32 = arith.constant 17 : i32
    %2 = tpu.dynamic_rotate %1 by %c17_i32 dim 1 : vector<40x256xf32>, i32 -> vector<40x256xf32>
    %3 = vector.extract_strided_slice %0 {offsets = [0, 0], sizes = [1, 256], strides = [1, 1]} : vector<9x256xf32> to vector<1x256xf32>
    %4 = vector.broadcast %3 : vector<1x256xf32> to vector<40x256xf32>
    %5 = arith.mulf %2, %4 : vector<40x256xf32>
    %6 = vector.extract_strided_slice %5 {offsets = [0, 0], sizes = [4, 256], strides = [1, 1]} : vector<40x256xf32> to vector<4x256xf32>
    %c0_3 = arith.constant 0 : index
    %c0_4 = arith.constant 0 : index
    %7 = vector.load %arg8[%c0_3, %c0_4] : memref<36x2560xf32, #tpu.memory_space<vmem>>, vector<4x256xf32>
    tpu.vector_store %arg8[%c0_3, %c0_4], %6 {strides = array<i32>} : memref<36x2560xf32, #tpu.memory_space<vmem>>, vector<4x256xf32>,
    %8 = vector.extract_strided_slice %5 {offsets = [4, 0], sizes = [4, 256], strides = [1, 1]} : vector<40x256xf32> to vector<4x256xf32>
    %c0_5 = arith.constant 0 : index
    %c256 = arith.constant 256 : index
    %9 = vector.load %arg8[%c0_5, %c256] : memref<36x2560xf32, #tpu.memory_space<vmem>>, vector<4x256xf32>
    tpu.vector_store %arg8[%c0_5, %c256], %8 {strides = array<i32>} : memref<36x2560xf32, #tpu.memory_space<vmem>>, vector<4x256xf32>,
    %10 = vector.extract_strided_slice %5 {offsets = [8, 0], sizes = [4, 256], strides = [1, 1]} : vector<40x256xf32> to vector<4x256xf32>
    %c0_6 = arith.constant 0 : index
    %c512 = arith.constant 512 : index
    %11 = vector.load %arg8[%c0_6, %c512] : memref<36x2560xf32, #tpu.memory_space<vmem>>, vector<4x256xf32>
    tpu.vector_store %arg8[%c0_6, %c512], %10 {strides = array<i32>} : memref<36x2560xf32, #tpu.memory_space<vmem>>, vector<4x256xf32>,
    %12 = vector.extract_strided_slice %5 {offsets = [12, 0], sizes = [4, 256], strides = [1, 1]} : vector<40x256xf32> to vector<4x256xf32>
    %c0_7 = arith.constant 0 : index
    %c768 = arith.constant 768 : index
    %13 = vector.load %arg8[%c0_7, %c768] : memref<36x2560xf32, #tpu.memory_space<vmem>>, vector<4x256xf32>
    tpu.vector_store %arg8[%c0_7, %c768], %12 {strides = array<i32>} : memref<36x2560xf32, #tpu.memory_space<vmem>>, vector<4x256xf32>,
    %14 = vector.extract_strided_slice %5 {offsets = [16, 0], sizes = [4, 256], strides = [1, 1]} : vector<40x256xf32> to vector<4x256xf32>
    %c0_8 = arith.constant 0 : index
    %c1024 = arith.constant 1024 : index
    %15 = vector.load %arg8[%c0_8, %c1024] : memref<36x2560xf32, #tpu.memory_space<vmem>>, vector<4x256xf32>
    tpu.vector_store %arg8[%c0_8, %c1024], %14 {strides = array<i32>} : memref<36x2560xf32, #tpu.memory_space<vmem>>, vector<4x256xf32>,
    %16 = vector.extract_strided_slice %5 {offsets = [20, 0], sizes = [4, 256], strides = [1, 1]} : vector<40x256xf32> to vector<4x256xf32>
    %c0_9 = arith.constant 0 : index
    %c1280 = arith.constant 1280 : index
    %17 = vector.load %arg8[%c0_9, %c1280] : memref<36x2560xf32, #tpu.memory_space<vmem>>, vector<4x256xf32>
    tpu.vector_store %arg8[%c0_9, %c1280], %16 {strides = array<i32>} : memref<36x2560xf32, #tpu.memory_space<vmem>>, vector<4x256xf32>,
    %18 = vector.extract_strided_slice %5 {offsets = [24, 0], sizes = [4, 256], strides = [1, 1]} : vector<40x256xf32> to vector<4x256xf32>
    %c0_10 = arith.constant 0 : index
    %c1536 = arith.constant 1536 : index
    %19 = vector.load %arg8[%c0_10, %c1536] : memref<36x2560xf32, #tpu.memory_space<vmem>>, vector<4x256xf32>
    tpu.vector_store %arg8[%c0_10, %c1536], %18 {strides = array<i32>} : memref<36x2560xf32, #tpu.memory_space<vmem>>, vector<4x256xf32>,
    %20 = vector.extract_strided_slice %5 {offsets = [28, 0], sizes = [4, 256], strides = [1, 1]} : vector<40x256xf32> to vector<4x256xf32>
    %c0_11 = arith.constant 0 : index
    %c1792 = arith.constant 1792 : index
    %21 = vector.load %arg8[%c0_11, %c1792] : memref<36x2560xf32, #tpu.memory_space<vmem>>, vector<4x256xf32>
    tpu.vector_store %arg8[%c0_11, %c1792], %20 {strides = array<i32>} : memref<36x2560xf32, #tpu.memory_space<vmem>>, vector<4x256xf32>,
    %22 = vector.extract_strided_slice %5 {offsets = [32, 0], sizes = [4, 256], strides = [1, 1]} : vector<40x256xf32> to vector<4x256xf32>
    %c0_12 = arith.constant 0 : index
    %c2048 = arith.constant 2048 : index
    %23 = vector.load %arg8[%c0_12, %c2048] : memref<36x2560xf32, #tpu.memory_space<vmem>>, vector<4x256xf32>
    tpu.vector_store %arg8[%c0_12, %c2048], %22 {strides = array<i32>} : memref<36x2560xf32, #tpu.memory_space<vmem>>, vector<4x256xf32>,
    %24 = vector.extract_strided_slice %5 {offsets = [36, 0], sizes = [4, 256], strides = [1, 1]} : vector<40x256xf32> to vector<4x256xf32>
    %c0_13 = arith.constant 0 : index
    %c2304 = arith.constant 2304 : index
    %25 = vector.load %arg8[%c0_13, %c2304] : memref<36x2560xf32, #tpu.memory_space<vmem>>, vector<4x256xf32>
    tpu.vector_store %arg8[%c0_13, %c2304], %24 {strides = array<i32>} : memref<36x2560xf32, #tpu.memory_space<vmem>>, vector<4x256xf32>,
    %c0_14 = arith.constant 0 : index
    %c0_15 = arith.constant 0 : index
    %26 = vector.load %arg2[%c0_14, %c0_15] : memref<40x256xf32, #tpu.memory_space<vmem>>, vector<40x256xf32>
    %c16_i32 = arith.constant 16 : i32
    %27 = tpu.dynamic_rotate %26 by %c16_i32 dim 1 : vector<40x256xf32>, i32 -> vector<40x256xf32>
    %28 = vector.extract_strided_slice %0 {offsets = [1, 0], sizes = [1, 256], strides = [1, 1]} : vector<9x256xf32> to vector<1x256xf32>
    %29 = vector.broadcast %28 : vector<1x256xf32> to vector<40x256xf32>
    %30 = arith.mulf %27, %29 : vector<40x256xf32>
    %31 = vector.extract_strided_slice %30 {offsets = [0, 0], sizes = [4, 256], strides = [1, 1]} : vector<40x256xf32> to vector<4x256xf32>
    %c4 = arith.constant 4 : index
    %c0_16 = arith.constant 0 : index
    %32 = vector.load %arg8[%c4, %c0_16] : memref<36x2560xf32, #tpu.memory_space<vmem>>, vector<4x256xf32>
    tpu.vector_store %arg8[%c4, %c0_16], %31 {strides = array<i32>} : memref<36x2560xf32, #tpu.memory_space<vmem>>, vector<4x256xf32>,
    %33 = vector.extract_strided_slice %30 {offsets = [4, 0], sizes = [4, 256], strides = [1, 1]} : vector<40x256xf32> to vector<4x256xf32>
    %c4_17 = arith.constant 4 : index
    %c256_18 = arith.constant 256 : index
    %34 = vector.load %arg8[%c4_17, %c256_18] : memref<36x2560xf32, #tpu.memory_space<vmem>>, vector<4x256xf32>
    tpu.vector_store %arg8[%c4_17, %c256_18], %33 {strides = array<i32>} : memref<36x2560xf32, #tpu.memory_space<vmem>>, vector<4x256xf32>,
    %35 = vector.extract_strided_slice %30 {offsets = [8, 0], sizes = [4, 256], strides = [1, 1]} : vector<40x256xf32> to vector<4x256xf32>
    %c4_19 = arith.constant 4 : index
    %c512_20 = arith.constant 512 : index
    %36 = vector.load %arg8[%c4_19, %c512_20] : memref<36x2560xf32, #tpu.memory_space<vmem>>, vector<4x256xf32>
    tpu.vector_store %arg8[%c4_19, %c512_20], %35 {strides = array<i32>} : memref<36x2560xf32, #tpu.memory_space<vmem>>, vector<4x256xf32>,
    %37 = vector.extract_strided_slice %30 {offsets = [12, 0], sizes = [4, 256], strides = [1, 1]} : vector<40x256xf32> to vector<4x256xf32>
    %c4_21 = arith.constant 4 : index
    %c768_22 = arith.constant 768 : index
    %38 = vector.load %arg8[%c4_21, %c768_22] : memref<36x2560xf32, #tpu.memory_space<vmem>>, vector<4x256xf32>
    tpu.vector_store %arg8[%c4_21, %c768_22], %37 {strides = array<i32>} : memref<36x2560xf32, #tpu.memory_space<vmem>>, vector<4x256xf32>,
    %39 = vector.extract_strided_slice %30 {offsets = [16, 0], sizes = [4, 256], strides = [1, 1]} : vector<40x256xf32> to vector<4x256xf32>
    %c4_23 = arith.constant 4 : index
    %c1024_24 = arith.constant 1024 : index
    %40 = vector.load %arg8[%c4_23, %c1024_24] : memref<36x2560xf32, #tpu.memory_space<vmem>>, vector<4x256xf32>
    tpu.vector_store %arg8[%c4_23, %c1024_24], %39 {strides = array<i32>} : memref<36x2560xf32, #tpu.memory_space<vmem>>, vector<4x256xf32>,
    %41 = vector.extract_strided_slice %30 {offsets = [20, 0], sizes = [4, 256], strides = [1, 1]} : vector<40x256xf32> to vector<4x256xf32>
    %c4_25 = arith.constant 4 : index
    %c1280_26 = arith.constant 1280 : index
    %42 = vector.load %arg8[%c4_25, %c1280_26] : memref<36x2560xf32, #tpu.memory_space<vmem>>, vector<4x256xf32>
    tpu.vector_store %arg8[%c4_25, %c1280_26], %41 {strides = array<i32>} : memref<36x2560xf32, #tpu.memory_space<vmem>>, vector<4x256xf32>,
    %43 = vector.extract_strided_slice %30 {offsets = [24, 0], sizes = [4, 256], strides = [1, 1]} : vector<40x256xf32> to vector<4x256xf32>
    %c4_27 = arith.constant 4 : index
    %c1536_28 = arith.constant 1536 : index
    %44 = vector.load %arg8[%c4_27, %c1536_28] : memref<36x2560xf32, #tpu.memory_space<vmem>>, vector<4x256xf32>
    tpu.vector_store %arg8[%c4_27, %c1536_28], %43 {strides = array<i32>} : memref<36x2560xf32, #tpu.memory_space<vmem>>, vector<4x256xf32>,
    %45 = vector.extract_strided_slice %30 {offsets = [28, 0], sizes = [4, 256], strides = [1, 1]} : vector<40x256xf32> to vector<4x256xf32>
    %c4_29 = arith.constant 4 : index
    %c1792_30 = arith.constant 1792 : index
    %46 = vector.load %arg8[%c4_29, %c1792_30] : memref<36x2560xf32, #tpu.memory_space<vmem>>, vector<4x256xf32>
    tpu.vector_store %arg8[%c4_29, %c1792_30], %45 {strides = array<i32>} : memref<36x2560xf32, #tpu.memory_space<vmem>>, vector<4x256xf32>,
    %47 = vector.extract_strided_slice %30 {offsets = [32, 0], sizes = [4, 256], strides = [1, 1]} : vector<40x256xf32> to vector<4x256xf32>
    %c4_31 = arith.constant 4 : index
    %c2048_32 = arith.constant 2048 : index
    %48 = vector.load %arg8[%c4_31, %c2048_32] : memref<36x2560xf32, #tpu.memory_space<vmem>>, vector<4x256xf32>
    tpu.vector_store %arg8[%c4_31, %c2048_32], %47 {strides = array<i32>} : memref<36x2560xf32, #tpu.memory_space<vmem>>, vector<4x256xf32>,
    %49 = vector.extract_strided_slice %30 {offsets = [36, 0], sizes = [4, 256], strides = [1, 1]} : vector<40x256xf32> to vector<4x256xf32>
    %c4_33 = arith.constant 4 : index
    %c2304_34 = arith.constant 2304 : index
    %50 = vector.load %arg8[%c4_33, %c2304_34] : memref<36x2560xf32, #tpu.memory_space<vmem>>, vector<4x256xf32>
    tpu.vector_store %arg8[%c4_33, %c2304_34], %49 {strides = array<i32>} : memref<36x2560xf32, #tpu.memory_space<vmem>>, vector<4x256xf32>,
    %c0_35 = arith.constant 0 : index
    %c0_36 = arith.constant 0 : index
    %51 = vector.load %arg2[%c0_35, %c0_36] : memref<40x256xf32, #tpu.memory_space<vmem>>, vector<40x256xf32>
    %c15_i32 = arith.constant 15 : i32
    %52 = tpu.dynamic_rotate %51 by %c15_i32 dim 1 : vector<40x256xf32>, i32 -> vector<40x256xf32>
    %53 = vector.extract_strided_slice %0 {offsets = [2, 0], sizes = [1, 256], strides = [1, 1]} : vector<9x256xf32> to vector<1x256xf32>
    %54 = vector.broadcast %53 : vector<1x256xf32> to vector<40x256xf32>
    %55 = arith.mulf %52, %54 : vector<40x256xf32>
    %56 = vector.extract_strided_slice %55 {offsets = [0, 0], sizes = [4, 256], strides = [1, 1]} : vector<40x256xf32> to vector<4x256xf32>
    %c8 = arith.constant 8 : index
    %c0_37 = arith.constant 0 : index
    %57 = vector.load %arg8[%c8, %c0_37] : memref<36x2560xf32, #tpu.memory_space<vmem>>, vector<4x256xf32>
    tpu.vector_store %arg8[%c8, %c0_37], %56 {strides = array<i32>} : memref<36x2560xf32, #tpu.memory_space<vmem>>, vector<4x256xf32>,
    %58 = vector.extract_strided_slice %55 {offsets = [4, 0], sizes = [4, 256], strides = [1, 1]} : vector<40x256xf32> to vector<4x256xf32>
    %c8_38 = arith.constant 8 : index
    %c256_39 = arith.constant 256 : index
    %59 = vector.load %arg8[%c8_38, %c256_39] : memref<36x2560xf32, #tpu.memory_space<vmem>>, vector<4x256xf32>
    tpu.vector_store %arg8[%c8_38, %c256_39], %58 {strides = array<i32>} : memref<36x2560xf32, #tpu.memory_space<vmem>>, vector<4x256xf32>,
    %60 = vector.extract_strided_slice %55 {offsets = [8, 0], sizes = [4, 256], strides = [1, 1]} : vector<40x256xf32> to vector<4x256xf32>
    %c8_40 = arith.constant 8 : index
    %c512_41 = arith.constant 512 : index
    %61 = vector.load %arg8[%c8_40, %c512_41] : memref<36x2560xf32, #tpu.memory_space<vmem>>, vector<4x256xf32>
    tpu.vector_store %arg8[%c8_40, %c512_41], %60 {strides = array<i32>} : memref<36x2560xf32, #tpu.memory_space<vmem>>, vector<4x256xf32>,
    %62 = vector.extract_strided_slice %55 {offsets = [12, 0], sizes = [4, 256], strides = [1, 1]} : vector<40x256xf32> to vector<4x256xf32>
    %c8_42 = arith.constant 8 : index
    %c768_43 = arith.constant 768 : index
    %63 = vector.load %arg8[%c8_42, %c768_43] : memref<36x2560xf32, #tpu.memory_space<vmem>>, vector<4x256xf32>
    tpu.vector_store %arg8[%c8_42, %c768_43], %62 {strides = array<i32>} : memref<36x2560xf32, #tpu.memory_space<vmem>>, vector<4x256xf32>,
    %64 = vector.extract_strided_slice %55 {offsets = [16, 0], sizes = [4, 256], strides = [1, 1]} : vector<40x256xf32> to vector<4x256xf32>
    %c8_44 = arith.constant 8 : index
    %c1024_45 = arith.constant 1024 : index
    %65 = vector.load %arg8[%c8_44, %c1024_45] : memref<36x2560xf32, #tpu.memory_space<vmem>>, vector<4x256xf32>
    tpu.vector_store %arg8[%c8_44, %c1024_45], %64 {strides = array<i32>} : memref<36x2560xf32, #tpu.memory_space<vmem>>, vector<4x256xf32>,
    %66 = vector.extract_strided_slice %55 {offsets = [20, 0], sizes = [4, 256], strides = [1, 1]} : vector<40x256xf32> to vector<4x256xf32>
    %c8_46 = arith.constant 8 : index
    %c1280_47 = arith.constant 1280 : index
    %67 = vector.load %arg8[%c8_46, %c1280_47] : memref<36x2560xf32, #tpu.memory_space<vmem>>, vector<4x256xf32>
    tpu.vector_store %arg8[%c8_46, %c1280_47], %66 {strides = array<i32>} : memref<36x2560xf32, #tpu.memory_space<vmem>>, vector<4x256xf32>,
    %68 = vector.extract_strided_slice %55 {offsets = [24, 0], sizes = [4, 256], strides = [1, 1]} : vector<40x256xf32> to vector<4x256xf32>
    %c8_48 = arith.constant 8 : index
    %c1536_49 = arith.constant 1536 : index
    %69 = vector.load %arg8[%c8_48, %c1536_49] : memref<36x2560xf32, #tpu.memory_space<vmem>>, vector<4x256xf32>
    tpu.vector_store %arg8[%c8_48, %c1536_49], %68 {strides = array<i32>} : memref<36x2560xf32, #tpu.memory_space<vmem>>, vector<4x256xf32>,
    %70 = vector.extract_strided_slice %55 {offsets = [28, 0], sizes = [4, 256], strides = [1, 1]} : vector<40x256xf32> to vector<4x256xf32>
    %c8_50 = arith.constant 8 : index
    %c1792_51 = arith.constant 1792 : index
    %71 = vector.load %arg8[%c8_50, %c1792_51] : memref<36x2560xf32, #tpu.memory_space<vmem>>, vector<4x256xf32>
    tpu.vector_store %arg8[%c8_50, %c1792_51], %70 {strides = array<i32>} : memref<36x2560xf32, #tpu.memory_space<vmem>>, vector<4x256xf32>,
    %72 = vector.extract_strided_slice %55 {offsets = [32, 0], sizes = [4, 256], strides = [1, 1]} : vector<40x256xf32> to vector<4x256xf32>
    %c8_52 = arith.constant 8 : index
    %c2048_53 = arith.constant 2048 : index
    %73 = vector.load %arg8[%c8_52, %c2048_53] : memref<36x2560xf32, #tpu.memory_space<vmem>>, vector<4x256xf32>
    tpu.vector_store %arg8[%c8_52, %c2048_53], %72 {strides = array<i32>} : memref<36x2560xf32, #tpu.memory_space<vmem>>, vector<4x256xf32>,
    %74 = vector.extract_strided_slice %55 {offsets = [36, 0], sizes = [4, 256], strides = [1, 1]} : vector<40x256xf32> to vector<4x256xf32>
    %c8_54 = arith.constant 8 : index
    %c2304_55 = arith.constant 2304 : index
    %75 = vector.load %arg8[%c8_54, %c2304_55] : memref<36x2560xf32, #tpu.memory_space<vmem>>, vector<4x256xf32>
    tpu.vector_store %arg8[%c8_54, %c2304_55], %74 {strides = array<i32>} : memref<36x2560xf32, #tpu.memory_space<vmem>>, vector<4x256xf32>,
    %c0_56 = arith.constant 0 : index
    %c0_57 = arith.constant 0 : index
    %76 = vector.load %arg2[%c0_56, %c0_57] : memref<40x256xf32, #tpu.memory_space<vmem>>, vector<40x256xf32>
    %c1_i32 = arith.constant 1 : i32
    %77 = tpu.dynamic_rotate %76 by %c1_i32 dim 1 : vector<40x256xf32>, i32 -> vector<40x256xf32>
    %78 = vector.extract_strided_slice %0 {offsets = [3, 0], sizes = [1, 256], strides = [1, 1]} : vector<9x256xf32> to vector<1x256xf32>
    %79 = vector.broadcast %78 : vector<1x256xf32> to vector<40x256xf32>
    %80 = arith.mulf %77, %79 : vector<40x256xf32>
    %81 = vector.extract_strided_slice %80 {offsets = [0, 0], sizes = [4, 256], strides = [1, 1]} : vector<40x256xf32> to vector<4x256xf32>
    %c12 = arith.constant 12 : index
    %c0_58 = arith.constant 0 : index
    %82 = vector.load %arg8[%c12, %c0_58] : memref<36x2560xf32, #tpu.memory_space<vmem>>, vector<4x256xf32>
    tpu.vector_store %arg8[%c12, %c0_58], %81 {strides = array<i32>} : memref<36x2560xf32, #tpu.memory_space<vmem>>, vector<4x256xf32>,
    %83 = vector.extract_strided_slice %80 {offsets = [4, 0], sizes = [4, 256], strides = [1, 1]} : vector<40x256xf32> to vector<4x256xf32>
    %c12_59 = arith.constant 12 : index
    %c256_60 = arith.constant 256 : index
    %84 = vector.load %arg8[%c12_59, %c256_60] : memref<36x2560xf32, #tpu.memory_space<vmem>>, vector<4x256xf32>
    tpu.vector_store %arg8[%c12_59, %c256_60], %83 {strides = array<i32>} : memref<36x2560xf32, #tpu.memory_space<vmem>>, vector<4x256xf32>,
    %85 = vector.extract_strided_slice %80 {offsets = [8, 0], sizes = [4, 256], strides = [1, 1]} : vector<40x256xf32> to vector<4x256xf32>
    %c12_61 = arith.constant 12 : index
    %c512_62 = arith.constant 512 : index
    %86 = vector.load %arg8[%c12_61, %c512_62] : memref<36x2560xf32, #tpu.memory_space<vmem>>, vector<4x256xf32>
    tpu.vector_store %arg8[%c12_61, %c512_62], %85 {strides = array<i32>} : memref<36x2560xf32, #tpu.memory_space<vmem>>, vector<4x256xf32>,
    %87 = vector.extract_strided_slice %80 {offsets = [12, 0], sizes = [4, 256], strides = [1, 1]} : vector<40x256xf32> to vector<4x256xf32>
    %c12_63 = arith.constant 12 : index
    %c768_64 = arith.constant 768 : index
    %88 = vector.load %arg8[%c12_63, %c768_64] : memref<36x2560xf32, #tpu.memory_space<vmem>>, vector<4x256xf32>
    tpu.vector_store %arg8[%c12_63, %c768_64], %87 {strides = array<i32>} : memref<36x2560xf32, #tpu.memory_space<vmem>>, vector<4x256xf32>,
    %89 = vector.extract_strided_slice %80 {offsets = [16, 0], sizes = [4, 256], strides = [1, 1]} : vector<40x256xf32> to vector<4x256xf32>
    %c12_65 = arith.constant 12 : index
    %c1024_66 = arith.constant 1024 : index
    %90 = vector.load %arg8[%c12_65, %c1024_66] : memref<36x2560xf32, #tpu.memory_space<vmem>>, vector<4x256xf32>
    tpu.vector_store %arg8[%c12_65, %c1024_66], %89 {strides = array<i32>} : memref<36x2560xf32, #tpu.memory_space<vmem>>, vector<4x256xf32>,
    %91 = vector.extract_strided_slice %80 {offsets = [20, 0], sizes = [4, 256], strides = [1, 1]} : vector<40x256xf32> to vector<4x256xf32>
    %c12_67 = arith.constant 12 : index
    %c1280_68 = arith.constant 1280 : index
    %92 = vector.load %arg8[%c12_67, %c1280_68] : memref<36x2560xf32, #tpu.memory_space<vmem>>, vector<4x256xf32>
    tpu.vector_store %arg8[%c12_67, %c1280_68], %91 {strides = array<i32>} : memref<36x2560xf32, #tpu.memory_space<vmem>>, vector<4x256xf32>,
    %93 = vector.extract_strided_slice %80 {offsets = [24, 0], sizes = [4, 256], strides = [1, 1]} : vector<40x256xf32> to vector<4x256xf32>
    %c12_69 = arith.constant 12 : index
    %c1536_70 = arith.constant 1536 : index
    %94 = vector.load %arg8[%c12_69, %c1536_70] : memref<36x2560xf32, #tpu.memory_space<vmem>>, vector<4x256xf32>
    tpu.vector_store %arg8[%c12_69, %c1536_70], %93 {strides = array<i32>} : memref<36x2560xf32, #tpu.memory_space<vmem>>, vector<4x256xf32>,
    %95 = vector.extract_strided_slice %80 {offsets = [28, 0], sizes = [4, 256], strides = [1, 1]} : vector<40x256xf32> to vector<4x256xf32>
    %c12_71 = arith.constant 12 : index
    %c1792_72 = arith.constant 1792 : index
    %96 = vector.load %arg8[%c12_71, %c1792_72] : memref<36x2560xf32, #tpu.memory_space<vmem>>, vector<4x256xf32>
    tpu.vector_store %arg8[%c12_71, %c1792_72], %95 {strides = array<i32>} : memref<36x2560xf32, #tpu.memory_space<vmem>>, vector<4x256xf32>,
    %97 = vector.extract_strided_slice %80 {offsets = [32, 0], sizes = [4, 256], strides = [1, 1]} : vector<40x256xf32> to vector<4x256xf32>
    %c12_73 = arith.constant 12 : index
    %c2048_74 = arith.constant 2048 : index
    %98 = vector.load %arg8[%c12_73, %c2048_74] : memref<36x2560xf32, #tpu.memory_space<vmem>>, vector<4x256xf32>
    tpu.vector_store %arg8[%c12_73, %c2048_74], %97 {strides = array<i32>} : memref<36x2560xf32, #tpu.memory_space<vmem>>, vector<4x256xf32>,
    %99 = vector.extract_strided_slice %80 {offsets = [36, 0], sizes = [4, 256], strides = [1, 1]} : vector<40x256xf32> to vector<4x256xf32>
    %c12_75 = arith.constant 12 : index
    %c2304_76 = arith.constant 2304 : index
    %100 = vector.load %arg8[%c12_75, %c2304_76] : memref<36x2560xf32, #tpu.memory_space<vmem>>, vector<4x256xf32>
    tpu.vector_store %arg8[%c12_75, %c2304_76], %99 {strides = array<i32>} : memref<36x2560xf32, #tpu.memory_space<vmem>>, vector<4x256xf32>,
    %c0_77 = arith.constant 0 : index
    %c0_78 = arith.constant 0 : index
    %101 = vector.load %arg2[%c0_77, %c0_78] : memref<40x256xf32, #tpu.memory_space<vmem>>, vector<40x256xf32>
    %102 = vector.extract_strided_slice %101 {offsets = [0, 0], sizes = [4, 256], strides = [1, 1]} : vector<40x256xf32> to vector<4x256xf32>
    %c16 = arith.constant 16 : index
    %c0_79 = arith.constant 0 : index
    %103 = vector.load %arg8[%c16, %c0_79] : memref<36x2560xf32, #tpu.memory_space<vmem>>, vector<4x256xf32>
    tpu.vector_store %arg8[%c16, %c0_79], %102 {strides = array<i32>} : memref<36x2560xf32, #tpu.memory_space<vmem>>, vector<4x256xf32>,
    %104 = vector.extract_strided_slice %101 {offsets = [4, 0], sizes = [4, 256], strides = [1, 1]} : vector<40x256xf32> to vector<4x256xf32>
    %c16_80 = arith.constant 16 : index
    %c256_81 = arith.constant 256 : index
    %105 = vector.load %arg8[%c16_80, %c256_81] : memref<36x2560xf32, #tpu.memory_space<vmem>>, vector<4x256xf32>
    tpu.vector_store %arg8[%c16_80, %c256_81], %104 {strides = array<i32>} : memref<36x2560xf32, #tpu.memory_space<vmem>>, vector<4x256xf32>,
    %106 = vector.extract_strided_slice %101 {offsets = [8, 0], sizes = [4, 256], strides = [1, 1]} : vector<40x256xf32> to vector<4x256xf32>
    %c16_82 = arith.constant 16 : index
    %c512_83 = arith.constant 512 : index
    %107 = vector.load %arg8[%c16_82, %c512_83] : memref<36x2560xf32, #tpu.memory_space<vmem>>, vector<4x256xf32>
    tpu.vector_store %arg8[%c16_82, %c512_83], %106 {strides = array<i32>} : memref<36x2560xf32, #tpu.memory_space<vmem>>, vector<4x256xf32>,
    %108 = vector.extract_strided_slice %101 {offsets = [12, 0], sizes = [4, 256], strides = [1, 1]} : vector<40x256xf32> to vector<4x256xf32>
    %c16_84 = arith.constant 16 : index
    %c768_85 = arith.constant 768 : index
    %109 = vector.load %arg8[%c16_84, %c768_85] : memref<36x2560xf32, #tpu.memory_space<vmem>>, vector<4x256xf32>
    tpu.vector_store %arg8[%c16_84, %c768_85], %108 {strides = array<i32>} : memref<36x2560xf32, #tpu.memory_space<vmem>>, vector<4x256xf32>,
    %110 = vector.extract_strided_slice %101 {offsets = [16, 0], sizes = [4, 256], strides = [1, 1]} : vector<40x256xf32> to vector<4x256xf32>
    %c16_86 = arith.constant 16 : index
    %c1024_87 = arith.constant 1024 : index
    %111 = vector.load %arg8[%c16_86, %c1024_87] : memref<36x2560xf32, #tpu.memory_space<vmem>>, vector<4x256xf32>
    tpu.vector_store %arg8[%c16_86, %c1024_87], %110 {strides = array<i32>} : memref<36x2560xf32, #tpu.memory_space<vmem>>, vector<4x256xf32>,
    %112 = vector.extract_strided_slice %101 {offsets = [20, 0], sizes = [4, 256], strides = [1, 1]} : vector<40x256xf32> to vector<4x256xf32>
    %c16_88 = arith.constant 16 : index
    %c1280_89 = arith.constant 1280 : index
    %113 = vector.load %arg8[%c16_88, %c1280_89] : memref<36x2560xf32, #tpu.memory_space<vmem>>, vector<4x256xf32>
    tpu.vector_store %arg8[%c16_88, %c1280_89], %112 {strides = array<i32>} : memref<36x2560xf32, #tpu.memory_space<vmem>>, vector<4x256xf32>,
    %114 = vector.extract_strided_slice %101 {offsets = [24, 0], sizes = [4, 256], strides = [1, 1]} : vector<40x256xf32> to vector<4x256xf32>
    %c16_90 = arith.constant 16 : index
    %c1536_91 = arith.constant 1536 : index
    %115 = vector.load %arg8[%c16_90, %c1536_91] : memref<36x2560xf32, #tpu.memory_space<vmem>>, vector<4x256xf32>
    tpu.vector_store %arg8[%c16_90, %c1536_91], %114 {strides = array<i32>} : memref<36x2560xf32, #tpu.memory_space<vmem>>, vector<4x256xf32>,
    %116 = vector.extract_strided_slice %101 {offsets = [28, 0], sizes = [4, 256], strides = [1, 1]} : vector<40x256xf32> to vector<4x256xf32>
    %c16_92 = arith.constant 16 : index
    %c1792_93 = arith.constant 1792 : index
    %117 = vector.load %arg8[%c16_92, %c1792_93] : memref<36x2560xf32, #tpu.memory_space<vmem>>, vector<4x256xf32>
    tpu.vector_store %arg8[%c16_92, %c1792_93], %116 {strides = array<i32>} : memref<36x2560xf32, #tpu.memory_space<vmem>>, vector<4x256xf32>,
    %118 = vector.extract_strided_slice %101 {offsets = [32, 0], sizes = [4, 256], strides = [1, 1]} : vector<40x256xf32> to vector<4x256xf32>
    %c16_94 = arith.constant 16 : index
    %c2048_95 = arith.constant 2048 : index
    %119 = vector.load %arg8[%c16_94, %c2048_95] : memref<36x2560xf32, #tpu.memory_space<vmem>>, vector<4x256xf32>
    tpu.vector_store %arg8[%c16_94, %c2048_95], %118 {strides = array<i32>} : memref<36x2560xf32, #tpu.memory_space<vmem>>, vector<4x256xf32>,
    %120 = vector.extract_strided_slice %101 {offsets = [36, 0], sizes = [4, 256], strides = [1, 1]} : vector<40x256xf32> to vector<4x256xf32>
    %c16_96 = arith.constant 16 : index
    %c2304_97 = arith.constant 2304 : index
    %121 = vector.load %arg8[%c16_96, %c2304_97] : memref<36x2560xf32, #tpu.memory_space<vmem>>, vector<4x256xf32>
    tpu.vector_store %arg8[%c16_96, %c2304_97], %120 {strides = array<i32>} : memref<36x2560xf32, #tpu.memory_space<vmem>>, vector<4x256xf32>,
    %c0_98 = arith.constant 0 : index
    %c0_99 = arith.constant 0 : index
    %122 = vector.load %arg2[%c0_98, %c0_99] : memref<40x256xf32, #tpu.memory_space<vmem>>, vector<40x256xf32>
    %c255_i32 = arith.constant 255 : i32
    %123 = tpu.dynamic_rotate %122 by %c255_i32 dim 1 : vector<40x256xf32>, i32 -> vector<40x256xf32>
    %124 = vector.extract_strided_slice %0 {offsets = [5, 0], sizes = [1, 256], strides = [1, 1]} : vector<9x256xf32> to vector<1x256xf32>
    %125 = vector.broadcast %124 : vector<1x256xf32> to vector<40x256xf32>
    %126 = arith.mulf %123, %125 : vector<40x256xf32>
    %127 = vector.extract_strided_slice %126 {offsets = [0, 0], sizes = [4, 256], strides = [1, 1]} : vector<40x256xf32> to vector<4x256xf32>
    %c20 = arith.constant 20 : index
    %c0_100 = arith.constant 0 : index
    %128 = vector.load %arg8[%c20, %c0_100] : memref<36x2560xf32, #tpu.memory_space<vmem>>, vector<4x256xf32>
    tpu.vector_store %arg8[%c20, %c0_100], %127 {strides = array<i32>} : memref<36x2560xf32, #tpu.memory_space<vmem>>, vector<4x256xf32>,
    %129 = vector.extract_strided_slice %126 {offsets = [4, 0], sizes = [4, 256], strides = [1, 1]} : vector<40x256xf32> to vector<4x256xf32>
    %c20_101 = arith.constant 20 : index
    %c256_102 = arith.constant 256 : index
    %130 = vector.load %arg8[%c20_101, %c256_102] : memref<36x2560xf32, #tpu.memory_space<vmem>>, vector<4x256xf32>
    tpu.vector_store %arg8[%c20_101, %c256_102], %129 {strides = array<i32>} : memref<36x2560xf32, #tpu.memory_space<vmem>>, vector<4x256xf32>,
    %131 = vector.extract_strided_slice %126 {offsets = [8, 0], sizes = [4, 256], strides = [1, 1]} : vector<40x256xf32> to vector<4x256xf32>
    %c20_103 = arith.constant 20 : index
    %c512_104 = arith.constant 512 : index
    %132 = vector.load %arg8[%c20_103, %c512_104] : memref<36x2560xf32, #tpu.memory_space<vmem>>, vector<4x256xf32>
    tpu.vector_store %arg8[%c20_103, %c512_104], %131 {strides = array<i32>} : memref<36x2560xf32, #tpu.memory_space<vmem>>, vector<4x256xf32>,
    %133 = vector.extract_strided_slice %126 {offsets = [12, 0], sizes = [4, 256], strides = [1, 1]} : vector<40x256xf32> to vector<4x256xf32>
    %c20_105 = arith.constant 20 : index
    %c768_106 = arith.constant 768 : index
    %134 = vector.load %arg8[%c20_105, %c768_106] : memref<36x2560xf32, #tpu.memory_space<vmem>>, vector<4x256xf32>
    tpu.vector_store %arg8[%c20_105, %c768_106], %133 {strides = array<i32>} : memref<36x2560xf32, #tpu.memory_space<vmem>>, vector<4x256xf32>,
    %135 = vector.extract_strided_slice %126 {offsets = [16, 0], sizes = [4, 256], strides = [1, 1]} : vector<40x256xf32> to vector<4x256xf32>
    %c20_107 = arith.constant 20 : index
    %c1024_108 = arith.constant 1024 : index
    %136 = vector.load %arg8[%c20_107, %c1024_108] : memref<36x2560xf32, #tpu.memory_space<vmem>>, vector<4x256xf32>
    tpu.vector_store %arg8[%c20_107, %c1024_108], %135 {strides = array<i32>} : memref<36x2560xf32, #tpu.memory_space<vmem>>, vector<4x256xf32>,
    %137 = vector.extract_strided_slice %126 {offsets = [20, 0], sizes = [4, 256], strides = [1, 1]} : vector<40x256xf32> to vector<4x256xf32>
    %c20_109 = arith.constant 20 : index
    %c1280_110 = arith.constant 1280 : index
    %138 = vector.load %arg8[%c20_109, %c1280_110] : memref<36x2560xf32, #tpu.memory_space<vmem>>, vector<4x256xf32>
    tpu.vector_store %arg8[%c20_109, %c1280_110], %137 {strides = array<i32>} : memref<36x2560xf32, #tpu.memory_space<vmem>>, vector<4x256xf32>,
    %139 = vector.extract_strided_slice %126 {offsets = [24, 0], sizes = [4, 256], strides = [1, 1]} : vector<40x256xf32> to vector<4x256xf32>
    %c20_111 = arith.constant 20 : index
    %c1536_112 = arith.constant 1536 : index
    %140 = vector.load %arg8[%c20_111, %c1536_112] : memref<36x2560xf32, #tpu.memory_space<vmem>>, vector<4x256xf32>
    tpu.vector_store %arg8[%c20_111, %c1536_112], %139 {strides = array<i32>} : memref<36x2560xf32, #tpu.memory_space<vmem>>, vector<4x256xf32>,
    %141 = vector.extract_strided_slice %126 {offsets = [28, 0], sizes = [4, 256], strides = [1, 1]} : vector<40x256xf32> to vector<4x256xf32>
    %c20_113 = arith.constant 20 : index
    %c1792_114 = arith.constant 1792 : index
    %142 = vector.load %arg8[%c20_113, %c1792_114] : memref<36x2560xf32, #tpu.memory_space<vmem>>, vector<4x256xf32>
    tpu.vector_store %arg8[%c20_113, %c1792_114], %141 {strides = array<i32>} : memref<36x2560xf32, #tpu.memory_space<vmem>>, vector<4x256xf32>,
    %143 = vector.extract_strided_slice %126 {offsets = [32, 0], sizes = [4, 256], strides = [1, 1]} : vector<40x256xf32> to vector<4x256xf32>
    %c20_115 = arith.constant 20 : index
    %c2048_116 = arith.constant 2048 : index
    %144 = vector.load %arg8[%c20_115, %c2048_116] : memref<36x2560xf32, #tpu.memory_space<vmem>>, vector<4x256xf32>
    tpu.vector_store %arg8[%c20_115, %c2048_116], %143 {strides = array<i32>} : memref<36x2560xf32, #tpu.memory_space<vmem>>, vector<4x256xf32>,
    %145 = vector.extract_strided_slice %126 {offsets = [36, 0], sizes = [4, 256], strides = [1, 1]} : vector<40x256xf32> to vector<4x256xf32>
    %c20_117 = arith.constant 20 : index
    %c2304_118 = arith.constant 2304 : index
    %146 = vector.load %arg8[%c20_117, %c2304_118] : memref<36x2560xf32, #tpu.memory_space<vmem>>, vector<4x256xf32>
    tpu.vector_store %arg8[%c20_117, %c2304_118], %145 {strides = array<i32>} : memref<36x2560xf32, #tpu.memory_space<vmem>>, vector<4x256xf32>,
    %c0_119 = arith.constant 0 : index
    %c0_120 = arith.constant 0 : index
    %147 = vector.load %arg2[%c0_119, %c0_120] : memref<40x256xf32, #tpu.memory_space<vmem>>, vector<40x256xf32>
    %c241_i32 = arith.constant 241 : i32
    %148 = tpu.dynamic_rotate %147 by %c241_i32 dim 1 : vector<40x256xf32>, i32 -> vector<40x256xf32>
    %149 = vector.extract_strided_slice %0 {offsets = [6, 0], sizes = [1, 256], strides = [1, 1]} : vector<9x256xf32> to vector<1x256xf32>
    %150 = vector.broadcast %149 : vector<1x256xf32> to vector<40x256xf32>
    %151 = arith.mulf %148, %150 : vector<40x256xf32>
    %152 = vector.extract_strided_slice %151 {offsets = [0, 0], sizes = [4, 256], strides = [1, 1]} : vector<40x256xf32> to vector<4x256xf32>
    %c24 = arith.constant 24 : index
    %c0_121 = arith.constant 0 : index
    %153 = vector.load %arg8[%c24, %c0_121] : memref<36x2560xf32, #tpu.memory_space<vmem>>, vector<4x256xf32>
    tpu.vector_store %arg8[%c24, %c0_121], %152 {strides = array<i32>} : memref<36x2560xf32, #tpu.memory_space<vmem>>, vector<4x256xf32>,
    %154 = vector.extract_strided_slice %151 {offsets = [4, 0], sizes = [4, 256], strides = [1, 1]} : vector<40x256xf32> to vector<4x256xf32>
    %c24_122 = arith.constant 24 : index
    %c256_123 = arith.constant 256 : index
    %155 = vector.load %arg8[%c24_122, %c256_123] : memref<36x2560xf32, #tpu.memory_space<vmem>>, vector<4x256xf32>
    tpu.vector_store %arg8[%c24_122, %c256_123], %154 {strides = array<i32>} : memref<36x2560xf32, #tpu.memory_space<vmem>>, vector<4x256xf32>,
    %156 = vector.extract_strided_slice %151 {offsets = [8, 0], sizes = [4, 256], strides = [1, 1]} : vector<40x256xf32> to vector<4x256xf32>
    %c24_124 = arith.constant 24 : index
    %c512_125 = arith.constant 512 : index
    %157 = vector.load %arg8[%c24_124, %c512_125] : memref<36x2560xf32, #tpu.memory_space<vmem>>, vector<4x256xf32>
    tpu.vector_store %arg8[%c24_124, %c512_125], %156 {strides = array<i32>} : memref<36x2560xf32, #tpu.memory_space<vmem>>, vector<4x256xf32>,
    %158 = vector.extract_strided_slice %151 {offsets = [12, 0], sizes = [4, 256], strides = [1, 1]} : vector<40x256xf32> to vector<4x256xf32>
    %c24_126 = arith.constant 24 : index
    %c768_127 = arith.constant 768 : index
    %159 = vector.load %arg8[%c24_126, %c768_127] : memref<36x2560xf32, #tpu.memory_space<vmem>>, vector<4x256xf32>
    tpu.vector_store %arg8[%c24_126, %c768_127], %158 {strides = array<i32>} : memref<36x2560xf32, #tpu.memory_space<vmem>>, vector<4x256xf32>,
    %160 = vector.extract_strided_slice %151 {offsets = [16, 0], sizes = [4, 256], strides = [1, 1]} : vector<40x256xf32> to vector<4x256xf32>
    %c24_128 = arith.constant 24 : index
    %c1024_129 = arith.constant 1024 : index
    %161 = vector.load %arg8[%c24_128, %c1024_129] : memref<36x2560xf32, #tpu.memory_space<vmem>>, vector<4x256xf32>
    tpu.vector_store %arg8[%c24_128, %c1024_129], %160 {strides = array<i32>} : memref<36x2560xf32, #tpu.memory_space<vmem>>, vector<4x256xf32>,
    %162 = vector.extract_strided_slice %151 {offsets = [20, 0], sizes = [4, 256], strides = [1, 1]} : vector<40x256xf32> to vector<4x256xf32>
    %c24_130 = arith.constant 24 : index
    %c1280_131 = arith.constant 1280 : index
    %163 = vector.load %arg8[%c24_130, %c1280_131] : memref<36x2560xf32, #tpu.memory_space<vmem>>, vector<4x256xf32>
    tpu.vector_store %arg8[%c24_130, %c1280_131], %162 {strides = array<i32>} : memref<36x2560xf32, #tpu.memory_space<vmem>>, vector<4x256xf32>,
    %164 = vector.extract_strided_slice %151 {offsets = [24, 0], sizes = [4, 256], strides = [1, 1]} : vector<40x256xf32> to vector<4x256xf32>
    %c24_132 = arith.constant 24 : index
    %c1536_133 = arith.constant 1536 : index
    %165 = vector.load %arg8[%c24_132, %c1536_133] : memref<36x2560xf32, #tpu.memory_space<vmem>>, vector<4x256xf32>
    tpu.vector_store %arg8[%c24_132, %c1536_133], %164 {strides = array<i32>} : memref<36x2560xf32, #tpu.memory_space<vmem>>, vector<4x256xf32>,
    %166 = vector.extract_strided_slice %151 {offsets = [28, 0], sizes = [4, 256], strides = [1, 1]} : vector<40x256xf32> to vector<4x256xf32>
    %c24_134 = arith.constant 24 : index
    %c1792_135 = arith.constant 1792 : index
    %167 = vector.load %arg8[%c24_134, %c1792_135] : memref<36x2560xf32, #tpu.memory_space<vmem>>, vector<4x256xf32>
    tpu.vector_store %arg8[%c24_134, %c1792_135], %166 {strides = array<i32>} : memref<36x2560xf32, #tpu.memory_space<vmem>>, vector<4x256xf32>,
    %168 = vector.extract_strided_slice %151 {offsets = [32, 0], sizes = [4, 256], strides = [1, 1]} : vector<40x256xf32> to vector<4x256xf32>
    %c24_136 = arith.constant 24 : index
    %c2048_137 = arith.constant 2048 : index
    %169 = vector.load %arg8[%c24_136, %c2048_137] : memref<36x2560xf32, #tpu.memory_space<vmem>>, vector<4x256xf32>
    tpu.vector_store %arg8[%c24_136, %c2048_137], %168 {strides = array<i32>} : memref<36x2560xf32, #tpu.memory_space<vmem>>, vector<4x256xf32>,
    %170 = vector.extract_strided_slice %151 {offsets = [36, 0], sizes = [4, 256], strides = [1, 1]} : vector<40x256xf32> to vector<4x256xf32>
    %c24_138 = arith.constant 24 : index
    %c2304_139 = arith.constant 2304 : index
    %171 = vector.load %arg8[%c24_138, %c2304_139] : memref<36x2560xf32, #tpu.memory_space<vmem>>, vector<4x256xf32>
    tpu.vector_store %arg8[%c24_138, %c2304_139], %170 {strides = array<i32>} : memref<36x2560xf32, #tpu.memory_space<vmem>>, vector<4x256xf32>,
    %c0_140 = arith.constant 0 : index
    %c0_141 = arith.constant 0 : index
    %172 = vector.load %arg2[%c0_140, %c0_141] : memref<40x256xf32, #tpu.memory_space<vmem>>, vector<40x256xf32>
    %c240_i32 = arith.constant 240 : i32
    %173 = tpu.dynamic_rotate %172 by %c240_i32 dim 1 : vector<40x256xf32>, i32 -> vector<40x256xf32>
    %174 = vector.extract_strided_slice %0 {offsets = [7, 0], sizes = [1, 256], strides = [1, 1]} : vector<9x256xf32> to vector<1x256xf32>
    %175 = vector.broadcast %174 : vector<1x256xf32> to vector<40x256xf32>
    %176 = arith.mulf %173, %175 : vector<40x256xf32>
    %177 = vector.extract_strided_slice %176 {offsets = [0, 0], sizes = [4, 256], strides = [1, 1]} : vector<40x256xf32> to vector<4x256xf32>
    %c28 = arith.constant 28 : index
    %c0_142 = arith.constant 0 : index
    %178 = vector.load %arg8[%c28, %c0_142] : memref<36x2560xf32, #tpu.memory_space<vmem>>, vector<4x256xf32>
    tpu.vector_store %arg8[%c28, %c0_142], %177 {strides = array<i32>} : memref<36x2560xf32, #tpu.memory_space<vmem>>, vector<4x256xf32>,
    %179 = vector.extract_strided_slice %176 {offsets = [4, 0], sizes = [4, 256], strides = [1, 1]} : vector<40x256xf32> to vector<4x256xf32>
    %c28_143 = arith.constant 28 : index
    %c256_144 = arith.constant 256 : index
    %180 = vector.load %arg8[%c28_143, %c256_144] : memref<36x2560xf32, #tpu.memory_space<vmem>>, vector<4x256xf32>
    tpu.vector_store %arg8[%c28_143, %c256_144], %179 {strides = array<i32>} : memref<36x2560xf32, #tpu.memory_space<vmem>>, vector<4x256xf32>,
    %181 = vector.extract_strided_slice %176 {offsets = [8, 0], sizes = [4, 256], strides = [1, 1]} : vector<40x256xf32> to vector<4x256xf32>
    %c28_145 = arith.constant 28 : index
    %c512_146 = arith.constant 512 : index
    %182 = vector.load %arg8[%c28_145, %c512_146] : memref<36x2560xf32, #tpu.memory_space<vmem>>, vector<4x256xf32>
    tpu.vector_store %arg8[%c28_145, %c512_146], %181 {strides = array<i32>} : memref<36x2560xf32, #tpu.memory_space<vmem>>, vector<4x256xf32>,
    %183 = vector.extract_strided_slice %176 {offsets = [12, 0], sizes = [4, 256], strides = [1, 1]} : vector<40x256xf32> to vector<4x256xf32>
    %c28_147 = arith.constant 28 : index
    %c768_148 = arith.constant 768 : index
    %184 = vector.load %arg8[%c28_147, %c768_148] : memref<36x2560xf32, #tpu.memory_space<vmem>>, vector<4x256xf32>
    tpu.vector_store %arg8[%c28_147, %c768_148], %183 {strides = array<i32>} : memref<36x2560xf32, #tpu.memory_space<vmem>>, vector<4x256xf32>,
    %185 = vector.extract_strided_slice %176 {offsets = [16, 0], sizes = [4, 256], strides = [1, 1]} : vector<40x256xf32> to vector<4x256xf32>
    %c28_149 = arith.constant 28 : index
    %c1024_150 = arith.constant 1024 : index
    %186 = vector.load %arg8[%c28_149, %c1024_150] : memref<36x2560xf32, #tpu.memory_space<vmem>>, vector<4x256xf32>
    tpu.vector_store %arg8[%c28_149, %c1024_150], %185 {strides = array<i32>} : memref<36x2560xf32, #tpu.memory_space<vmem>>, vector<4x256xf32>,
    %187 = vector.extract_strided_slice %176 {offsets = [20, 0], sizes = [4, 256], strides = [1, 1]} : vector<40x256xf32> to vector<4x256xf32>
    %c28_151 = arith.constant 28 : index
    %c1280_152 = arith.constant 1280 : index
    %188 = vector.load %arg8[%c28_151, %c1280_152] : memref<36x2560xf32, #tpu.memory_space<vmem>>, vector<4x256xf32>
    tpu.vector_store %arg8[%c28_151, %c1280_152], %187 {strides = array<i32>} : memref<36x2560xf32, #tpu.memory_space<vmem>>, vector<4x256xf32>,
    %189 = vector.extract_strided_slice %176 {offsets = [24, 0], sizes = [4, 256], strides = [1, 1]} : vector<40x256xf32> to vector<4x256xf32>
    %c28_153 = arith.constant 28 : index
    %c1536_154 = arith.constant 1536 : index
    %190 = vector.load %arg8[%c28_153, %c1536_154] : memref<36x2560xf32, #tpu.memory_space<vmem>>, vector<4x256xf32>
    tpu.vector_store %arg8[%c28_153, %c1536_154], %189 {strides = array<i32>} : memref<36x2560xf32, #tpu.memory_space<vmem>>, vector<4x256xf32>,
    %191 = vector.extract_strided_slice %176 {offsets = [28, 0], sizes = [4, 256], strides = [1, 1]} : vector<40x256xf32> to vector<4x256xf32>
    %c28_155 = arith.constant 28 : index
    %c1792_156 = arith.constant 1792 : index
    %192 = vector.load %arg8[%c28_155, %c1792_156] : memref<36x2560xf32, #tpu.memory_space<vmem>>, vector<4x256xf32>
    tpu.vector_store %arg8[%c28_155, %c1792_156], %191 {strides = array<i32>} : memref<36x2560xf32, #tpu.memory_space<vmem>>, vector<4x256xf32>,
    %193 = vector.extract_strided_slice %176 {offsets = [32, 0], sizes = [4, 256], strides = [1, 1]} : vector<40x256xf32> to vector<4x256xf32>
    %c28_157 = arith.constant 28 : index
    %c2048_158 = arith.constant 2048 : index
    %194 = vector.load %arg8[%c28_157, %c2048_158] : memref<36x2560xf32, #tpu.memory_space<vmem>>, vector<4x256xf32>
    tpu.vector_store %arg8[%c28_157, %c2048_158], %193 {strides = array<i32>} : memref<36x2560xf32, #tpu.memory_space<vmem>>, vector<4x256xf32>,
    %195 = vector.extract_strided_slice %176 {offsets = [36, 0], sizes = [4, 256], strides = [1, 1]} : vector<40x256xf32> to vector<4x256xf32>
    %c28_159 = arith.constant 28 : index
    %c2304_160 = arith.constant 2304 : index
    %196 = vector.load %arg8[%c28_159, %c2304_160] : memref<36x2560xf32, #tpu.memory_space<vmem>>, vector<4x256xf32>
    tpu.vector_store %arg8[%c28_159, %c2304_160], %195 {strides = array<i32>} : memref<36x2560xf32, #tpu.memory_space<vmem>>, vector<4x256xf32>,
    %c0_161 = arith.constant 0 : index
    %c0_162 = arith.constant 0 : index
    %197 = vector.load %arg2[%c0_161, %c0_162] : memref<40x256xf32, #tpu.memory_space<vmem>>, vector<40x256xf32>
    %c239_i32 = arith.constant 239 : i32
    %198 = tpu.dynamic_rotate %197 by %c239_i32 dim 1 : vector<40x256xf32>, i32 -> vector<40x256xf32>
    %199 = vector.extract_strided_slice %0 {offsets = [8, 0], sizes = [1, 256], strides = [1, 1]} : vector<9x256xf32> to vector<1x256xf32>
    %200 = vector.broadcast %199 : vector<1x256xf32> to vector<40x256xf32>
    %201 = arith.mulf %198, %200 : vector<40x256xf32>
    %202 = vector.extract_strided_slice %201 {offsets = [0, 0], sizes = [4, 256], strides = [1, 1]} : vector<40x256xf32> to vector<4x256xf32>
    %c32 = arith.constant 32 : index
    %c0_163 = arith.constant 0 : index
    %203 = vector.load %arg8[%c32, %c0_163] : memref<36x2560xf32, #tpu.memory_space<vmem>>, vector<4x256xf32>
    tpu.vector_store %arg8[%c32, %c0_163], %202 {strides = array<i32>} : memref<36x2560xf32, #tpu.memory_space<vmem>>, vector<4x256xf32>,
    %204 = vector.extract_strided_slice %201 {offsets = [4, 0], sizes = [4, 256], strides = [1, 1]} : vector<40x256xf32> to vector<4x256xf32>
    %c32_164 = arith.constant 32 : index
    %c256_165 = arith.constant 256 : index
    %205 = vector.load %arg8[%c32_164, %c256_165] : memref<36x2560xf32, #tpu.memory_space<vmem>>, vector<4x256xf32>
    tpu.vector_store %arg8[%c32_164, %c256_165], %204 {strides = array<i32>} : memref<36x2560xf32, #tpu.memory_space<vmem>>, vector<4x256xf32>,
    %206 = vector.extract_strided_slice %201 {offsets = [8, 0], sizes = [4, 256], strides = [1, 1]} : vector<40x256xf32> to vector<4x256xf32>
    %c32_166 = arith.constant 32 : index
    %c512_167 = arith.constant 512 : index
    %207 = vector.load %arg8[%c32_166, %c512_167] : memref<36x2560xf32, #tpu.memory_space<vmem>>, vector<4x256xf32>
    tpu.vector_store %arg8[%c32_166, %c512_167], %206 {strides = array<i32>} : memref<36x2560xf32, #tpu.memory_space<vmem>>, vector<4x256xf32>,
    %208 = vector.extract_strided_slice %201 {offsets = [12, 0], sizes = [4, 256], strides = [1, 1]} : vector<40x256xf32> to vector<4x256xf32>
    %c32_168 = arith.constant 32 : index
    %c768_169 = arith.constant 768 : index
    %209 = vector.load %arg8[%c32_168, %c768_169] : memref<36x2560xf32, #tpu.memory_space<vmem>>, vector<4x256xf32>
    tpu.vector_store %arg8[%c32_168, %c768_169], %208 {strides = array<i32>} : memref<36x2560xf32, #tpu.memory_space<vmem>>, vector<4x256xf32>,
    %210 = vector.extract_strided_slice %201 {offsets = [16, 0], sizes = [4, 256], strides = [1, 1]} : vector<40x256xf32> to vector<4x256xf32>
    %c32_170 = arith.constant 32 : index
    %c1024_171 = arith.constant 1024 : index
    %211 = vector.load %arg8[%c32_170, %c1024_171] : memref<36x2560xf32, #tpu.memory_space<vmem>>, vector<4x256xf32>
    tpu.vector_store %arg8[%c32_170, %c1024_171], %210 {strides = array<i32>} : memref<36x2560xf32, #tpu.memory_space<vmem>>, vector<4x256xf32>,
    %212 = vector.extract_strided_slice %201 {offsets = [20, 0], sizes = [4, 256], strides = [1, 1]} : vector<40x256xf32> to vector<4x256xf32>
    %c32_172 = arith.constant 32 : index
    %c1280_173 = arith.constant 1280 : index
    %213 = vector.load %arg8[%c32_172, %c1280_173] : memref<36x2560xf32, #tpu.memory_space<vmem>>, vector<4x256xf32>
    tpu.vector_store %arg8[%c32_172, %c1280_173], %212 {strides = array<i32>} : memref<36x2560xf32, #tpu.memory_space<vmem>>, vector<4x256xf32>,
    %214 = vector.extract_strided_slice %201 {offsets = [24, 0], sizes = [4, 256], strides = [1, 1]} : vector<40x256xf32> to vector<4x256xf32>
    %c32_174 = arith.constant 32 : index
    %c1536_175 = arith.constant 1536 : index
    %215 = vector.load %arg8[%c32_174, %c1536_175] : memref<36x2560xf32, #tpu.memory_space<vmem>>, vector<4x256xf32>
    tpu.vector_store %arg8[%c32_174, %c1536_175], %214 {strides = array<i32>} : memref<36x2560xf32, #tpu.memory_space<vmem>>, vector<4x256xf32>,
    %216 = vector.extract_strided_slice %201 {offsets = [28, 0], sizes = [4, 256], strides = [1, 1]} : vector<40x256xf32> to vector<4x256xf32>
    %c32_176 = arith.constant 32 : index
    %c1792_177 = arith.constant 1792 : index
    %217 = vector.load %arg8[%c32_176, %c1792_177] : memref<36x2560xf32, #tpu.memory_space<vmem>>, vector<4x256xf32>
    tpu.vector_store %arg8[%c32_176, %c1792_177], %216 {strides = array<i32>} : memref<36x2560xf32, #tpu.memory_space<vmem>>, vector<4x256xf32>,
    %218 = vector.extract_strided_slice %201 {offsets = [32, 0], sizes = [4, 256], strides = [1, 1]} : vector<40x256xf32> to vector<4x256xf32>
    %c32_178 = arith.constant 32 : index
    %c2048_179 = arith.constant 2048 : index
    %219 = vector.load %arg8[%c32_178, %c2048_179] : memref<36x2560xf32, #tpu.memory_space<vmem>>, vector<4x256xf32>
    tpu.vector_store %arg8[%c32_178, %c2048_179], %218 {strides = array<i32>} : memref<36x2560xf32, #tpu.memory_space<vmem>>, vector<4x256xf32>,
    %220 = vector.extract_strided_slice %201 {offsets = [36, 0], sizes = [4, 256], strides = [1, 1]} : vector<40x256xf32> to vector<4x256xf32>
    %c32_180 = arith.constant 32 : index
    %c2304_181 = arith.constant 2304 : index
    %221 = vector.load %arg8[%c32_180, %c2304_181] : memref<36x2560xf32, #tpu.memory_space<vmem>>, vector<4x256xf32>
    tpu.vector_store %arg8[%c32_180, %c2304_181], %220 {strides = array<i32>} : memref<36x2560xf32, #tpu.memory_space<vmem>>, vector<4x256xf32>,
    %c0_182 = arith.constant 0 : index
    %c0_183 = arith.constant 0 : index
    %222 = vector.load %arg3[%c0_182, %c0_183] : memref<8x36xf32, #tpu.memory_space<vmem>>, vector<8x36xf32>
    %c0_184 = arith.constant 0 : index
    %c0_185 = arith.constant 0 : index
    %223 = vector.load %arg8[%c0_184, %c0_185] : memref<36x2560xf32, #tpu.memory_space<vmem>>, vector<36x2560xf32>
    %cst = arith.constant dense<0.000000e+00> : vector<8x2560xf32>
    %224 = tpu.matmul %222, %223, %cst {dimension_numbers = #tpu.dot_dimension_numbers<[1], [0], [0], [1], [0, 0, 1, 1], [], []>} : vector<8x36xf32>, vector<36x2560xf32>, vector<8x2560xf32> -> vector<8x2560xf32>
    %c0_186 = arith.constant 0 : index
    %c0_187 = arith.constant 0 : index
    %225 = vector.load %arg5[%c0_186, %c0_187] : memref<8x1xf32, #tpu.memory_space<vmem>>, vector<8x1xf32>
    %c0_188 = arith.constant 0 : index
    %c0_189 = arith.constant 0 : index
    %226 = vector.load %arg6[%c0_188, %c0_189] : memref<8x1xf32, #tpu.memory_space<vmem>>, vector<8x1xf32>
    %c10_i32 = arith.constant 10 : i32
    %227 = arith.muli %arg0, %c10_i32 : i32
    %c0_i32 = arith.constant 0 : i32
    %228 = arith.addi %227, %c0_i32 : i32
    %229 = arith.index_cast %228 : i32 to index
    %230 = memref.load %arg1[%229] : memref<20xf32, #tpu.memory_space<smem>>
    %231 = vector.extract_strided_slice %224 {offsets = [0, 0], sizes = [8, 256], strides = [1, 1]} : vector<8x2560xf32> to vector<8x256xf32>
    %232 = vector.broadcast %225 : vector<8x1xf32> to vector<8x256xf32>
    %233 = arith.mulf %231, %232 : vector<8x256xf32>
    %234 = vector.broadcast %226 : vector<8x1xf32> to vector<8x256xf32>
    %235 = arith.addf %233, %234 : vector<8x256xf32>
    %236 = vector.broadcast %230 : f32 to vector<8x256xf32>
    %237 = arith.mulf %235, %236 : vector<8x256xf32>
    %c0_190 = arith.constant 0 : index
    %c0_191 = arith.constant 0 : index
    %238 = vector.load %arg7[%c0_190, %c0_191] : memref<80x256xf32, #tpu.memory_space<vmem>>, vector<8x256xf32>
    tpu.vector_store %arg7[%c0_190, %c0_191], %237 {strides = array<i32>} : memref<80x256xf32, #tpu.memory_space<vmem>>, vector<8x256xf32>,
    %c1_i32_192 = arith.constant 1 : i32
    %239 = arith.addi %227, %c1_i32_192 : i32
    %240 = arith.index_cast %239 : i32 to index
    %241 = memref.load %arg1[%240] : memref<20xf32, #tpu.memory_space<smem>>
    %242 = vector.extract_strided_slice %224 {offsets = [0, 256], sizes = [8, 256], strides = [1, 1]} : vector<8x2560xf32> to vector<8x256xf32>
    %243 = vector.broadcast %225 : vector<8x1xf32> to vector<8x256xf32>
    %244 = arith.mulf %242, %243 : vector<8x256xf32>
    %245 = vector.broadcast %226 : vector<8x1xf32> to vector<8x256xf32>
    %246 = arith.addf %244, %245 : vector<8x256xf32>
    %247 = vector.broadcast %241 : f32 to vector<8x256xf32>
    %248 = arith.mulf %246, %247 : vector<8x256xf32>
    %c8_193 = arith.constant 8 : index
    %c0_194 = arith.constant 0 : index
    %249 = vector.load %arg7[%c8_193, %c0_194] : memref<80x256xf32, #tpu.memory_space<vmem>>, vector<8x256xf32>
    tpu.vector_store %arg7[%c8_193, %c0_194], %248 {strides = array<i32>} : memref<80x256xf32, #tpu.memory_space<vmem>>, vector<8x256xf32>,
    %c2_i32 = arith.constant 2 : i32
    %250 = arith.addi %227, %c2_i32 : i32
    %251 = arith.index_cast %250 : i32 to index
    %252 = memref.load %arg1[%251] : memref<20xf32, #tpu.memory_space<smem>>
    %253 = vector.extract_strided_slice %224 {offsets = [0, 512], sizes = [8, 256], strides = [1, 1]} : vector<8x2560xf32> to vector<8x256xf32>
    %254 = vector.broadcast %225 : vector<8x1xf32> to vector<8x256xf32>
    %255 = arith.mulf %253, %254 : vector<8x256xf32>
    %256 = vector.broadcast %226 : vector<8x1xf32> to vector<8x256xf32>
    %257 = arith.addf %255, %256 : vector<8x256xf32>
    %258 = vector.broadcast %252 : f32 to vector<8x256xf32>
    %259 = arith.mulf %257, %258 : vector<8x256xf32>
    %c16_195 = arith.constant 16 : index
    %c0_196 = arith.constant 0 : index
    %260 = vector.load %arg7[%c16_195, %c0_196] : memref<80x256xf32, #tpu.memory_space<vmem>>, vector<8x256xf32>
    tpu.vector_store %arg7[%c16_195, %c0_196], %259 {strides = array<i32>} : memref<80x256xf32, #tpu.memory_space<vmem>>, vector<8x256xf32>,
    %c3_i32 = arith.constant 3 : i32
    %261 = arith.addi %227, %c3_i32 : i32
    %262 = arith.index_cast %261 : i32 to index
    %263 = memref.load %arg1[%262] : memref<20xf32, #tpu.memory_space<smem>>
    %264 = vector.extract_strided_slice %224 {offsets = [0, 768], sizes = [8, 256], strides = [1, 1]} : vector<8x2560xf32> to vector<8x256xf32>
    %265 = vector.broadcast %225 : vector<8x1xf32> to vector<8x256xf32>
    %266 = arith.mulf %264, %265 : vector<8x256xf32>
    %267 = vector.broadcast %226 : vector<8x1xf32> to vector<8x256xf32>
    %268 = arith.addf %266, %267 : vector<8x256xf32>
    %269 = vector.broadcast %263 : f32 to vector<8x256xf32>
    %270 = arith.mulf %268, %269 : vector<8x256xf32>
    %c24_197 = arith.constant 24 : index
    %c0_198 = arith.constant 0 : index
    %271 = vector.load %arg7[%c24_197, %c0_198] : memref<80x256xf32, #tpu.memory_space<vmem>>, vector<8x256xf32>
    tpu.vector_store %arg7[%c24_197, %c0_198], %270 {strides = array<i32>} : memref<80x256xf32, #tpu.memory_space<vmem>>, vector<8x256xf32>,
    %c4_i32 = arith.constant 4 : i32
    %272 = arith.addi %227, %c4_i32 : i32
    %273 = arith.index_cast %272 : i32 to index
    %274 = memref.load %arg1[%273] : memref<20xf32, #tpu.memory_space<smem>>
    %275 = vector.extract_strided_slice %224 {offsets = [0, 1024], sizes = [8, 256], strides = [1, 1]} : vector<8x2560xf32> to vector<8x256xf32>
    %276 = vector.broadcast %225 : vector<8x1xf32> to vector<8x256xf32>
    %277 = arith.mulf %275, %276 : vector<8x256xf32>
    %278 = vector.broadcast %226 : vector<8x1xf32> to vector<8x256xf32>
    %279 = arith.addf %277, %278 : vector<8x256xf32>
    %280 = vector.broadcast %274 : f32 to vector<8x256xf32>
    %281 = arith.mulf %279, %280 : vector<8x256xf32>
    %c32_199 = arith.constant 32 : index
    %c0_200 = arith.constant 0 : index
    %282 = vector.load %arg7[%c32_199, %c0_200] : memref<80x256xf32, #tpu.memory_space<vmem>>, vector<8x256xf32>
    tpu.vector_store %arg7[%c32_199, %c0_200], %281 {strides = array<i32>} : memref<80x256xf32, #tpu.memory_space<vmem>>, vector<8x256xf32>,
    %c5_i32 = arith.constant 5 : i32
    %283 = arith.addi %227, %c5_i32 : i32
    %284 = arith.index_cast %283 : i32 to index
    %285 = memref.load %arg1[%284] : memref<20xf32, #tpu.memory_space<smem>>
    %286 = vector.extract_strided_slice %224 {offsets = [0, 1280], sizes = [8, 256], strides = [1, 1]} : vector<8x2560xf32> to vector<8x256xf32>
    %287 = vector.broadcast %225 : vector<8x1xf32> to vector<8x256xf32>
    %288 = arith.mulf %286, %287 : vector<8x256xf32>
    %289 = vector.broadcast %226 : vector<8x1xf32> to vector<8x256xf32>
    %290 = arith.addf %288, %289 : vector<8x256xf32>
    %291 = vector.broadcast %285 : f32 to vector<8x256xf32>
    %292 = arith.mulf %290, %291 : vector<8x256xf32>
    %c40 = arith.constant 40 : index
    %c0_201 = arith.constant 0 : index
    %293 = vector.load %arg7[%c40, %c0_201] : memref<80x256xf32, #tpu.memory_space<vmem>>, vector<8x256xf32>
    tpu.vector_store %arg7[%c40, %c0_201], %292 {strides = array<i32>} : memref<80x256xf32, #tpu.memory_space<vmem>>, vector<8x256xf32>,
    %c6_i32 = arith.constant 6 : i32
    %294 = arith.addi %227, %c6_i32 : i32
    %295 = arith.index_cast %294 : i32 to index
    %296 = memref.load %arg1[%295] : memref<20xf32, #tpu.memory_space<smem>>
    %297 = vector.extract_strided_slice %224 {offsets = [0, 1536], sizes = [8, 256], strides = [1, 1]} : vector<8x2560xf32> to vector<8x256xf32>
    %298 = vector.broadcast %225 : vector<8x1xf32> to vector<8x256xf32>
    %299 = arith.mulf %297, %298 : vector<8x256xf32>
    %300 = vector.broadcast %226 : vector<8x1xf32> to vector<8x256xf32>
    %301 = arith.addf %299, %300 : vector<8x256xf32>
    %302 = vector.broadcast %296 : f32 to vector<8x256xf32>
    %303 = arith.mulf %301, %302 : vector<8x256xf32>
    %c48 = arith.constant 48 : index
    %c0_202 = arith.constant 0 : index
    %304 = vector.load %arg7[%c48, %c0_202] : memref<80x256xf32, #tpu.memory_space<vmem>>, vector<8x256xf32>
    tpu.vector_store %arg7[%c48, %c0_202], %303 {strides = array<i32>} : memref<80x256xf32, #tpu.memory_space<vmem>>, vector<8x256xf32>,
    %c7_i32 = arith.constant 7 : i32
    %305 = arith.addi %227, %c7_i32 : i32
    %306 = arith.index_cast %305 : i32 to index
    %307 = memref.load %arg1[%306] : memref<20xf32, #tpu.memory_space<smem>>
    %308 = vector.extract_strided_slice %224 {offsets = [0, 1792], sizes = [8, 256], strides = [1, 1]} : vector<8x2560xf32> to vector<8x256xf32>
    %309 = vector.broadcast %225 : vector<8x1xf32> to vector<8x256xf32>
    %310 = arith.mulf %308, %309 : vector<8x256xf32>
    %311 = vector.broadcast %226 : vector<8x1xf32> to vector<8x256xf32>
    %312 = arith.addf %310, %311 : vector<8x256xf32>
    %313 = vector.broadcast %307 : f32 to vector<8x256xf32>
    %314 = arith.mulf %312, %313 : vector<8x256xf32>
    %c56 = arith.constant 56 : index
    %c0_203 = arith.constant 0 : index
    %315 = vector.load %arg7[%c56, %c0_203] : memref<80x256xf32, #tpu.memory_space<vmem>>, vector<8x256xf32>
    tpu.vector_store %arg7[%c56, %c0_203], %314 {strides = array<i32>} : memref<80x256xf32, #tpu.memory_space<vmem>>, vector<8x256xf32>,
    %c8_i32 = arith.constant 8 : i32
    %316 = arith.addi %227, %c8_i32 : i32
    %317 = arith.index_cast %316 : i32 to index
    %318 = memref.load %arg1[%317] : memref<20xf32, #tpu.memory_space<smem>>
    %319 = vector.extract_strided_slice %224 {offsets = [0, 2048], sizes = [8, 256], strides = [1, 1]} : vector<8x2560xf32> to vector<8x256xf32>
    %320 = vector.broadcast %225 : vector<8x1xf32> to vector<8x256xf32>
    %321 = arith.mulf %319, %320 : vector<8x256xf32>
    %322 = vector.broadcast %226 : vector<8x1xf32> to vector<8x256xf32>
    %323 = arith.addf %321, %322 : vector<8x256xf32>
    %324 = vector.broadcast %318 : f32 to vector<8x256xf32>
    %325 = arith.mulf %323, %324 : vector<8x256xf32>
    %c64 = arith.constant 64 : index
    %c0_204 = arith.constant 0 : index
    %326 = vector.load %arg7[%c64, %c0_204] : memref<80x256xf32, #tpu.memory_space<vmem>>, vector<8x256xf32>
    tpu.vector_store %arg7[%c64, %c0_204], %325 {strides = array<i32>} : memref<80x256xf32, #tpu.memory_space<vmem>>, vector<8x256xf32>,
    %c9_i32 = arith.constant 9 : i32
    %327 = arith.addi %227, %c9_i32 : i32
    %328 = arith.index_cast %327 : i32 to index
    %329 = memref.load %arg1[%328] : memref<20xf32, #tpu.memory_space<smem>>
    %330 = vector.extract_strided_slice %224 {offsets = [0, 2304], sizes = [8, 256], strides = [1, 1]} : vector<8x2560xf32> to vector<8x256xf32>
    %331 = vector.broadcast %225 : vector<8x1xf32> to vector<8x256xf32>
    %332 = arith.mulf %330, %331 : vector<8x256xf32>
    %333 = vector.broadcast %226 : vector<8x1xf32> to vector<8x256xf32>
    %334 = arith.addf %332, %333 : vector<8x256xf32>
    %335 = vector.broadcast %329 : f32 to vector<8x256xf32>
    %336 = arith.mulf %334, %335 : vector<8x256xf32>
    %c72 = arith.constant 72 : index
    %c0_205 = arith.constant 0 : index
    %337 = vector.load %arg7[%c72, %c0_205] : memref<80x256xf32, #tpu.memory_space<vmem>>, vector<8x256xf32>
    tpu.vector_store %arg7[%c72, %c0_205], %336 {strides = array<i32>} : memref<80x256xf32, #tpu.memory_space<vmem>>, vector<8x256xf32>,
    return
  }
  func.func @transform_0(%arg0: i32, %arg1: memref<20xf32, #tpu.memory_space<smem>>) -> (i32, i32) {
    %c0_i32 = arith.constant 0 : i32
    %c0_i32_0 = arith.constant 0 : i32
    return %arg0, %c0_i32 : i32, i32
  }
  func.func @transform_1(%arg0: i32, %arg1: memref<20xf32, #tpu.memory_space<smem>>) -> (i32, i32) {
    %c0_i32 = arith.constant 0 : i32
    %c0_i32_0 = arith.constant 0 : i32
    %c0_i32_1 = arith.constant 0 : i32
    return %c0_i32, %c0_i32_0 : i32, i32
  }
  func.func @transform_2(%arg0: i32, %arg1: memref<20xf32, #tpu.memory_space<smem>>) -> (i32, i32) {
    %c0_i32 = arith.constant 0 : i32
    %c0_i32_0 = arith.constant 0 : i32
    %c0_i32_1 = arith.constant 0 : i32
    return %c0_i32, %c0_i32_0 : i32, i32
  }
  func.func @transform_3(%arg0: i32, %arg1: memref<20xf32, #tpu.memory_space<smem>>) -> (i32, i32) {
    %c0_i32 = arith.constant 0 : i32
    %c0_i32_0 = arith.constant 0 : i32
    %c0_i32_1 = arith.constant 0 : i32
    return %c0_i32, %c0_i32_0 : i32, i32
  }
  func.func @transform_4(%arg0: i32, %arg1: memref<20xf32, #tpu.memory_space<smem>>) -> (i32, i32) {
    %c0_i32 = arith.constant 0 : i32
    %c0_i32_0 = arith.constant 0 : i32
    %c0_i32_1 = arith.constant 0 : i32
    return %c0_i32, %c0_i32_0 : i32, i32
  }
  func.func @transform_5(%arg0: i32, %arg1: memref<20xf32, #tpu.memory_space<smem>>) -> (i32, i32) {
    %c0_i32 = arith.constant 0 : i32
    %c0_i32_0 = arith.constant 0 : i32
    return %arg0, %c0_i32 : i32, i32
  }
}

</mosaic_0001>

<llo_original>
// kernel: tile.9
$region0: #{tile.9}
  %s0 = inlined_call_operand.vmem [shape: f32[2,10], index: 0, kind: input, shape index: {}]
  %s1 = inlined_call_operand.vmem [shape: f32[20], index: 1, kind: output, shape index: {}]
  $region1: #{tile.9} parent=0
    #allocation0 [shape = 'u8[4096]{0}', space=vmem, size = 0x1000, scoped, tag = 'scoped mem for output reshape']
    #allocation1 [shape = 'u8[4096]{0}', space=vmem, size = 0x1000, scoped, tag = 'scoped mem for input reshape']
    %s3 = ssub.s32 4, 1
    %v4 = vld [vmem:[%s0] sm:%s3]
    %5 = vst [vmem:[#allocation1] sm:%s3] %v4
    %v6 = vld [vmem:[#allocation1] sm:$0x1]
    %vm7 = vcmask 80896
    %8 = vst.msk [vmem:[#allocation0] sm:$0x1] %vm7, %v6
    %s9 = scalar_lea.vmem [#allocation1], 1
    %v10 = vld [vmem:[%s9] sm:$0x1]
    %11 = vrot.lane.b32.xlu0 %v10, 10
    %v12 = vpop.permute.xlu0 %11
    %vm13 = vcmask 162896
    %14 = vst.msk [vmem:[#allocation0] sm:$0x1] %vm13, %v12
    %s16 = ssub.s32 2, 1
    %v17 = vld [vmem:[#allocation0] sm:%s16]
    %s19 = ssub.s32 2, 1
    %20 = vst [vmem:[%s1] sm:%s19] %v17

// kernel: tile.8
$region0: #{tile.8}
  #allocation2 [shape = 's32[1]{0}', space=sflag, size = 0x4, scoped, tag = 'scoped memory for tile.8']
  %s0 = inlined_call_operand.hbm [shape: f32[10], index: 0, kind: input, shape index: {}]
  %s1 = inlined_call_operand.vmem [shape: f32[2,10], index: 1, kind: output, shape index: {}]
  $region1: #{tile.8} parent=0
    #allocation0 [shape = 'u8[512]{0}', space=vmem, size = 0x400, scoped, tag = 'operand span for operand 0']
    #allocation1 [shape = 's32[1]{0}', space=sflag, size = 0x4, scoped, tag = 'scoped memory for tile.8']
    %2 = vsyncpa [#allocation1], 0
    // Predicated region
    $region2: #{tile.8} parent=1 // pred_check
      _
    $region3: #{tile.8} parent=1 // pred_check_branch
      %4 = sbr.rel (0) target = $region5
    $region4: #{tile.8} parent=1 // pred_region
      %6 = vsyncadd [#allocation1], 0
      %s8 = sshll.u32 %s0, 4
      %s9 = int_to_ptr.hbm [resolvable:$true] %s8
      %s10 = sshll.u32 [#allocation0], 4
      %s11 = int_to_ptr.vmem [resolvable:$true] %s10
      %13 = dma.hbm_to_vmem [thread:$0]  %s9, 16, %s11, [#allocation1]
    $region5: #{tile.8} parent=1 // pred_fallthru
      _
    // Predicated region
    $region6: #{tile.8} parent=1 // pred_check
      _
    $region7: #{tile.8} parent=1 // pred_check_branch
      %15 = sbr.rel (0) target = $region9
    $region8: #{tile.8} parent=1 // pred_region
      %17 = dma.done [#allocation1], 16
    $region9: #{tile.8} parent=1 // pred_fallthru
      _
    %v18 = vld [vmem:[#allocation0] ss:$0 sm:$0xff]
    %19 = vst [vmem:[%s1] sm:$0x3] %v18
    %20 = vsyncpa [#allocation1], 1

// kernel: tebn_layer_forward.1
$region0: #{tebn_layer_forward.1}
  #allocation0 [shape = 'u32[]', space=smem, size = 0x4, offset = 0x4, fixed_abs, tag = 'smem constant byte address 0x4 - core index']
  #allocation1 [shape = 'u32[72,128]{1,0:T(1,128)}', space=vmem, size = 0x9000, scoped, tag = 'internal scratch']
  #allocation2 [shape = 'f32[36,2560]{1,0:T(8,128)}', space=vmem, size = 0x64000, scoped, tag = 'scratch operand']
  #allocation3 [shape = 's32[1]{0}', space=sflag, size = 0x4, scoped, tag = 'scoped memory for tebn_layer_forward.1']
  #allocation4 [shape = 'u8[512]{0}', space=smem, size = 0x200, scoped, tag = 'prefetched SMEM operand 0']
  %s0 = inlined_call_operand.vmem [shape: f32[20], index: 0, kind: input, shape index: {}]
  %s1 = inlined_call_operand.vmem [shape: f32[80,256], index: 1, kind: input, shape index: {}]
  %s2 = inlined_call_operand.vmem [shape: f32[8,36], index: 2, kind: input, shape index: {}]
  %s3 = inlined_call_operand.hbm [shape: f32[9,256], index: 3, kind: input, shape index: {}]
  %s4 = inlined_call_operand.vmem [shape: f32[8,1], index: 4, kind: input, shape index: {}]
  %s5 = inlined_call_operand.vmem [shape: f32[8,1], index: 5, kind: input, shape index: {}]
  %s6 = inlined_call_operand.vmem [shape: f32[160,256], index: 6, kind: output, shape index: {}]
  %s7 = sld [smem:[#allocation0]]
  $region57: #{tebn_layer_forward.1} parent=0
    _
  %s9 = ssub.s32 1, %s7
  %s10 = scalar_select 0, %s9, %s7
  %s12 = sshll.u32 %s0, 4
  %s13 = int_to_ptr.vmem [resolvable:$true] %s12
  %15 = dma.vmem_to_smem %s13, 16, [#allocation4], [#allocation3]
  %17 = dma.done [#allocation3], 16
  %18 = sfence
  $region1: #{tebn_layer_forward.1} parent=0
    #allocation5 [shape = 'u8[16384]{0}', space=vmem, size = 0x4000, scoped, tag = 'input window, operand 3, single buffered']
    #allocation6 [shape = 's32[2]{0}', space=sflag, size = 0x8, scoped, tag = 'scoped memory for tebn_layer_forward.1']
    %19 = vsyncpa [#allocation6], 0
    loop: start=0, step=1, limit=4
    $region2: #{tebn_layer_forward.1} parent=1 // loop_pre_header
      _
    $region3: #{tebn_layer_forward.1} parent=1 // loop_header
      %s21 = sphi 0, %s25
      %p22 = scmp.ge.s32.totalorder %s21, 4
      %s31 = sphi 0, %s33
      %s34 = sphi 0, %s31
      %s35 = sphi 0, %s34
      %s51 = sphi 0, %s35
      %s55 = sphi 0, %s55
      %s57 = sphi 0, %s55
      %s58 = sphi 0, %s57
      %s72 = sphi 0, %s58
      %s76 = sphi 0, %s76
      %s78 = sphi 0, %s76
      %s79 = sphi 0, %s78
      %s93 = sphi 0, %s79
      %s97 = sphi 0, %s97
      %s99 = sphi 0, %s97
      %s100 = sphi 0, %s99
      %s114 = sphi 0, %s100
      %s118 = sphi 0, %s118
      %s120 = sphi 0, %s118
      %s121 = sphi 0, %s120
      %s135 = sphi 0, %s121
      %s141 = sphi 0, %s143
      %s144 = sphi 0, %s141
      %s145 = sphi 0, %s144
      %s161 = sphi 0, %s145
    $region4: #{tebn_layer_forward.1} parent=1 // loop_header_branch
      %24 = sbr.rel (%p22) target = $region8
    $region5: #{tebn_layer_forward.1} parent=1 // loop_body
      %s26 = ssub.s32 %s21, 1
      %s27 = ssub.s32 %s21, 2
      %s28 = sadd.s32 %s21, 1
      %s29 = ssub.s32 %s21, %s28
      %p30 = scmp.eq.s32.totalorder %s29, 0
      %s32 = sadd.s32 %s31, 1
      %s33 = scalar_select %p30, %s31, %s32
      %p36 = pneg %p30
      %p37 = scmp.eq.s32.totalorder %s21, 1
      %p38 = por %p36, %p37
      %p39 = scmp.ne.s32.totalorder %s31, %s34
      %p40 = scmp.eq.s32.totalorder %s21, 0
      %p41 = por %p39, %p40
      %p42 = scmp.ne.s32.totalorder %s31, %s34
      %p43 = scmp.eq.s32.totalorder %s26, 1
      %p44 = por %p42, %p43
      %p45 = scmp.ne.s32.totalorder %s34, %s35
      %p46 = scmp.eq.s32.totalorder %s26, 0
      %p47 = por %p45, %p46
      %p48 = scmp.ne.s32.totalorder %s34, %s35
      %p49 = scmp.eq.s32.totalorder %s27, 1
      %p50 = por %p48, %p49
      %p52 = scmp.ne.s32.totalorder %s35, %s51
      %p53 = scmp.eq.s32.totalorder %s27, 0
      %p54 = por %p52, %p53
      %s56 = sadd.s32 %s55, 1
      %p59 = scmp.eq.s32.totalorder %s21, 1
      %p60 = scmp.ne.s32.totalorder %s55, %s57
      %p61 = scmp.eq.s32.totalorder %s21, 0
      %p62 = por %p60, %p61
      %p63 = scmp.ne.s32.totalorder %s55, %s57
      %p64 = scmp.eq.s32.totalorder %s26, 1
      %p65 = por %p63, %p64
      %p66 = scmp.ne.s32.totalorder %s57, %s58
      %p67 = scmp.eq.s32.totalorder %s26, 0
      %p68 = por %p66, %p67
      %p69 = scmp.ne.s32.totalorder %s57, %s58
      %p70 = scmp.eq.s32.totalorder %s27, 1
      %p71 = por %p69, %p70
      %p73 = scmp.ne.s32.totalorder %s58, %s72
      %p74 = scmp.eq.s32.totalorder %s27, 0
      %p75 = por %p73, %p74
      %s77 = sadd.s32 %s76, 1
      %p80 = scmp.eq.s32.totalorder %s21, 1
      %p81 = scmp.ne.s32.totalorder %s76, %s78
      %p82 = scmp.eq.s32.totalorder %s21, 0
      %p83 = por %p81, %p82
      %p84 = scmp.ne.s32.totalorder %s76, %s78
      %p85 = scmp.eq.s32.totalorder %s26, 1
      %p86 = por %p84, %p85
      %p87 = scmp.ne.s32.totalorder %s78, %s79
      %p88 = scmp.eq.s32.totalorder %s26, 0
      %p89 = por %p87, %p88
      %p90 = scmp.ne.s32.totalorder %s78, %s79
      %p91 = scmp.eq.s32.totalorder %s27, 1
      %p92 = por %p90, %p91
      %p94 = scmp.ne.s32.totalorder %s79, %s93
      %p95 = scmp.eq.s32.totalorder %s27, 0
      %p96 = por %p94, %p95
      %s98 = sadd.s32 %s97, 1
      %p101 = scmp.eq.s32.totalorder %s21, 1
      %p102 = scmp.ne.s32.totalorder %s97, %s99
      %p103 = scmp.eq.s32.totalorder %s21, 0
      %p104 = por %p102, %p103
      %p105 = scmp.ne.s32.totalorder %s97, %s99
      %p106 = scmp.eq.s32.totalorder %s26, 1
      %p107 = por %p105, %p106
      %p108 = scmp.ne.s32.totalorder %s99, %s100
      %p109 = scmp.eq.s32.totalorder %s26, 0
      %p110 = por %p108, %p109
      %p111 = scmp.ne.s32.totalorder %s99, %s100
      %p112 = scmp.eq.s32.totalorder %s27, 1
      %p113 = por %p111, %p112
      %p115 = scmp.ne.s32.totalorder %s100, %s114
      %p116 = scmp.eq.s32.totalorder %s27, 0
      %p117 = por %p115, %p116
      %s119 = sadd.s32 %s118, 1
      %p122 = scmp.eq.s32.totalorder %s21, 1
      %p123 = scmp.ne.s32.totalorder %s118, %s120
      %p124 = scmp.eq.s32.totalorder %s21, 0
      %p125 = por %p123, %p124
      %p126 = scmp.ne.s32.totalorder %s118, %s120
      %p127 = scmp.eq.s32.totalorder %s26, 1
      %p128 = por %p126, %p127
      %p129 = scmp.ne.s32.totalorder %s120, %s121
      %p130 = scmp.eq.s32.totalorder %s26, 0
      %p131 = por %p129, %p130
      %p132 = scmp.ne.s32.totalorder %s120, %s121
      %p133 = scmp.eq.s32.totalorder %s27, 1
      %p134 = por %p132, %p133
      %p136 = scmp.ne.s32.totalorder %s121, %s135
      %p137 = scmp.eq.s32.totalorder %s27, 0
      %p138 = por %p136, %p137
      %s139 = ssub.s32 %s21, %s28
      %p140 = scmp.eq.s32.totalorder %s139, 0
      %s142 = sadd.s32 %s141, 1
      %s143 = scalar_select %p140, %s141, %s142
      %p146 = pneg %p140
      %p147 = scmp.eq.s32.totalorder %s21, 1
      %p148 = por %p146, %p147
      %p149 = scmp.ne.s32.totalorder %s141, %s144
      %p150 = scmp.eq.s32.totalorder %s21, 0
      %p151 = por %p149, %p150
      %p152 = scmp.ne.s32.totalorder %s141, %s144
      %p153 = scmp.eq.s32.totalorder %s26, 1
      %p154 = por %p152, %p153
      %p155 = scmp.ne.s32.totalorder %s144, %s145
      %p156 = scmp.eq.s32.totalorder %s26, 0
      %p157 = por %p155, %p156
      %p158 = scmp.ne.s32.totalorder %s144, %s145
      %p159 = scmp.eq.s32.totalorder %s27, 1
      %p160 = por %p158, %p159
      %p162 = scmp.ne.s32.totalorder %s145, %s161
      %p163 = scmp.eq.s32.totalorder %s27, 0
      %p164 = por %p162, %p163
      %p165 = scmp.le.s32.totalorder 1, %s21
      %p166 = scmp.lt.s32.totalorder %s21, 3
      %p167 = pnand %p165, %p166
      %p168 = pneg %p167
      // Predicated region
      $region9: #{tebn_layer_forward.1} parent=5 // pred_check
        _
      $region10: #{tebn_layer_forward.1} parent=5 // pred_check_branch
        %170 = sbr.rel (%p167) target = $region12
      $region11: #{tebn_layer_forward.1} parent=5 // pred_region
        %s171 = ssub.s32 %s21, 1
        // Predicated region
        $region13: #{tebn_layer_forward.1} parent=11 // pred_check
          %p172 = pneg %p68
        $region14: #{tebn_layer_forward.1} parent=11 // pred_check_branch
          %174 = sbr.rel (%p172) target = $region16
        $region15: #{tebn_layer_forward.1} parent=11 // pred_region
          _
        $region16: #{tebn_layer_forward.1} parent=11 // pred_fallthru
          _
        // Predicated region
        $region17: #{tebn_layer_forward.1} parent=11 // pred_check
          %p175 = pneg %p89
        $region18: #{tebn_layer_forward.1} parent=11 // pred_check_branch
          %177 = sbr.rel (%p175) target = $region20
        $region19: #{tebn_layer_forward.1} parent=11 // pred_region
          %179 = vsyncadd [#allocation6], 0
          %s180 = sshll.u32 %s3, 4
          %s181 = int_to_ptr.hbm [resolvable:$true] %s180
          %s182 = sshll.u32 [#allocation5], 4
          %s183 = int_to_ptr.vmem [resolvable:$true] %s182
          %188 = dma.hbm_to_vmem [thread:$0]  %s181, 512, %s183, [#allocation6], 256, 256, 16
        $region20: #{tebn_layer_forward.1} parent=11 // pred_fallthru
          _
        // Predicated region
        $region21: #{tebn_layer_forward.1} parent=11 // pred_check
          %p189 = pneg %p110
        $region22: #{tebn_layer_forward.1} parent=11 // pred_check_branch
          %191 = sbr.rel (%p189) target = $region24
        $region23: #{tebn_layer_forward.1} parent=11 // pred_region
          _
        $region24: #{tebn_layer_forward.1} parent=11 // pred_fallthru
          _
        // Predicated region
        $region25: #{tebn_layer_forward.1} parent=11 // pred_check
          %p192 = pneg %p131
        $region26: #{tebn_layer_forward.1} parent=11 // pred_check_branch
          %194 = sbr.rel (%p192) target = $region28
        $region27: #{tebn_layer_forward.1} parent=11 // pred_region
          _
        $region28: #{tebn_layer_forward.1} parent=11 // pred_fallthru
          _
      $region12: #{tebn_layer_forward.1} parent=5 // pred_fallthru
        _
      %p195 = scmp.lt.s32.totalorder %s21, 2
      // Predicated region
      $region29: #{tebn_layer_forward.1} parent=5 // pred_check
        %p196 = pneg %p195
      $region30: #{tebn_layer_forward.1} parent=5 // pred_check_branch
        %198 = sbr.rel (%p196) target = $region32
      $region31: #{tebn_layer_forward.1} parent=5 // pred_region
        // Predicated region
        $region33: #{tebn_layer_forward.1} parent=31 // pred_check
          %p199 = pneg %p41
        $region34: #{tebn_layer_forward.1} parent=31 // pred_check_branch
          %201 = sbr.rel (%p199) target = $region36
        $region35: #{tebn_layer_forward.1} parent=31 // pred_region
          %s202 = smul.u32 5, %s21
          %p203 = scmp.lt.s32.totalorder %s202, 9
          %s204 = scalar_select %p203, %s202, 9
          %s205 = smul.addr %s204, 2
          %s206 = smul.addr %s205, 8
          %s207 = scalar_lea.vmem %s1, %s206
          %s208 = smul.u32 5, %s21
        $region36: #{tebn_layer_forward.1} parent=31 // pred_fallthru
          _
      $region32: #{tebn_layer_forward.1} parent=5 // pred_fallthru
        _
      %p209 = scmp.le.s32.totalorder 1, %s21
      %p210 = scmp.lt.s32.totalorder %s21, 3
      %p211 = pnand %p209, %p210
      %p212 = pneg %p211
      // Predicated region
      $region37: #{tebn_layer_forward.1} parent=5 // pred_check
        _
      $region38: #{tebn_layer_forward.1} parent=5 // pred_check_branch
        %214 = sbr.rel (%p211) target = $region40
      $region39: #{tebn_layer_forward.1} parent=5 // pred_region
        %s215 = ssub.s32 %s21, 1
        // Predicated region
        $region41: #{tebn_layer_forward.1} parent=39 // pred_check
          %p216 = pneg %p89
        $region42: #{tebn_layer_forward.1} parent=39 // pred_check_branch
          %218 = sbr.rel (%p216) target = $region44
        $region43: #{tebn_layer_forward.1} parent=39 // pred_region
          %220 = dma.done [#allocation6], 512
        $region44: #{tebn_layer_forward.1} parent=39 // pred_fallthru
          _
        %s221 = smul.u32 5, %s26
        %p222 = scmp.lt.s32.totalorder %s221, 9
        %s223 = scalar_select %p222, %s221, 9
        %s224 = smul.addr %s223, 2
        %s225 = smul.addr %s224, 8
        %s226 = scalar_lea.vmem %s1, %s225
        %p227 = pneg %p47
        %p228 = pneg %p44
        %p229 = pneg %p68
        %p230 = pneg %p65
        %p231 = pneg %p89
        %p232 = pneg %p86
        %p233 = pneg %p110
        %p234 = pneg %p107
        %p235 = pneg %p131
        %p236 = pneg %p128
        %p237 = pneg %p157
        %p238 = pneg %p154
        %s239 = smul.u32 10, %s26
        %p240 = scmp.lt.s32.totalorder %s239, 19
        %s241 = scalar_select %p240, %s239, 19
        %s242 = smul.addr %s241, 2
        %s243 = smul.addr %s242, 8
        %s244 = scalar_lea.vmem %s6, %s243
        %s245 = smul.u32 5, %s26
        %p246 = scmp.lt.s32.totalorder %s245, 9
        %s247 = scalar_select %p246, %s245, 9
        %s248 = smul.addr %s247, 2
        %s249 = smul.addr %s248, 8
        %s250 = scalar_lea.vmem %s1, %s249
        %s251 = smul.u32 5, %s26
        %s252 = smul.u32 10, %s26
        %p253 = scmp.lt.s32.totalorder %s252, 19
        %s254 = scalar_select %p253, %s252, 19
        %s255 = smul.addr %s254, 2
        %s256 = smul.addr %s255, 8
        %s257 = scalar_lea.vmem %s6, %s256
        %s258 = smul.u32 10, %s26
        %v259 = vld [vmem:[#allocation5] sm:$0xff]
        %v260 = vld [vmem:[#allocation5 + $0x8] sm:$0xff]
        %v261 = vld [vmem:[#allocation5 + $0x10] sm:$0x1]
        %v262 = vld [vmem:[#allocation5 + $0x18] sm:$0x1]
        %v263 = vld [vmem:[%s250] sm:$0xff]
        %v264 = vld [vmem:[%s250 + $0x8] sm:$0xff]
        %v265 = vld [vmem:[%s250 + $0x10] sm:$0xff]
        %v266 = vld [vmem:[%s250 + $0x18] sm:$0xff]
        %v267 = vld [vmem:[%s250 + $0x20] sm:$0xff]
        %v268 = vld [vmem:[%s250 + $0x28] sm:$0xff]
        %v269 = vld [vmem:[%s250 + $0x30] sm:$0xff]
        %v270 = vld [vmem:[%s250 + $0x38] sm:$0xff]
        %v271 = vld [vmem:[%s250 + $0x40] sm:$0xff]
        %v272 = vld [vmem:[%s250 + $0x48] sm:$0xff]
        %273 = vrot.lane.b32.xlu0 %v263, 17
        %v274 = vpop.permute.xlu0 %273
        %275 = vrot.lane.b32.xlu0 %v265, 17
        %v276 = vpop.permute.xlu0 %275
        %277 = vrot.lane.b32.xlu0 %v267, 17
        %v278 = vpop.permute.xlu0 %277
        %279 = vrot.lane.b32.xlu0 %v269, 17
        %v280 = vpop.permute.xlu0 %279
        %281 = vrot.lane.b32.xlu0 %v271, 17
        %v282 = vpop.permute.xlu0 %281
        %283 = vrot.lane.b32.xlu0 %v264, 17
        %v284 = vpop.permute.xlu0 %283
        %285 = vrot.lane.b32.xlu0 %v266, 17
        %v286 = vpop.permute.xlu0 %285
        %287 = vrot.lane.b32.xlu0 %v268, 17
        %v288 = vpop.permute.xlu0 %287
        %289 = vrot.lane.b32.xlu0 %v270, 17
        %v290 = vpop.permute.xlu0 %289
        %291 = vrot.lane.b32.xlu0 %v272, 17
        %v292 = vpop.permute.xlu0 %291
        %v293 = vlaneseq
        %v294 = vand.u32 %v293, 127
        %vm295 = vcmp.lt.s32.totalorder %v294, 17
        %v296 = vsel %vm295, %v274, %v284
        %v297 = vsel %vm295, %v276, %v286
        %v298 = vsel %vm295, %v278, %v288
        %v299 = vsel %vm295, %v280, %v290
        %v300 = vsel %vm295, %v282, %v292
        %v301 = vsel %vm295, %v284, %v274
        %v302 = vsel %vm295, %v286, %v276
        %v303 = vsel %vm295, %v288, %v278
        %v304 = vsel %vm295, %v290, %v280
        %v305 = vsel %vm295, %v292, %v282
        %v306 = vperm.slane %v259, 0
        %v307 = vperm.slane %v260, 0
        %v308 = vmul.f32 %v301, %v306
        %v309 = vmul.f32 %v296, %v307
        %v310 = vmul.f32 %v302, %v306
        %v311 = vmul.f32 %v297, %v307
        %v312 = vmul.f32 %v303, %v306
        %v313 = vmul.f32 %v298, %v307
        %v314 = vmul.f32 %v304, %v306
        %v315 = vmul.f32 %v299, %v307
        %v316 = vmul.f32 %v305, %v306
        %v317 = vmul.f32 %v300, %v307
        %318 = vst [vmem:[#allocation2] sm:$0xf] %v308
        %319 = vst [vmem:[#allocation2 + $0x8] sm:$0xf] %v309
        %v322 = vrot.slane %v308, 4
        %v323 = vrot.slane %v309, 4
        %326 = vst [vmem:[#allocation2 + $0x10] sm:$0xf] %v322
        %327 = vst [vmem:[#allocation2 + $0x18] sm:$0xf] %v323
        %328 = vst [vmem:[#allocation2 + $0x20] sm:$0xf] %v310
        %329 = vst [vmem:[#allocation2 + $0x28] sm:$0xf] %v311
        %v332 = vrot.slane %v310, 4
        %v333 = vrot.slane %v311, 4
        %336 = vst [vmem:[#allocation2 + $0x30] sm:$0xf] %v332
        %337 = vst [vmem:[#allocation2 + $0x38] sm:$0xf] %v333
        %338 = vst [vmem:[#allocation2 + $0x40] sm:$0xf] %v312
        %339 = vst [vmem:[#allocation2 + $0x48] sm:$0xf] %v313
        %v342 = vrot.slane %v312, 4
        %v343 = vrot.slane %v313, 4
        %346 = vst [vmem:[#allocation2 + $0x50] sm:$0xf] %v342
        %347 = vst [vmem:[#allocation2 + $0x58] sm:$0xf] %v343
        %348 = vst [vmem:[#allocation2 + $0x60] sm:$0xf] %v314
        %349 = vst [vmem:[#allocation2 + $0x68] sm:$0xf] %v315
        %v352 = vrot.slane %v314, 4
        %v353 = vrot.slane %v315, 4
        %356 = vst [vmem:[#allocation2 + $0x70] sm:$0xf] %v352
        %357 = vst [vmem:[#allocation2 + $0x78] sm:$0xf] %v353
        %358 = vst [vmem:[#allocation2 + $0x80] sm:$0xf] %v316
        %359 = vst [vmem:[#allocation2 + $0x88] sm:$0xf] %v317
        %v362 = vrot.slane %v316, 4
        %v363 = vrot.slane %v317, 4
        %366 = vst [vmem:[#allocation2 + $0x90] sm:$0xf] %v362
        %367 = vst [vmem:[#allocation2 + $0x98] sm:$0xf] %v363
        %v368 = vld [vmem:[%s250] sm:$0xff]
        %v369 = vld [vmem:[%s250 + $0x8] sm:$0xff]
        %v370 = vld [vmem:[%s250 + $0x10] sm:$0xff]
        %v371 = vld [vmem:[%s250 + $0x18] sm:$0xff]
        %v372 = vld [vmem:[%s250 + $0x20] sm:$0xff]
        %v373 = vld [vmem:[%s250 + $0x28] sm:$0xff]
        %v374 = vld [vmem:[%s250 + $0x30] sm:$0xff]
        %v375 = vld [vmem:[%s250 + $0x38] sm:$0xff]
        %v376 = vld [vmem:[%s250 + $0x40] sm:$0xff]
        %v377 = vld [vmem:[%s250 + $0x48] sm:$0xff]
        %378 = vrot.lane.b32.xlu0 %v368, 16
        %v379 = vpop.permute.xlu0 %378
        %380 = vrot.lane.b32.xlu0 %v370, 16
        %v381 = vpop.permute.xlu0 %380
        %382 = vrot.lane.b32.xlu0 %v372, 16
        %v383 = vpop.permute.xlu0 %382
        %384 = vrot.lane.b32.xlu0 %v374, 16
        %v385 = vpop.permute.xlu0 %384
        %386 = vrot.lane.b32.xlu0 %v376, 16
        %v387 = vpop.permute.xlu0 %386
        %388 = vrot.lane.b32.xlu0 %v369, 16
        %v389 = vpop.permute.xlu0 %388
        %390 = vrot.lane.b32.xlu0 %v371, 16
        %v391 = vpop.permute.xlu0 %390
        %392 = vrot.lane.b32.xlu0 %v373, 16
        %v393 = vpop.permute.xlu0 %392
        %394 = vrot.lane.b32.xlu0 %v375, 16
        %v395 = vpop.permute.xlu0 %394
        %396 = vrot.lane.b32.xlu0 %v377, 16
        %v397 = vpop.permute.xlu0 %396
        %vm398 = vcmp.lt.s32.totalorder %v294, 16
        %v399 = vsel %vm398, %v379, %v389
        %v400 = vsel %vm398, %v381, %v391
        %v401 = vsel %vm398, %v383, %v393
        %v402 = vsel %vm398, %v385, %v395
        %v403 = vsel %vm398, %v387, %v397
        %v404 = vsel %vm398, %v389, %v379
        %v405 = vsel %vm398, %v391, %v381
        %v406 = vsel %vm398, %v393, %v383
        %v407 = vsel %vm398, %v395, %v385
        %v408 = vsel %vm398, %v397, %v387
        %v409 = vperm.slane %v259, 1
        %v410 = vperm.slane %v260, 1
        %v411 = vmul.f32 %v404, %v409
        %v412 = vmul.f32 %v399, %v410
        %v413 = vmul.f32 %v405, %v409
        %v414 = vmul.f32 %v400, %v410
        %v415 = vmul.f32 %v406, %v409
        %v416 = vmul.f32 %v401, %v410
        %v417 = vmul.f32 %v407, %v409
        %v418 = vmul.f32 %v402, %v410
        %v419 = vmul.f32 %v408, %v409
        %v420 = vmul.f32 %v403, %v410
        %v423 = vrot.slane %v411, 4
        %v424 = vrot.slane %v412, 4
        %427 = vst [vmem:[#allocation2] sm:$0xf0] %v423
        %428 = vst [vmem:[#allocation2 + $0x8] sm:$0xf0] %v424
        %429 = vst [vmem:[#allocation2 + $0x10] sm:$0xf0] %v411
        %430 = vst [vmem:[#allocation2 + $0x18] sm:$0xf0] %v412
        %v433 = vrot.slane %v413, 4
        %v434 = vrot.slane %v414, 4
        %437 = vst [vmem:[#allocation2 + $0x20] sm:$0xf0] %v433
        %438 = vst [vmem:[#allocation2 + $0x28] sm:$0xf0] %v434
        %439 = vst [vmem:[#allocation2 + $0x30] sm:$0xf0] %v413
        %440 = vst [vmem:[#allocation2 + $0x38] sm:$0xf0] %v414
        %v443 = vrot.slane %v415, 4
        %v444 = vrot.slane %v416, 4
        %447 = vst [vmem:[#allocation2 + $0x40] sm:$0xf0] %v443
        %448 = vst [vmem:[#allocation2 + $0x48] sm:$0xf0] %v444
        %449 = vst [vmem:[#allocation2 + $0x50] sm:$0xf0] %v415
        %450 = vst [vmem:[#allocation2 + $0x58] sm:$0xf0] %v416
        %v453 = vrot.slane %v417, 4
        %v454 = vrot.slane %v418, 4
        %457 = vst [vmem:[#allocation2 + $0x60] sm:$0xf0] %v453
        %458 = vst [vmem:[#allocation2 + $0x68] sm:$0xf0] %v454
        %459 = vst [vmem:[#allocation2 + $0x70] sm:$0xf0] %v417
        %460 = vst [vmem:[#allocation2 + $0x78] sm:$0xf0] %v418
        %v463 = vrot.slane %v419, 4
        %v464 = vrot.slane %v420, 4
        %467 = vst [vmem:[#allocation2 + $0x80] sm:$0xf0] %v463
        %468 = vst [vmem:[#allocation2 + $0x88] sm:$0xf0] %v464
        %469 = vst [vmem:[#allocation2 + $0x90] sm:$0xf0] %v419
        %470 = vst [vmem:[#allocation2 + $0x98] sm:$0xf0] %v420
        %v471 = vld [vmem:[%s250] sm:$0xff]
        %v472 = vld [vmem:[%s250 + $0x8] sm:$0xff]
        %v473 = vld [vmem:[%s250 + $0x10] sm:$0xff]
        %v474 = vld [vmem:[%s250 + $0x18] sm:$0xff]
        %v475 = vld [vmem:[%s250 + $0x20] sm:$0xff]
        %v476 = vld [vmem:[%s250 + $0x28] sm:$0xff]
        %v477 = vld [vmem:[%s250 + $0x30] sm:$0xff]
        %v478 = vld [vmem:[%s250 + $0x38] sm:$0xff]
        %v479 = vld [vmem:[%s250 + $0x40] sm:$0xff]
        %v480 = vld [vmem:[%s250 + $0x48] sm:$0xff]
        %481 = vrot.lane.b32.xlu0 %v471, 15
        %v482 = vpop.permute.xlu0 %481
        %483 = vrot.lane.b32.xlu0 %v473, 15
        %v484 = vpop.permute.xlu0 %483
        %485 = vrot.lane.b32.xlu0 %v475, 15
        %v486 = vpop.permute.xlu0 %485
        %487 = vrot.lane.b32.xlu0 %v477, 15
        %v488 = vpop.permute.xlu0 %487
        %489 = vrot.lane.b32.xlu0 %v479, 15
        %v490 = vpop.permute.xlu0 %489
        %491 = vrot.lane.b32.xlu0 %v472, 15
        %v492 = vpop.permute.xlu0 %491
        %493 = vrot.lane.b32.xlu0 %v474, 15
        %v494 = vpop.permute.xlu0 %493
        %495 = vrot.lane.b32.xlu0 %v476, 15
        %v496 = vpop.permute.xlu0 %495
        %497 = vrot.lane.b32.xlu0 %v478, 15
        %v498 = vpop.permute.xlu0 %497
        %499 = vrot.lane.b32.xlu0 %v480, 15
        %v500 = vpop.permute.xlu0 %499
        %vm501 = vcmp.lt.s32.totalorder %v294, 15
        %v502 = vsel %vm501, %v482, %v492
        %v503 = vsel %vm501, %v484, %v494
        %v504 = vsel %vm501, %v486, %v496
        %v505 = vsel %vm501, %v488, %v498
        %v506 = vsel %vm501, %v490, %v500
        %v507 = vsel %vm501, %v492, %v482
        %v508 = vsel %vm501, %v494, %v484
        %v509 = vsel %vm501, %v496, %v486
        %v510 = vsel %vm501, %v498, %v488
        %v511 = vsel %vm501, %v500, %v490
        %v512 = vperm.slane %v259, 2
        %v513 = vperm.slane %v260, 2
        %v514 = vmul.f32 %v507, %v512
        %v515 = vmul.f32 %v502, %v513
        %v516 = vmul.f32 %v508, %v512
        %v517 = vmul.f32 %v503, %v513
        %v518 = vmul.f32 %v509, %v512
        %v519 = vmul.f32 %v504, %v513
        %v520 = vmul.f32 %v510, %v512
        %v521 = vmul.f32 %v505, %v513
        %v522 = vmul.f32 %v511, %v512
        %v523 = vmul.f32 %v506, %v513
        %524 = vst [vmem:[#allocation2 + $0xa0] sm:$0xf] %v514
        %525 = vst [vmem:[#allocation2 + $0xa8] sm:$0xf] %v515
        %v528 = vrot.slane %v514, 4
        %v529 = vrot.slane %v515, 4
        %532 = vst [vmem:[#allocation2 + $0xb0] sm:$0xf] %v528
        %533 = vst [vmem:[#allocation2 + $0xb8] sm:$0xf] %v529
        %534 = vst [vmem:[#allocation2 + $0xc0] sm:$0xf] %v516
        %535 = vst [vmem:[#allocation2 + $0xc8] sm:$0xf] %v517
        %v538 = vrot.slane %v516, 4
        %v539 = vrot.slane %v517, 4
        %542 = vst [vmem:[#allocation2 + $0xd0] sm:$0xf] %v538
        %543 = vst [vmem:[#allocation2 + $0xd8] sm:$0xf] %v539
        %544 = vst [vmem:[#allocation2 + $0xe0] sm:$0xf] %v518
        %545 = vst [vmem:[#allocation2 + $0xe8] sm:$0xf] %v519
        %v548 = vrot.slane %v518, 4
        %v549 = vrot.slane %v519, 4
        %552 = vst [vmem:[#allocation2 + $0xf0] sm:$0xf] %v548
        %553 = vst [vmem:[#allocation2 + $0xf8] sm:$0xf] %v549
        %554 = vst [vmem:[#allocation2 + $0x100] sm:$0xf] %v520
        %555 = vst [vmem:[#allocation2 + $0x108] sm:$0xf] %v521
        %v558 = vrot.slane %v520, 4
        %v559 = vrot.slane %v521, 4
        %562 = vst [vmem:[#allocation2 + $0x110] sm:$0xf] %v558
        %563 = vst [vmem:[#allocation2 + $0x118] sm:$0xf] %v559
        %564 = vst [vmem:[#allocation2 + $0x120] sm:$0xf] %v522
        %565 = vst [vmem:[#allocation2 + $0x128] sm:$0xf] %v523
        %v568 = vrot.slane %v522, 4
        %v569 = vrot.slane %v523, 4
        %572 = vst [vmem:[#allocation2 + $0x130] sm:$0xf] %v568
        %573 = vst [vmem:[#allocation2 + $0x138] sm:$0xf] %v569
        %v574 = vld [vmem:[%s250] sm:$0xff]
        %v575 = vld [vmem:[%s250 + $0x8] sm:$0xff]
        %v576 = vld [vmem:[%s250 + $0x10] sm:$0xff]
        %v577 = vld [vmem:[%s250 + $0x18] sm:$0xff]
        %v578 = vld [vmem:[%s250 + $0x20] sm:$0xff]
        %v579 = vld [vmem:[%s250 + $0x28] sm:$0xff]
        %v580 = vld [vmem:[%s250 + $0x30] sm:$0xff]
        %v581 = vld [vmem:[%s250 + $0x38] sm:$0xff]
        %v582 = vld [vmem:[%s250 + $0x40] sm:$0xff]
        %v583 = vld [vmem:[%s250 + $0x48] sm:$0xff]
        %584 = vrot.lane.b32.xlu0 %v574, 1
        %v585 = vpop.permute.xlu0 %584
        %586 = vrot.lane.b32.xlu0 %v576, 1
        %v587 = vpop.permute.xlu0 %586
        %588 = vrot.lane.b32.xlu0 %v578, 1
        %v589 = vpop.permute.xlu0 %588
        %590 = vrot.lane.b32.xlu0 %v580, 1
        %v591 = vpop.permute.xlu0 %590
        %592 = vrot.lane.b32.xlu0 %v582, 1
        %v593 = vpop.permute.xlu0 %592
        %594 = vrot.lane.b32.xlu0 %v575, 1
        %v595 = vpop.permute.xlu0 %594
        %596 = vrot.lane.b32.xlu0 %v577, 1
        %v597 = vpop.permute.xlu0 %596
        %598 = vrot.lane.b32.xlu0 %v579, 1
        %v599 = vpop.permute.xlu0 %598
        %600 = vrot.lane.b32.xlu0 %v581, 1
        %v601 = vpop.permute.xlu0 %600
        %602 = vrot.lane.b32.xlu0 %v583, 1
        %v603 = vpop.permute.xlu0 %602
        %vm604 = vcmp.lt.s32.totalorder %v294, 1
        %v605 = vsel %vm604, %v585, %v595
        %v606 = vsel %vm604, %v587, %v597
        %v607 = vsel %vm604, %v589, %v599
        %v608 = vsel %vm604, %v591, %v601
        %v609 = vsel %vm604, %v593, %v603
        %v610 = vsel %vm604, %v595, %v585
        %v611 = vsel %vm604, %v597, %v587
        %v612 = vsel %vm604, %v599, %v589
        %v613 = vsel %vm604, %v601, %v591
        %v614 = vsel %vm604, %v603, %v593
        %v615 = vperm.slane %v259, 3
        %v616 = vperm.slane %v260, 3
        %v617 = vmul.f32 %v610, %v615
        %v618 = vmul.f32 %v605, %v616
        %v619 = vmul.f32 %v611, %v615
        %v620 = vmul.f32 %v606, %v616
        %v621 = vmul.f32 %v612, %v615
        %v622 = vmul.f32 %v607, %v616
        %v623 = vmul.f32 %v613, %v615
        %v624 = vmul.f32 %v608, %v616
        %v625 = vmul.f32 %v614, %v615
        %v626 = vmul.f32 %v609, %v616
        %v629 = vrot.slane %v617, 4
        %v630 = vrot.slane %v618, 4
        %633 = vst [vmem:[#allocation2 + $0xa0] sm:$0xf0] %v629
        %634 = vst [vmem:[#allocation2 + $0xa8] sm:$0xf0] %v630
        %635 = vst [vmem:[#allocation2 + $0xb0] sm:$0xf0] %v617
        %636 = vst [vmem:[#allocation2 + $0xb8] sm:$0xf0] %v618
        %v639 = vrot.slane %v619, 4
        %v640 = vrot.slane %v620, 4
        %643 = vst [vmem:[#allocation2 + $0xc0] sm:$0xf0] %v639
        %644 = vst [vmem:[#allocation2 + $0xc8] sm:$0xf0] %v640
        %645 = vst [vmem:[#allocation2 + $0xd0] sm:$0xf0] %v619
        %646 = vst [vmem:[#allocation2 + $0xd8] sm:$0xf0] %v620
        %v649 = vrot.slane %v621, 4
        %v650 = vrot.slane %v622, 4
        %653 = vst [vmem:[#allocation2 + $0xe0] sm:$0xf0] %v649
        %654 = vst [vmem:[#allocation2 + $0xe8] sm:$0xf0] %v650
        %655 = vst [vmem:[#allocation2 + $0xf0] sm:$0xf0] %v621
        %656 = vst [vmem:[#allocation2 + $0xf8] sm:$0xf0] %v622
        %v659 = vrot.slane %v623, 4
        %v660 = vrot.slane %v624, 4
        %663 = vst [vmem:[#allocation2 + $0x100] sm:$0xf0] %v659
        %664 = vst [vmem:[#allocation2 + $0x108] sm:$0xf0] %v660
        %665 = vst [vmem:[#allocation2 + $0x110] sm:$0xf0] %v623
        %666 = vst [vmem:[#allocation2 + $0x118] sm:$0xf0] %v624
        %v669 = vrot.slane %v625, 4
        %v670 = vrot.slane %v626, 4
        %673 = vst [vmem:[#allocation2 + $0x120] sm:$0xf0] %v669
        %674 = vst [vmem:[#allocation2 + $0x128] sm:$0xf0] %v670
        %675 = vst [vmem:[#allocation2 + $0x130] sm:$0xf0] %v625
        %676 = vst [vmem:[#allocation2 + $0x138] sm:$0xf0] %v626
        %v677 = vld [vmem:[%s250] sm:$0xff]
        %v678 = vld [vmem:[%s250 + $0x8] sm:$0xff]
        %v679 = vld [vmem:[%s250 + $0x10] sm:$0xff]
        %v680 = vld [vmem:[%s250 + $0x18] sm:$0xff]
        %v681 = vld [vmem:[%s250 + $0x20] sm:$0xff]
        %v682 = vld [vmem:[%s250 + $0x28] sm:$0xff]
        %v683 = vld [vmem:[%s250 + $0x30] sm:$0xff]
        %v684 = vld [vmem:[%s250 + $0x38] sm:$0xff]
        %v685 = vld [vmem:[%s250 + $0x40] sm:$0xff]
        %v686 = vld [vmem:[%s250 + $0x48] sm:$0xff]
        %687 = vst [vmem:[#allocation2 + $0x140] sm:$0xf] %v677
        %688 = vst [vmem:[#allocation2 + $0x148] sm:$0xf] %v678
        %v691 = vrot.slane %v677, 4
        %v692 = vrot.slane %v678, 4
        %695 = vst [vmem:[#allocation2 + $0x150] sm:$0xf] %v691
        %696 = vst [vmem:[#allocation2 + $0x158] sm:$0xf] %v692
        %697 = vst [vmem:[#allocation2 + $0x160] sm:$0xf] %v679
        %698 = vst [vmem:[#allocation2 + $0x168] sm:$0xf] %v680
        %v701 = vrot.slane %v679, 4
        %v702 = vrot.slane %v680, 4
        %705 = vst [vmem:[#allocation2 + $0x170] sm:$0xf] %v701
        %706 = vst [vmem:[#allocation2 + $0x178] sm:$0xf] %v702
        %707 = vst [vmem:[#allocation2 + $0x180] sm:$0xf] %v681
        %708 = vst [vmem:[#allocation2 + $0x188] sm:$0xf] %v682
        %v711 = vrot.slane %v681, 4
        %v712 = vrot.slane %v682, 4
        %715 = vst [vmem:[#allocation2 + $0x190] sm:$0xf] %v711
        %716 = vst [vmem:[#allocation2 + $0x198] sm:$0xf] %v712
        %717 = vst [vmem:[#allocation2 + $0x1a0] sm:$0xf] %v683
        %718 = vst [vmem:[#allocation2 + $0x1a8] sm:$0xf] %v684
        %v721 = vrot.slane %v683, 4
        %v722 = vrot.slane %v684, 4
        %725 = vst [vmem:[#allocation2 + $0x1b0] sm:$0xf] %v721
        %726 = vst [vmem:[#allocation2 + $0x1b8] sm:$0xf] %v722
        %727 = vst [vmem:[#allocation2 + $0x1c0] sm:$0xf] %v685
        %728 = vst [vmem:[#allocation2 + $0x1c8] sm:$0xf] %v686
        %v731 = vrot.slane %v685, 4
        %v732 = vrot.slane %v686, 4
        %735 = vst [vmem:[#allocation2 + $0x1d0] sm:$0xf] %v731
        %736 = vst [vmem:[#allocation2 + $0x1d8] sm:$0xf] %v732
        %v737 = vld [vmem:[%s250] sm:$0xff]
        %v738 = vld [vmem:[%s250 + $0x8] sm:$0xff]
        %v739 = vld [vmem:[%s250 + $0x10] sm:$0xff]
        %v740 = vld [vmem:[%s250 + $0x18] sm:$0xff]
        %v741 = vld [vmem:[%s250 + $0x20] sm:$0xff]
        %v742 = vld [vmem:[%s250 + $0x28] sm:$0xff]
        %v743 = vld [vmem:[%s250 + $0x30] sm:$0xff]
        %v744 = vld [vmem:[%s250 + $0x38] sm:$0xff]
        %v745 = vld [vmem:[%s250 + $0x40] sm:$0xff]
        %v746 = vld [vmem:[%s250 + $0x48] sm:$0xff]
        %747 = vrot.lane.b32.xlu0 %v737, 127
        %v748 = vpop.permute.xlu0 %747
        %749 = vrot.lane.b32.xlu0 %v739, 127
        %v750 = vpop.permute.xlu0 %749
        %751 = vrot.lane.b32.xlu0 %v741, 127
        %v752 = vpop.permute.xlu0 %751
        %753 = vrot.lane.b32.xlu0 %v743, 127
        %v754 = vpop.permute.xlu0 %753
        %755 = vrot.lane.b32.xlu0 %v745, 127
        %v756 = vpop.permute.xlu0 %755
        %757 = vrot.lane.b32.xlu0 %v738, 127
        %v758 = vpop.permute.xlu0 %757
        %759 = vrot.lane.b32.xlu0 %v740, 127
        %v760 = vpop.permute.xlu0 %759
        %761 = vrot.lane.b32.xlu0 %v742, 127
        %v762 = vpop.permute.xlu0 %761
        %763 = vrot.lane.b32.xlu0 %v744, 127
        %v764 = vpop.permute.xlu0 %763
        %765 = vrot.lane.b32.xlu0 %v746, 127
        %v766 = vpop.permute.xlu0 %765
        %vm767 = vcmp.lt.s32.totalorder %v294, 127
        %v768 = vsel %vm767, %v748, %v758
        %v769 = vsel %vm767, %v750, %v760
        %v770 = vsel %vm767, %v752, %v762
        %v771 = vsel %vm767, %v754, %v764
        %v772 = vsel %vm767, %v756, %v766
        %v773 = vsel %vm767, %v758, %v748
        %v774 = vsel %vm767, %v760, %v750
        %v775 = vsel %vm767, %v762, %v752
        %v776 = vsel %vm767, %v764, %v754
        %v777 = vsel %vm767, %v766, %v756
        %v778 = vperm.slane %v259, 5
        %v779 = vperm.slane %v260, 5
        %v780 = vmul.f32 %v768, %v778
        %v781 = vmul.f32 %v773, %v779
        %v782 = vmul.f32 %v769, %v778
        %v783 = vmul.f32 %v774, %v779
        %v784 = vmul.f32 %v770, %v778
        %v785 = vmul.f32 %v775, %v779
        %v786 = vmul.f32 %v771, %v778
        %v787 = vmul.f32 %v776, %v779
        %v788 = vmul.f32 %v772, %v778
        %v789 = vmul.f32 %v777, %v779
        %v792 = vrot.slane %v780, 4
        %v793 = vrot.slane %v781, 4
        %796 = vst [vmem:[#allocation2 + $0x140] sm:$0xf0] %v792
        %797 = vst [vmem:[#allocation2 + $0x148] sm:$0xf0] %v793
        %798 = vst [vmem:[#allocation2 + $0x150] sm:$0xf0] %v780
        %799 = vst [vmem:[#allocation2 + $0x158] sm:$0xf0] %v781
        %v802 = vrot.slane %v782, 4
        %v803 = vrot.slane %v783, 4
        %806 = vst [vmem:[#allocation2 + $0x160] sm:$0xf0] %v802
        %807 = vst [vmem:[#allocation2 + $0x168] sm:$0xf0] %v803
        %808 = vst [vmem:[#allocation2 + $0x170] sm:$0xf0] %v782
        %809 = vst [vmem:[#allocation2 + $0x178] sm:$0xf0] %v783
        %v812 = vrot.slane %v784, 4
        %v813 = vrot.slane %v785, 4
        %816 = vst [vmem:[#allocation2 + $0x180] sm:$0xf0] %v812
        %817 = vst [vmem:[#allocation2 + $0x188] sm:$0xf0] %v813
        %818 = vst [vmem:[#allocation2 + $0x190] sm:$0xf0] %v784
        %819 = vst [vmem:[#allocation2 + $0x198] sm:$0xf0] %v785
        %v822 = vrot.slane %v786, 4
        %v823 = vrot.slane %v787, 4
        %826 = vst [vmem:[#allocation2 + $0x1a0] sm:$0xf0] %v822
        %827 = vst [vmem:[#allocation2 + $0x1a8] sm:$0xf0] %v823
        %828 = vst [vmem:[#allocation2 + $0x1b0] sm:$0xf0] %v786
        %829 = vst [vmem:[#allocation2 + $0x1b8] sm:$0xf0] %v787
        %v832 = vrot.slane %v788, 4
        %v833 = vrot.slane %v789, 4
        %836 = vst [vmem:[#allocation2 + $0x1c0] sm:$0xf0] %v832
        %837 = vst [vmem:[#allocation2 + $0x1c8] sm:$0xf0] %v833
        %838 = vst [vmem:[#allocation2 + $0x1d0] sm:$0xf0] %v788
        %839 = vst [vmem:[#allocation2 + $0x1d8] sm:$0xf0] %v789
        %v840 = vld [vmem:[%s250] sm:$0xff]
        %v841 = vld [vmem:[%s250 + $0x8] sm:$0xff]
        %v842 = vld [vmem:[%s250 + $0x10] sm:$0xff]
        %v843 = vld [vmem:[%s250 + $0x18] sm:$0xff]
        %v844 = vld [vmem:[%s250 + $0x20] sm:$0xff]
        %v845 = vld [vmem:[%s250 + $0x28] sm:$0xff]
        %v846 = vld [vmem:[%s250 + $0x30] sm:$0xff]
        %v847 = vld [vmem:[%s250 + $0x38] sm:$0xff]
        %v848 = vld [vmem:[%s250 + $0x40] sm:$0xff]
        %v849 = vld [vmem:[%s250 + $0x48] sm:$0xff]
        %850 = vrot.lane.b32.xlu0 %v840, 113
        %v851 = vpop.permute.xlu0 %850
        %852 = vrot.lane.b32.xlu0 %v842, 113
        %v853 = vpop.permute.xlu0 %852
        %854 = vrot.lane.b32.xlu0 %v844, 113
        %v855 = vpop.permute.xlu0 %854
        %856 = vrot.lane.b32.xlu0 %v846, 113
        %v857 = vpop.permute.xlu0 %856
        %858 = vrot.lane.b32.xlu0 %v848, 113
        %v859 = vpop.permute.xlu0 %858
        %860 = vrot.lane.b32.xlu0 %v841, 113
        %v861 = vpop.permute.xlu0 %860
        %862 = vrot.lane.b32.xlu0 %v843, 113
        %v863 = vpop.permute.xlu0 %862
        %864 = vrot.lane.b32.xlu0 %v845, 113
        %v865 = vpop.permute.xlu0 %864
        %866 = vrot.lane.b32.xlu0 %v847, 113
        %v867 = vpop.permute.xlu0 %866
        %868 = vrot.lane.b32.xlu0 %v849, 113
        %v869 = vpop.permute.xlu0 %868
        %vm870 = vcmp.lt.s32.totalorder %v294, 113
        %v871 = vsel %vm870, %v851, %v861
        %v872 = vsel %vm870, %v853, %v863
        %v873 = vsel %vm870, %v855, %v865
        %v874 = vsel %vm870, %v857, %v867
        %v875 = vsel %vm870, %v859, %v869
        %v876 = vsel %vm870, %v861, %v851
        %v877 = vsel %vm870, %v863, %v853
        %v878 = vsel %vm870, %v865, %v855
        %v879 = vsel %vm870, %v867, %v857
        %v880 = vsel %vm870, %v869, %v859
        %v881 = vperm.slane %v259, 6
        %v882 = vperm.slane %v260, 6
        %v883 = vmul.f32 %v871, %v881
        %v884 = vmul.f32 %v876, %v882
        %v885 = vmul.f32 %v872, %v881
        %v886 = vmul.f32 %v877, %v882
        %v887 = vmul.f32 %v873, %v881
        %v888 = vmul.f32 %v878, %v882
        %v889 = vmul.f32 %v874, %v881
        %v890 = vmul.f32 %v879, %v882
        %v891 = vmul.f32 %v875, %v881
        %v892 = vmul.f32 %v880, %v882
        %893 = vst [vmem:[#allocation2 + $0x1e0] sm:$0xf] %v883
        %894 = vst [vmem:[#allocation2 + $0x1e8] sm:$0xf] %v884
        %v897 = vrot.slane %v883, 4
        %v898 = vrot.slane %v884, 4
        %901 = vst [vmem:[#allocation2 + $0x1f0] sm:$0xf] %v897
        %902 = vst [vmem:[#allocation2 + $0x1f8] sm:$0xf] %v898
        %903 = vst [vmem:[#allocation2 + $0x200] sm:$0xf] %v885
        %904 = vst [vmem:[#allocation2 + $0x208] sm:$0xf] %v886
        %v907 = vrot.slane %v885, 4
        %v908 = vrot.slane %v886, 4
        %911 = vst [vmem:[#allocation2 + $0x210] sm:$0xf] %v907
        %912 = vst [vmem:[#allocation2 + $0x218] sm:$0xf] %v908
        %913 = vst [vmem:[#allocation2 + $0x220] sm:$0xf] %v887
        %914 = vst [vmem:[#allocation2 + $0x228] sm:$0xf] %v888
        %v917 = vrot.slane %v887, 4
        %v918 = vrot.slane %v888, 4
        %921 = vst [vmem:[#allocation2 + $0x230] sm:$0xf] %v917
        %922 = vst [vmem:[#allocation2 + $0x238] sm:$0xf] %v918
        %923 = vst [vmem:[#allocation2 + $0x240] sm:$0xf] %v889
        %924 = vst [vmem:[#allocation2 + $0x248] sm:$0xf] %v890
        %v927 = vrot.slane %v889, 4
        %v928 = vrot.slane %v890, 4
        %931 = vst [vmem:[#allocation2 + $0x250] sm:$0xf] %v927
        %932 = vst [vmem:[#allocation2 + $0x258] sm:$0xf] %v928
        %933 = vst [vmem:[#allocation2 + $0x260] sm:$0xf] %v891
        %934 = vst [vmem:[#allocation2 + $0x268] sm:$0xf] %v892
        %v937 = vrot.slane %v891, 4
        %v938 = vrot.slane %v892, 4
        %941 = vst [vmem:[#allocation2 + $0x270] sm:$0xf] %v937
        %942 = vst [vmem:[#allocation2 + $0x278] sm:$0xf] %v938
        %v943 = vld [vmem:[%s250] sm:$0xff]
        %v944 = vld [vmem:[%s250 + $0x8] sm:$0xff]
        %v945 = vld [vmem:[%s250 + $0x10] sm:$0xff]
        %v946 = vld [vmem:[%s250 + $0x18] sm:$0xff]
        %v947 = vld [vmem:[%s250 + $0x20] sm:$0xff]
        %v948 = vld [vmem:[%s250 + $0x28] sm:$0xff]
        %v949 = vld [vmem:[%s250 + $0x30] sm:$0xff]
        %v950 = vld [vmem:[%s250 + $0x38] sm:$0xff]
        %v951 = vld [vmem:[%s250 + $0x40] sm:$0xff]
        %v952 = vld [vmem:[%s250 + $0x48] sm:$0xff]
        %953 = vrot.lane.b32.xlu0 %v943, 112
        %v954 = vpop.permute.xlu0 %953
        %955 = vrot.lane.b32.xlu0 %v945, 112
        %v956 = vpop.permute.xlu0 %955
        %957 = vrot.lane.b32.xlu0 %v947, 112
        %v958 = vpop.permute.xlu0 %957
        %959 = vrot.lane.b32.xlu0 %v949, 112
        %v960 = vpop.permute.xlu0 %959
        %961 = vrot.lane.b32.xlu0 %v951, 112
        %v962 = vpop.permute.xlu0 %961
        %963 = vrot.lane.b32.xlu0 %v944, 112
        %v964 = vpop.permute.xlu0 %963
        %965 = vrot.lane.b32.xlu0 %v946, 112
        %v966 = vpop.permute.xlu0 %965
        %967 = vrot.lane.b32.xlu0 %v948, 112
        %v968 = vpop.permute.xlu0 %967
        %969 = vrot.lane.b32.xlu0 %v950, 112
        %v970 = vpop.permute.xlu0 %969
        %971 = vrot.lane.b32.xlu0 %v952, 112
        %v972 = vpop.permute.xlu0 %971
        %vm973 = vcmp.lt.s32.totalorder %v294, 112
        %v974 = vsel %vm973, %v954, %v964
        %v975 = vsel %vm973, %v956, %v966
        %v976 = vsel %vm973, %v958, %v968
        %v977 = vsel %vm973, %v960, %v970
        %v978 = vsel %vm973, %v962, %v972
        %v979 = vsel %vm973, %v964, %v954
        %v980 = vsel %vm973, %v966, %v956
        %v981 = vsel %vm973, %v968, %v958
        %v982 = vsel %vm973, %v970, %v960
        %v983 = vsel %vm973, %v972, %v962
        %v984 = vperm.slane %v259, 7
        %v985 = vperm.slane %v260, 7
        %v986 = vmul.f32 %v974, %v984
        %v987 = vmul.f32 %v979, %v985
        %v988 = vmul.f32 %v975, %v984
        %v989 = vmul.f32 %v980, %v985
        %v990 = vmul.f32 %v976, %v984
        %v991 = vmul.f32 %v981, %v985
        %v992 = vmul.f32 %v977, %v984
        %v993 = vmul.f32 %v982, %v985
        %v994 = vmul.f32 %v978, %v984
        %v995 = vmul.f32 %v983, %v985
        %v998 = vrot.slane %v986, 4
        %v999 = vrot.slane %v987, 4
        %1002 = vst [vmem:[#allocation2 + $0x1e0] sm:$0xf0] %v998
        %1003 = vst [vmem:[#allocation2 + $0x1e8] sm:$0xf0] %v999
        %1004 = vst [vmem:[#allocation2 + $0x1f0] sm:$0xf0] %v986
        %1005 = vst [vmem:[#allocation2 + $0x1f8] sm:$0xf0] %v987
        %v1008 = vrot.slane %v988, 4
        %v1009 = vrot.slane %v989, 4
        %1012 = vst [vmem:[#allocation2 + $0x200] sm:$0xf0] %v1008
        %1013 = vst [vmem:[#allocation2 + $0x208] sm:$0xf0] %v1009
        %1014 = vst [vmem:[#allocation2 + $0x210] sm:$0xf0] %v988
        %1015 = vst [vmem:[#allocation2 + $0x218] sm:$0xf0] %v989
        %v1018 = vrot.slane %v990, 4
        %v1019 = vrot.slane %v991, 4
        %1022 = vst [vmem:[#allocation2 + $0x220] sm:$0xf0] %v1018
        %1023 = vst [vmem:[#allocation2 + $0x228] sm:$0xf0] %v1019
        %1024 = vst [vmem:[#allocation2 + $0x230] sm:$0xf0] %v990
        %1025 = vst [vmem:[#allocation2 + $0x238] sm:$0xf0] %v991
        %v1028 = vrot.slane %v992, 4
        %v1029 = vrot.slane %v993, 4
        %1032 = vst [vmem:[#allocation2 + $0x240] sm:$0xf0] %v1028
        %1033 = vst [vmem:[#allocation2 + $0x248] sm:$0xf0] %v1029
        %1034 = vst [vmem:[#allocation2 + $0x250] sm:$0xf0] %v992
        %1035 = vst [vmem:[#allocation2 + $0x258] sm:$0xf0] %v993
        %v1038 = vrot.slane %v994, 4
        %v1039 = vrot.slane %v995, 4
        %1042 = vst [vmem:[#allocation2 + $0x260] sm:$0xf0] %v1038
        %1043 = vst [vmem:[#allocation2 + $0x268] sm:$0xf0] %v1039
        %1044 = vst [vmem:[#allocation2 + $0x270] sm:$0xf0] %v994
        %1045 = vst [vmem:[#allocation2 + $0x278] sm:$0xf0] %v995
        %v1046 = vld [vmem:[%s250] sm:$0xff]
        %v1047 = vld [vmem:[%s250 + $0x8] sm:$0xff]
        %v1048 = vld [vmem:[%s250 + $0x10] sm:$0xff]
        %v1049 = vld [vmem:[%s250 + $0x18] sm:$0xff]
        %v1050 = vld [vmem:[%s250 + $0x20] sm:$0xff]
        %v1051 = vld [vmem:[%s250 + $0x28] sm:$0xff]
        %v1052 = vld [vmem:[%s250 + $0x30] sm:$0xff]
        %v1053 = vld [vmem:[%s250 + $0x38] sm:$0xff]
        %v1054 = vld [vmem:[%s250 + $0x40] sm:$0xff]
        %v1055 = vld [vmem:[%s250 + $0x48] sm:$0xff]
        %1056 = vrot.lane.b32.xlu0 %v1046, 111
        %v1057 = vpop.permute.xlu0 %1056
        %1058 = vrot.lane.b32.xlu0 %v1048, 111
        %v1059 = vpop.permute.xlu0 %1058
        %1060 = vrot.lane.b32.xlu0 %v1050, 111
        %v1061 = vpop.permute.xlu0 %1060
        %1062 = vrot.lane.b32.xlu0 %v1052, 111
        %v1063 = vpop.permute.xlu0 %1062
        %1064 = vrot.lane.b32.xlu0 %v1054, 111
        %v1065 = vpop.permute.xlu0 %1064
        %1066 = vrot.lane.b32.xlu0 %v1047, 111
        %v1067 = vpop.permute.xlu0 %1066
        %1068 = vrot.lane.b32.xlu0 %v1049, 111
        %v1069 = vpop.permute.xlu0 %1068
        %1070 = vrot.lane.b32.xlu0 %v1051, 111
        %v1071 = vpop.permute.xlu0 %1070
        %1072 = vrot.lane.b32.xlu0 %v1053, 111
        %v1073 = vpop.permute.xlu0 %1072
        %1074 = vrot.lane.b32.xlu0 %v1055, 111
        %v1075 = vpop.permute.xlu0 %1074
        %vm1076 = vcmp.lt.s32.totalorder %v294, 111
        %v1077 = vsel %vm1076, %v1057, %v1067
        %v1078 = vsel %vm1076, %v1059, %v1069
        %v1079 = vsel %vm1076, %v1061, %v1071
        %v1080 = vsel %vm1076, %v1063, %v1073
        %v1081 = vsel %vm1076, %v1065, %v1075
        %v1082 = vsel %vm1076, %v1067, %v1057
        %v1083 = vsel %vm1076, %v1069, %v1059
        %v1084 = vsel %vm1076, %v1071, %v1061
        %v1085 = vsel %vm1076, %v1073, %v1063
        %v1086 = vsel %vm1076, %v1075, %v1065
        %v1087 = vperm.slane %v261, 0
        %v1088 = vperm.slane %v262, 0
        %v1089 = vmul.f32 %v1077, %v1087
        %v1090 = vmul.f32 %v1082, %v1088
        %v1091 = vmul.f32 %v1078, %v1087
        %v1092 = vmul.f32 %v1083, %v1088
        %v1093 = vmul.f32 %v1079, %v1087
        %v1094 = vmul.f32 %v1084, %v1088
        %v1095 = vmul.f32 %v1080, %v1087
        %v1096 = vmul.f32 %v1085, %v1088
        %v1097 = vmul.f32 %v1081, %v1087
        %v1098 = vmul.f32 %v1086, %v1088
        %1099 = vst [vmem:[#allocation2 + $0x280] sm:$0xf] %v1089
        %1100 = vst [vmem:[#allocation2 + $0x288] sm:$0xf] %v1090
        %v1103 = vrot.slane %v1089, 4
        %v1104 = vrot.slane %v1090, 4
        %1107 = vst [vmem:[#allocation2 + $0x290] sm:$0xf] %v1103
        %1108 = vst [vmem:[#allocation2 + $0x298] sm:$0xf] %v1104
        %1109 = vst [vmem:[#allocation2 + $0x2a0] sm:$0xf] %v1091
        %1110 = vst [vmem:[#allocation2 + $0x2a8] sm:$0xf] %v1092
        %v1113 = vrot.slane %v1091, 4
        %v1114 = vrot.slane %v1092, 4
        %1117 = vst [vmem:[#allocation2 + $0x2b0] sm:$0xf] %v1113
        %1118 = vst [vmem:[#allocation2 + $0x2b8] sm:$0xf] %v1114
        %1119 = vst [vmem:[#allocation2 + $0x2c0] sm:$0xf] %v1093
        %1120 = vst [vmem:[#allocation2 + $0x2c8] sm:$0xf] %v1094
        %v1123 = vrot.slane %v1093, 4
        %v1124 = vrot.slane %v1094, 4
        %1127 = vst [vmem:[#allocation2 + $0x2d0] sm:$0xf] %v1123
        %1128 = vst [vmem:[#allocation2 + $0x2d8] sm:$0xf] %v1124
        %1129 = vst [vmem:[#allocation2 + $0x2e0] sm:$0xf] %v1095
        %1130 = vst [vmem:[#allocation2 + $0x2e8] sm:$0xf] %v1096
        %v1133 = vrot.slane %v1095, 4
        %v1134 = vrot.slane %v1096, 4
        %1137 = vst [vmem:[#allocation2 + $0x2f0] sm:$0xf] %v1133
        %1138 = vst [vmem:[#allocation2 + $0x2f8] sm:$0xf] %v1134
        %1139 = vst [vmem:[#allocation2 + $0x300] sm:$0xf] %v1097
        %1140 = vst [vmem:[#allocation2 + $0x308] sm:$0xf] %v1098
        %v1143 = vrot.slane %v1097, 4
        %v1144 = vrot.slane %v1098, 4
        %1147 = vst [vmem:[#allocation2 + $0x310] sm:$0xf] %v1143
        %1148 = vst [vmem:[#allocation2 + $0x318] sm:$0xf] %v1144
        %v1149 = vld [vmem:[%s2] sm:$0xff]
        %v1150 = vld [vmem:[#allocation2] sm:$0xff]
        %v1151 = vld [vmem:[#allocation2 + $0x8] sm:$0xff]
        %v1152 = vld [vmem:[#allocation2 + $0x10] sm:$0xff]
        %v1153 = vld [vmem:[#allocation2 + $0x18] sm:$0xff]
        %v1154 = vld [vmem:[#allocation2 + $0x20] sm:$0xff]
        %v1155 = vld [vmem:[#allocation2 + $0x28] sm:$0xff]
        %v1156 = vld [vmem:[#allocation2 + $0x30] sm:$0xff]
        %v1157 = vld [vmem:[#allocation2 + $0x38] sm:$0xff]
        %v1158 = vld [vmem:[#allocation2 + $0x40] sm:$0xff]
        %v1159 = vld [vmem:[#allocation2 + $0x48] sm:$0xff]
        %v1160 = vld [vmem:[#allocation2 + $0x50] sm:$0xff]
        %v1161 = vld [vmem:[#allocation2 + $0x58] sm:$0xff]
        %v1162 = vld [vmem:[#allocation2 + $0x60] sm:$0xff]
        %v1163 = vld [vmem:[#allocation2 + $0x68] sm:$0xff]
        %v1164 = vld [vmem:[#allocation2 + $0x70] sm:$0xff]
        %v1165 = vld [vmem:[#allocation2 + $0x78] sm:$0xff]
        %v1166 = vld [vmem:[#allocation2 + $0x80] sm:$0xff]
        %v1167 = vld [vmem:[#allocation2 + $0x88] sm:$0xff]
        %v1168 = vld [vmem:[#allocation2 + $0x90] sm:$0xff]
        %v1169 = vld [vmem:[#allocation2 + $0x98] sm:$0xff]
        %v1170 = vld [vmem:[#allocation2 + $0xa0] sm:$0xff]
        %v1171 = vld [vmem:[#allocation2 + $0xa8] sm:$0xff]
        %v1172 = vld [vmem:[#allocation2 + $0xb0] sm:$0xff]
        %v1173 = vld [vmem:[#allocation2 + $0xb8] sm:$0xff]
        %v1174 = vld [vmem:[#allocation2 + $0xc0] sm:$0xff]
        %v1175 = vld [vmem:[#allocation2 + $0xc8] sm:$0xff]
        %v1176 = vld [vmem:[#allocation2 + $0xd0] sm:$0xff]
        %v1177 = vld [vmem:[#allocation2 + $0xd8] sm:$0xff]
        %v1178 = vld [vmem:[#allocation2 + $0xe0] sm:$0xff]
        %v1179 = vld [vmem:[#allocation2 + $0xe8] sm:$0xff]
        %v1180 = vld [vmem:[#allocation2 + $0xf0] sm:$0xff]
        %v1181 = vld [vmem:[#allocation2 + $0xf8] sm:$0xff]
        %v1182 = vld [vmem:[#allocation2 + $0x100] sm:$0xff]
        %v1183 = vld [vmem:[#allocation2 + $0x108] sm:$0xff]
        %v1184 = vld [vmem:[#allocation2 + $0x110] sm:$0xff]
        %v1185 = vld [vmem:[#allocation2 + $0x118] sm:$0xff]
        %v1186 = vld [vmem:[#allocation2 + $0x120] sm:$0xff]
        %v1187 = vld [vmem:[#allocation2 + $0x128] sm:$0xff]
        %v1188 = vld [vmem:[#allocation2 + $0x130] sm:$0xff]
        %v1189 = vld [vmem:[#allocation2 + $0x138] sm:$0xff]
        %v1190 = vld [vmem:[#allocation2 + $0x140] sm:$0xff]
        %v1191 = vld [vmem:[#allocation2 + $0x148] sm:$0xff]
        %v1192 = vld [vmem:[#allocation2 + $0x150] sm:$0xff]
        %v1193 = vld [vmem:[#allocation2 + $0x158] sm:$0xff]
        %v1194 = vld [vmem:[#allocation2 + $0x160] sm:$0xff]
        %v1195 = vld [vmem:[#allocation2 + $0x168] sm:$0xff]
        %v1196 = vld [vmem:[#allocation2 + $0x170] sm:$0xff]
        %v1197 = vld [vmem:[#allocation2 + $0x178] sm:$0xff]
        %v1198 = vld [vmem:[#allocation2 + $0x180] sm:$0xff]
        %v1199 = vld [vmem:[#allocation2 + $0x188] sm:$0xff]
        %v1200 = vld [vmem:[#allocation2 + $0x190] sm:$0xff]
        %v1201 = vld [vmem:[#allocation2 + $0x198] sm:$0xff]
        %v1202 = vld [vmem:[#allocation2 + $0x1a0] sm:$0xff]
        %v1203 = vld [vmem:[#allocation2 + $0x1a8] sm:$0xff]
        %v1204 = vld [vmem:[#allocation2 + $0x1b0] sm:$0xff]
        %v1205 = vld [vmem:[#allocation2 + $0x1b8] sm:$0xff]
        %v1206 = vld [vmem:[#allocation2 + $0x1c0] sm:$0xff]
        %v1207 = vld [vmem:[#allocation2 + $0x1c8] sm:$0xff]
        %v1208 = vld [vmem:[#allocation2 + $0x1d0] sm:$0xff]
        %v1209 = vld [vmem:[#allocation2 + $0x1d8] sm:$0xff]
        %v1210 = vld [vmem:[#allocation2 + $0x1e0] sm:$0xff]
        %v1211 = vld [vmem:[#allocation2 + $0x1e8] sm:$0xff]
        %v1212 = vld [vmem:[#allocation2 + $0x1f0] sm:$0xff]
        %v1213 = vld [vmem:[#allocation2 + $0x1f8] sm:$0xff]
        %v1214 = vld [vmem:[#allocation2 + $0x200] sm:$0xff]
        %v1215 = vld [vmem:[#allocation2 + $0x208] sm:$0xff]
        %v1216 = vld [vmem:[#allocation2 + $0x210] sm:$0xff]
        %v1217 = vld [vmem:[#allocation2 + $0x218] sm:$0xff]
        %v1218 = vld [vmem:[#allocation2 + $0x220] sm:$0xff]
        %v1219 = vld [vmem:[#allocation2 + $0x228] sm:$0xff]
        %v1220 = vld [vmem:[#allocation2 + $0x230] sm:$0xff]
        %v1221 = vld [vmem:[#allocation2 + $0x238] sm:$0xff]
        %v1222 = vld [vmem:[#allocation2 + $0x240] sm:$0xff]
        %v1223 = vld [vmem:[#allocation2 + $0x248] sm:$0xff]
        %v1224 = vld [vmem:[#allocation2 + $0x250] sm:$0xff]
        %v1225 = vld [vmem:[#allocation2 + $0x258] sm:$0xff]
        %v1226 = vld [vmem:[#allocation2 + $0x260] sm:$0xff]
        %v1227 = vld [vmem:[#allocation2 + $0x268] sm:$0xff]
        %v1228 = vld [vmem:[#allocation2 + $0x270] sm:$0xff]
        %v1229 = vld [vmem:[#allocation2 + $0x278] sm:$0xff]
        %v1230 = vld [vmem:[#allocation2 + $0x280] sm:$0xf]
        %v1231 = vld [vmem:[#allocation2 + $0x288] sm:$0xf]
        %v1232 = vld [vmem:[#allocation2 + $0x290] sm:$0xf]
        %v1233 = vld [vmem:[#allocation2 + $0x298] sm:$0xf]
        %v1234 = vld [vmem:[#allocation2 + $0x2a0] sm:$0xf]
        %v1235 = vld [vmem:[#allocation2 + $0x2a8] sm:$0xf]
        %v1236 = vld [vmem:[#allocation2 + $0x2b0] sm:$0xf]
        %v1237 = vld [vmem:[#allocation2 + $0x2b8] sm:$0xf]
        %v1238 = vld [vmem:[#allocation2 + $0x2c0] sm:$0xf]
        %v1239 = vld [vmem:[#allocation2 + $0x2c8] sm:$0xf]
        %v1240 = vld [vmem:[#allocation2 + $0x2d0] sm:$0xf]
        %v1241 = vld [vmem:[#allocation2 + $0x2d8] sm:$0xf]
        %v1242 = vld [vmem:[#allocation2 + $0x2e0] sm:$0xf]
        %v1243 = vld [vmem:[#allocation2 + $0x2e8] sm:$0xf]
        %v1244 = vld [vmem:[#allocation2 + $0x2f0] sm:$0xf]
        %v1245 = vld [vmem:[#allocation2 + $0x2f8] sm:$0xf]
        %v1246 = vld [vmem:[#allocation2 + $0x300] sm:$0xf]
        %v1247 = vld [vmem:[#allocation2 + $0x308] sm:$0xf]
        %v1248 = vld [vmem:[#allocation2 + $0x310] sm:$0xf]
        %v1249 = vld [vmem:[#allocation2 + $0x318] sm:$0xf]
        %vm1250 = vcmask 293888
        %v1252 = vsel %vm1250, %v1149, 0
        %vm1254 = vcmask 1043456
        %v1256 = vsel %vm1254, %v1230, 0
        %v1259 = vsel %vm1254, %v1231, 0
        %v1262 = vsel %vm1254, %v1232, 0
        %v1265 = vsel %vm1254, %v1233, 0
        %v1268 = vsel %vm1254, %v1234, 0
        %v1271 = vsel %vm1254, %v1235, 0
        %v1274 = vsel %vm1254, %v1236, 0
        %v1277 = vsel %vm1254, %v1237, 0
        %v1280 = vsel %vm1254, %v1238, 0
        %v1283 = vsel %vm1254, %v1239, 0
        %v1286 = vsel %vm1254, %v1240, 0
        %v1289 = vsel %vm1254, %v1241, 0
        %v1292 = vsel %vm1254, %v1242, 0
        %v1295 = vsel %vm1254, %v1243, 0
        %v1298 = vsel %vm1254, %v1244, 0
        %v1301 = vsel %vm1254, %v1245, 0
        %v1304 = vsel %vm1254, %v1246, 0
        %v1307 = vsel %vm1254, %v1247, 0
        %v1310 = vsel %vm1254, %v1248, 0
        %v1313 = vsel %vm1254, %v1249, 0
        %1315 = vmatpush.msra.mxu0 0.0
        %1316 = vmatpush.msra.mxu0 0.0
        %1317 = vmatpush.msra.mxu0 0.0
        %1318 = vmatpush.msra.mxu0 0.0
        %1319 = vmatpush.msra.mxu0 0.0
        %1320 = vmatpush.msra.mxu0 0.0
        %1321 = vmatpush.msra.mxu0 0.0
        %1322 = vmatpush.msra.mxu0 0.0
        %1323 = vmatpush.msra.mxu0 0.0
        %1324 = vmatpush.msra.mxu0 0.0
        %1325 = vmatpush.msra.mxu0 0.0
        %1326 = vmatpush.msra.mxu0 %v1256
        %1327 = vmatpush.msra.mxu0 %v1210
        %1328 = vmatpush.msra.mxu0 %v1190
        %1329 = vmatpush.msra.mxu0 %v1170
        %1330 = vmatpush.msra.mxu0 %v1150
        %1331 = vmatmul.f32.gmra.mxu0 %v1252
        %v1332 = vpop.f32.mrf.mxu0
        %v1333 = vadd.f32 0.0, %v1332
        %1334 = vdwg.mxu0
        %1335 = vmatpush.msra.mxu0 0.0
        %1336 = vmatpush.msra.mxu0 0.0
        %1337 = vmatpush.msra.mxu0 0.0
        %1338 = vmatpush.msra.mxu0 0.0
        %1339 = vmatpush.msra.mxu0 0.0
        %1340 = vmatpush.msra.mxu0 0.0
        %1341 = vmatpush.msra.mxu0 0.0
        %1342 = vmatpush.msra.mxu0 0.0
        %1343 = vmatpush.msra.mxu0 0.0
        %1344 = vmatpush.msra.mxu0 0.0
        %1345 = vmatpush.msra.mxu0 0.0
        %1346 = vmatpush.msra.mxu0 %v1259
        %1347 = vmatpush.msra.mxu0 %v1211
        %1348 = vmatpush.msra.mxu0 %v1191
        %1349 = vmatpush.msra.mxu0 %v1171
        %1350 = vmatpush.msra.mxu0 %v1151
        %1351 = vmatmul.f32.gmra.mxu0 %v1252
        %v1352 = vpop.f32.mrf.mxu0
        %v1353 = vadd.f32 0.0, %v1352
        %1354 = vdwg.mxu0
        %1355 = vmatpush.msra.mxu0 0.0
        %1356 = vmatpush.msra.mxu0 0.0
        %1357 = vmatpush.msra.mxu0 0.0
        %1358 = vmatpush.msra.mxu0 0.0
        %1359 = vmatpush.msra.mxu0 0.0
        %1360 = vmatpush.msra.mxu0 0.0
        %1361 = vmatpush.msra.mxu0 0.0
        %1362 = vmatpush.msra.mxu0 0.0
        %1363 = vmatpush.msra.mxu0 0.0
        %1364 = vmatpush.msra.mxu0 0.0
        %1365 = vmatpush.msra.mxu0 0.0
        %1366 = vmatpush.msra.mxu0 %v1262
        %1367 = vmatpush.msra.mxu0 %v1212
        %1368 = vmatpush.msra.mxu0 %v1192
        %1369 = vmatpush.msra.mxu0 %v1172
        %1370 = vmatpush.msra.mxu0 %v1152
        %1371 = vmatmul.f32.gmra.mxu0 %v1252
        %v1372 = vpop.f32.mrf.mxu0
        %v1373 = vadd.f32 0.0, %v1372
        %1374 = vdwg.mxu0
        %1375 = vmatpush.msra.mxu0 0.0
        %1376 = vmatpush.msra.mxu0 0.0
        %1377 = vmatpush.msra.mxu0 0.0
        %1378 = vmatpush.msra.mxu0 0.0
        %1379 = vmatpush.msra.mxu0 0.0
        %1380 = vmatpush.msra.mxu0 0.0
        %1381 = vmatpush.msra.mxu0 0.0
        %1382 = vmatpush.msra.mxu0 0.0
        %1383 = vmatpush.msra.mxu0 0.0
        %1384 = vmatpush.msra.mxu0 0.0
        %1385 = vmatpush.msra.mxu0 0.0
        %1386 = vmatpush.msra.mxu0 %v1265
        %1387 = vmatpush.msra.mxu0 %v1213
        %1388 = vmatpush.msra.mxu0 %v1193
        %1389 = vmatpush.msra.mxu0 %v1173
        %1390 = vmatpush.msra.mxu0 %v1153
        %1391 = vmatmul.f32.gmra.mxu0 %v1252
        %v1392 = vpop.f32.mrf.mxu0
        %v1393 = vadd.f32 0.0, %v1392
        %1394 = vdwg.mxu0
        %1395 = vmatpush.msra.mxu0 0.0
        %1396 = vmatpush.msra.mxu0 0.0
        %1397 = vmatpush.msra.mxu0 0.0
        %1398 = vmatpush.msra.mxu0 0.0
        %1399 = vmatpush.msra.mxu0 0.0
        %1400 = vmatpush.msra.mxu0 0.0
        %1401 = vmatpush.msra.mxu0 0.0
        %1402 = vmatpush.msra.mxu0 0.0
        %1403 = vmatpush.msra.mxu0 0.0
        %1404 = vmatpush.msra.mxu0 0.0
        %1405 = vmatpush.msra.mxu0 0.0
        %1406 = vmatpush.msra.mxu0 %v1268
        %1407 = vmatpush.msra.mxu0 %v1214
        %1408 = vmatpush.msra.mxu0 %v1194
        %1409 = vmatpush.msra.mxu0 %v1174
        %1410 = vmatpush.msra.mxu0 %v1154
        %1411 = vmatmul.f32.gmra.mxu0 %v1252
        %v1412 = vpop.f32.mrf.mxu0
        %v1413 = vadd.f32 0.0, %v1412
        %1414 = vdwg.mxu0
        %1415 = vmatpush.msra.mxu0 0.0
        %1416 = vmatpush.msra.mxu0 0.0
        %1417 = vmatpush.msra.mxu0 0.0
        %1418 = vmatpush.msra.mxu0 0.0
        %1419 = vmatpush.msra.mxu0 0.0
        %1420 = vmatpush.msra.mxu0 0.0
        %1421 = vmatpush.msra.mxu0 0.0
        %1422 = vmatpush.msra.mxu0 0.0
        %1423 = vmatpush.msra.mxu0 0.0
        %1424 = vmatpush.msra.mxu0 0.0
        %1425 = vmatpush.msra.mxu0 0.0
        %1426 = vmatpush.msra.mxu0 %v1271
        %1427 = vmatpush.msra.mxu0 %v1215
        %1428 = vmatpush.msra.mxu0 %v1195
        %1429 = vmatpush.msra.mxu0 %v1175
        %1430 = vmatpush.msra.mxu0 %v1155
        %1431 = vmatmul.f32.gmra.mxu0 %v1252
        %v1432 = vpop.f32.mrf.mxu0
        %v1433 = vadd.f32 0.0, %v1432
        %1434 = vdwg.mxu0
        %1435 = vmatpush.msra.mxu0 0.0
        %1436 = vmatpush.msra.mxu0 0.0
        %1437 = vmatpush.msra.mxu0 0.0
        %1438 = vmatpush.msra.mxu0 0.0
        %1439 = vmatpush.msra.mxu0 0.0
        %1440 = vmatpush.msra.mxu0 0.0
        %1441 = vmatpush.msra.mxu0 0.0
        %1442 = vmatpush.msra.mxu0 0.0
        %1443 = vmatpush.msra.mxu0 0.0
        %1444 = vmatpush.msra.mxu0 0.0
        %1445 = vmatpush.msra.mxu0 0.0
        %1446 = vmatpush.msra.mxu0 %v1274
        %1447 = vmatpush.msra.mxu0 %v1216
        %1448 = vmatpush.msra.mxu0 %v1196
        %1449 = vmatpush.msra.mxu0 %v1176
        %1450 = vmatpush.msra.mxu0 %v1156
        %1451 = vmatmul.f32.gmra.mxu0 %v1252
        %v1452 = vpop.f32.mrf.mxu0
        %v1453 = vadd.f32 0.0, %v1452
        %1454 = vdwg.mxu0
        %1455 = vmatpush.msra.mxu0 0.0
        %1456 = vmatpush.msra.mxu0 0.0
        %1457 = vmatpush.msra.mxu0 0.0
        %1458 = vmatpush.msra.mxu0 0.0
        %1459 = vmatpush.msra.mxu0 0.0
        %1460 = vmatpush.msra.mxu0 0.0
        %1461 = vmatpush.msra.mxu0 0.0
        %1462 = vmatpush.msra.mxu0 0.0
        %1463 = vmatpush.msra.mxu0 0.0
        %1464 = vmatpush.msra.mxu0 0.0
        %1465 = vmatpush.msra.mxu0 0.0
        %1466 = vmatpush.msra.mxu0 %v1277
        %1467 = vmatpush.msra.mxu0 %v1217
        %1468 = vmatpush.msra.mxu0 %v1197
        %1469 = vmatpush.msra.mxu0 %v1177
        %1470 = vmatpush.msra.mxu0 %v1157
        %1471 = vmatmul.f32.gmra.mxu0 %v1252
        %v1472 = vpop.f32.mrf.mxu0
        %v1473 = vadd.f32 0.0, %v1472
        %1474 = vdwg.mxu0
        %1475 = vmatpush.msra.mxu0 0.0
        %1476 = vmatpush.msra.mxu0 0.0
        %1477 = vmatpush.msra.mxu0 0.0
        %1478 = vmatpush.msra.mxu0 0.0
        %1479 = vmatpush.msra.mxu0 0.0
        %1480 = vmatpush.msra.mxu0 0.0
        %1481 = vmatpush.msra.mxu0 0.0
        %1482 = vmatpush.msra.mxu0 0.0
        %1483 = vmatpush.msra.mxu0 0.0
        %1484 = vmatpush.msra.mxu0 0.0
        %1485 = vmatpush.msra.mxu0 0.0
        %1486 = vmatpush.msra.mxu0 %v1280
        %1487 = vmatpush.msra.mxu0 %v1218
        %1488 = vmatpush.msra.mxu0 %v1198
        %1489 = vmatpush.msra.mxu0 %v1178
        %1490 = vmatpush.msra.mxu0 %v1158
        %1491 = vmatmul.f32.gmra.mxu0 %v1252
        %v1492 = vpop.f32.mrf.mxu0
        %v1493 = vadd.f32 0.0, %v1492
        %1494 = vdwg.mxu0
        %1495 = vmatpush.msra.mxu0 0.0
        %1496 = vmatpush.msra.mxu0 0.0
        %1497 = vmatpush.msra.mxu0 0.0
        %1498 = vmatpush.msra.mxu0 0.0
        %1499 = vmatpush.msra.mxu0 0.0
        %1500 = vmatpush.msra.mxu0 0.0
        %1501 = vmatpush.msra.mxu0 0.0
        %1502 = vmatpush.msra.mxu0 0.0
        %1503 = vmatpush.msra.mxu0 0.0
        %1504 = vmatpush.msra.mxu0 0.0
        %1505 = vmatpush.msra.mxu0 0.0
        %1506 = vmatpush.msra.mxu0 %v1283
        %1507 = vmatpush.msra.mxu0 %v1219
        %1508 = vmatpush.msra.mxu0 %v1199
        %1509 = vmatpush.msra.mxu0 %v1179
        %1510 = vmatpush.msra.mxu0 %v1159
        %1511 = vmatmul.f32.gmra.mxu0 %v1252
        %v1512 = vpop.f32.mrf.mxu0
        %v1513 = vadd.f32 0.0, %v1512
        %1514 = vdwg.mxu0
        %1515 = vmatpush.msra.mxu0 0.0
        %1516 = vmatpush.msra.mxu0 0.0
        %1517 = vmatpush.msra.mxu0 0.0
        %1518 = vmatpush.msra.mxu0 0.0
        %1519 = vmatpush.msra.mxu0 0.0
        %1520 = vmatpush.msra.mxu0 0.0
        %1521 = vmatpush.msra.mxu0 0.0
        %1522 = vmatpush.msra.mxu0 0.0
        %1523 = vmatpush.msra.mxu0 0.0
        %1524 = vmatpush.msra.mxu0 0.0
        %1525 = vmatpush.msra.mxu0 0.0
        %1526 = vmatpush.msra.mxu0 %v1286
        %1527 = vmatpush.msra.mxu0 %v1220
        %1528 = vmatpush.msra.mxu0 %v1200
        %1529 = vmatpush.msra.mxu0 %v1180
        %1530 = vmatpush.msra.mxu0 %v1160
        %1531 = vmatmul.f32.gmra.mxu0 %v1252
        %v1532 = vpop.f32.mrf.mxu0
        %v1533 = vadd.f32 0.0, %v1532
        %1534 = vdwg.mxu0
        %1535 = vmatpush.msra.mxu0 0.0
        %1536 = vmatpush.msra.mxu0 0.0
        %1537 = vmatpush.msra.mxu0 0.0
        %1538 = vmatpush.msra.mxu0 0.0
        %1539 = vmatpush.msra.mxu0 0.0
        %1540 = vmatpush.msra.mxu0 0.0
        %1541 = vmatpush.msra.mxu0 0.0
        %1542 = vmatpush.msra.mxu0 0.0
        %1543 = vmatpush.msra.mxu0 0.0
        %1544 = vmatpush.msra.mxu0 0.0
        %1545 = vmatpush.msra.mxu0 0.0
        %1546 = vmatpush.msra.mxu0 %v1289
        %1547 = vmatpush.msra.mxu0 %v1221
        %1548 = vmatpush.msra.mxu0 %v1201
        %1549 = vmatpush.msra.mxu0 %v1181
        %1550 = vmatpush.msra.mxu0 %v1161
        %1551 = vmatmul.f32.gmra.mxu0 %v1252
        %v1552 = vpop.f32.mrf.mxu0
        %v1553 = vadd.f32 0.0, %v1552
        %1554 = vdwg.mxu0
        %1555 = vmatpush.msra.mxu0 0.0
        %1556 = vmatpush.msra.mxu0 0.0
        %1557 = vmatpush.msra.mxu0 0.0
        %1558 = vmatpush.msra.mxu0 0.0
        %1559 = vmatpush.msra.mxu0 0.0
        %1560 = vmatpush.msra.mxu0 0.0
        %1561 = vmatpush.msra.mxu0 0.0
        %1562 = vmatpush.msra.mxu0 0.0
        %1563 = vmatpush.msra.mxu0 0.0
        %1564 = vmatpush.msra.mxu0 0.0
        %1565 = vmatpush.msra.mxu0 0.0
        %1566 = vmatpush.msra.mxu0 %v1292
        %1567 = vmatpush.msra.mxu0 %v1222
        %1568 = vmatpush.msra.mxu0 %v1202
        %1569 = vmatpush.msra.mxu0 %v1182
        %1570 = vmatpush.msra.mxu0 %v1162
        %1571 = vmatmul.f32.gmra.mxu0 %v1252
        %v1572 = vpop.f32.mrf.mxu0
        %v1573 = vadd.f32 0.0, %v1572
        %1574 = vdwg.mxu0
        %1575 = vmatpush.msra.mxu0 0.0
        %1576 = vmatpush.msra.mxu0 0.0
        %1577 = vmatpush.msra.mxu0 0.0
        %1578 = vmatpush.msra.mxu0 0.0
        %1579 = vmatpush.msra.mxu0 0.0
        %1580 = vmatpush.msra.mxu0 0.0
        %1581 = vmatpush.msra.mxu0 0.0
        %1582 = vmatpush.msra.mxu0 0.0
        %1583 = vmatpush.msra.mxu0 0.0
        %1584 = vmatpush.msra.mxu0 0.0
        %1585 = vmatpush.msra.mxu0 0.0
        %1586 = vmatpush.msra.mxu0 %v1295
        %1587 = vmatpush.msra.mxu0 %v1223
        %1588 = vmatpush.msra.mxu0 %v1203
        %1589 = vmatpush.msra.mxu0 %v1183
        %1590 = vmatpush.msra.mxu0 %v1163
        %1591 = vmatmul.f32.gmra.mxu0 %v1252
        %v1592 = vpop.f32.mrf.mxu0
        %v1593 = vadd.f32 0.0, %v1592
        %1594 = vdwg.mxu0
        %1595 = vmatpush.msra.mxu0 0.0
        %1596 = vmatpush.msra.mxu0 0.0
        %1597 = vmatpush.msra.mxu0 0.0
        %1598 = vmatpush.msra.mxu0 0.0
        %1599 = vmatpush.msra.mxu0 0.0
        %1600 = vmatpush.msra.mxu0 0.0
        %1601 = vmatpush.msra.mxu0 0.0
        %1602 = vmatpush.msra.mxu0 0.0
        %1603 = vmatpush.msra.mxu0 0.0
        %1604 = vmatpush.msra.mxu0 0.0
        %1605 = vmatpush.msra.mxu0 0.0
        %1606 = vmatpush.msra.mxu0 %v1298
        %1607 = vmatpush.msra.mxu0 %v1224
        %1608 = vmatpush.msra.mxu0 %v1204
        %1609 = vmatpush.msra.mxu0 %v1184
        %1610 = vmatpush.msra.mxu0 %v1164
        %1611 = vmatmul.f32.gmra.mxu0 %v1252
        %v1612 = vpop.f32.mrf.mxu0
        %v1613 = vadd.f32 0.0, %v1612
        %1614 = vdwg.mxu0
        %1615 = vmatpush.msra.mxu0 0.0
        %1616 = vmatpush.msra.mxu0 0.0
        %1617 = vmatpush.msra.mxu0 0.0
        %1618 = vmatpush.msra.mxu0 0.0
        %1619 = vmatpush.msra.mxu0 0.0
        %1620 = vmatpush.msra.mxu0 0.0
        %1621 = vmatpush.msra.mxu0 0.0
        %1622 = vmatpush.msra.mxu0 0.0
        %1623 = vmatpush.msra.mxu0 0.0
        %1624 = vmatpush.msra.mxu0 0.0
        %1625 = vmatpush.msra.mxu0 0.0
        %1626 = vmatpush.msra.mxu0 %v1301
        %1627 = vmatpush.msra.mxu0 %v1225
        %1628 = vmatpush.msra.mxu0 %v1205
        %1629 = vmatpush.msra.mxu0 %v1185
        %1630 = vmatpush.msra.mxu0 %v1165
        %1631 = vmatmul.f32.gmra.mxu0 %v1252
        %v1632 = vpop.f32.mrf.mxu0
        %v1633 = vadd.f32 0.0, %v1632
        %1634 = vdwg.mxu0
        %1635 = vmatpush.msra.mxu0 0.0
        %1636 = vmatpush.msra.mxu0 0.0
        %1637 = vmatpush.msra.mxu0 0.0
        %1638 = vmatpush.msra.mxu0 0.0
        %1639 = vmatpush.msra.mxu0 0.0
        %1640 = vmatpush.msra.mxu0 0.0
        %1641 = vmatpush.msra.mxu0 0.0
        %1642 = vmatpush.msra.mxu0 0.0
        %1643 = vmatpush.msra.mxu0 0.0
        %1644 = vmatpush.msra.mxu0 0.0
        %1645 = vmatpush.msra.mxu0 0.0
        %1646 = vmatpush.msra.mxu0 %v1304
        %1647 = vmatpush.msra.mxu0 %v1226
        %1648 = vmatpush.msra.mxu0 %v1206
        %1649 = vmatpush.msra.mxu0 %v1186
        %1650 = vmatpush.msra.mxu0 %v1166
        %1651 = vmatmul.f32.gmra.mxu0 %v1252
        %v1652 = vpop.f32.mrf.mxu0
        %v1653 = vadd.f32 0.0, %v1652
        %1654 = vdwg.mxu0
        %1655 = vmatpush.msra.mxu0 0.0
        %1656 = vmatpush.msra.mxu0 0.0
        %1657 = vmatpush.msra.mxu0 0.0
        %1658 = vmatpush.msra.mxu0 0.0
        %1659 = vmatpush.msra.mxu0 0.0
        %1660 = vmatpush.msra.mxu0 0.0
        %1661 = vmatpush.msra.mxu0 0.0
        %1662 = vmatpush.msra.mxu0 0.0
        %1663 = vmatpush.msra.mxu0 0.0
        %1664 = vmatpush.msra.mxu0 0.0
        %1665 = vmatpush.msra.mxu0 0.0
        %1666 = vmatpush.msra.mxu0 %v1307
        %1667 = vmatpush.msra.mxu0 %v1227
        %1668 = vmatpush.msra.mxu0 %v1207
        %1669 = vmatpush.msra.mxu0 %v1187
        %1670 = vmatpush.msra.mxu0 %v1167
        %1671 = vmatmul.f32.gmra.mxu0 %v1252
        %v1672 = vpop.f32.mrf.mxu0
        %v1673 = vadd.f32 0.0, %v1672
        %1674 = vdwg.mxu0
        %1675 = vmatpush.msra.mxu0 0.0
        %1676 = vmatpush.msra.mxu0 0.0
        %1677 = vmatpush.msra.mxu0 0.0
        %1678 = vmatpush.msra.mxu0 0.0
        %1679 = vmatpush.msra.mxu0 0.0
        %1680 = vmatpush.msra.mxu0 0.0
        %1681 = vmatpush.msra.mxu0 0.0
        %1682 = vmatpush.msra.mxu0 0.0
        %1683 = vmatpush.msra.mxu0 0.0
        %1684 = vmatpush.msra.mxu0 0.0
        %1685 = vmatpush.msra.mxu0 0.0
        %1686 = vmatpush.msra.mxu0 %v1310
        %1687 = vmatpush.msra.mxu0 %v1228
        %1688 = vmatpush.msra.mxu0 %v1208
        %1689 = vmatpush.msra.mxu0 %v1188
        %1690 = vmatpush.msra.mxu0 %v1168
        %1691 = vmatmul.f32.gmra.mxu0 %v1252
        %v1692 = vpop.f32.mrf.mxu0
        %v1693 = vadd.f32 0.0, %v1692
        %1694 = vdwg.mxu0
        %1695 = vmatpush.msra.mxu0 0.0
        %1696 = vmatpush.msra.mxu0 0.0
        %1697 = vmatpush.msra.mxu0 0.0
        %1698 = vmatpush.msra.mxu0 0.0
        %1699 = vmatpush.msra.mxu0 0.0
        %1700 = vmatpush.msra.mxu0 0.0
        %1701 = vmatpush.msra.mxu0 0.0
        %1702 = vmatpush.msra.mxu0 0.0
        %1703 = vmatpush.msra.mxu0 0.0
        %1704 = vmatpush.msra.mxu0 0.0
        %1705 = vmatpush.msra.mxu0 0.0
        %1706 = vmatpush.msra.mxu0 %v1313
        %1707 = vmatpush.msra.mxu0 %v1229
        %1708 = vmatpush.msra.mxu0 %v1209
        %1709 = vmatpush.msra.mxu0 %v1189
        %1710 = vmatpush.msra.mxu0 %v1169
        %1711 = vmatmul.f32.gmra.mxu0 %v1252
        %v1712 = vpop.f32.mrf.mxu0
        %v1713 = vadd.f32 0.0, %v1712
        %1714 = vdwg.mxu0
        %v1715 = vld [vmem:[%s4] sm:$0xff]
        %v1716 = vld [vmem:[%s5] sm:$0xff]
        %s1717 = smul.u32 %s26, 10
        %s1718 = sld [smem:[#allocation4 + %s1717]]
        %1720 = vset.pattern.permute.xlu0 0
        %1721 = vperm.xlu0 %1720, %v1715
        %v1722 = vpop.permute.xlu0 %1721
        %v1724 = vmul.f32 %v1333, %v1722
        %v1725 = vmul.f32 %v1353, %v1722
        %1727 = vset.pattern.permute.xlu0 0
        %1728 = vperm.xlu0 %1727, %v1716
        %v1729 = vpop.permute.xlu0 %1728
        %v1731 = vadd.f32 %v1724, %v1729
        %v1732 = vadd.f32 %v1725, %v1729
        %v1733 = vstv %s1718
        %v1734 = vmul.f32 %v1731, %v1733
        %v1735 = vmul.f32 %v1732, %v1733
        %1736 = vst [vmem:[%s257] sm:$0xff] %v1734
        %1737 = vst [vmem:[%s257 + $0x8] sm:$0xff] %v1735
        %s1738 = sadd.s32 %s1717, 1
        %s1739 = sld [smem:[#allocation4 + %s1738]]
        %v1740 = vmul.f32 %v1373, %v1722
        %v1741 = vmul.f32 %v1393, %v1722
        %v1742 = vadd.f32 %v1740, %v1729
        %v1743 = vadd.f32 %v1741, %v1729
        %v1744 = vstv %s1739
        %v1745 = vmul.f32 %v1742, %v1744
        %v1746 = vmul.f32 %v1743, %v1744
        %1747 = vst [vmem:[%s257 + $0x10] sm:$0xff] %v1745
        %1748 = vst [vmem:[%s257 + $0x18] sm:$0xff] %v1746
        %s1749 = sadd.s32 %s1717, 2
        %s1750 = sld [smem:[#allocation4 + %s1749]]
        %v1751 = vmul.f32 %v1413, %v1722
        %v1752 = vmul.f32 %v1433, %v1722
        %v1753 = vadd.f32 %v1751, %v1729
        %v1754 = vadd.f32 %v1752, %v1729
        %v1755 = vstv %s1750
        %v1756 = vmul.f32 %v1753, %v1755
        %v1757 = vmul.f32 %v1754, %v1755
        %1758 = vst [vmem:[%s257 + $0x20] sm:$0xff] %v1756
        %1759 = vst [vmem:[%s257 + $0x28] sm:$0xff] %v1757
        %s1760 = sadd.s32 %s1717, 3
        %s1761 = sld [smem:[#allocation4 + %s1760]]
        %v1762 = vmul.f32 %v1453, %v1722
        %v1763 = vmul.f32 %v1473, %v1722
        %v1764 = vadd.f32 %v1762, %v1729
        %v1765 = vadd.f32 %v1763, %v1729
        %v1766 = vstv %s1761
        %v1767 = vmul.f32 %v1764, %v1766
        %v1768 = vmul.f32 %v1765, %v1766
        %1769 = vst [vmem:[%s257 + $0x30] sm:$0xff] %v1767
        %1770 = vst [vmem:[%s257 + $0x38] sm:$0xff] %v1768
        %s1771 = sadd.s32 %s1717, 4
        %s1772 = sld [smem:[#allocation4 + %s1771]]
        %v1773 = vmul.f32 %v1493, %v1722
        %v1774 = vmul.f32 %v1513, %v1722
        %v1775 = vadd.f32 %v1773, %v1729
        %v1776 = vadd.f32 %v1774, %v1729
        %v1777 = vstv %s1772
        %v1778 = vmul.f32 %v1775, %v1777
        %v1779 = vmul.f32 %v1776, %v1777
        %1780 = vst [vmem:[%s257 + $0x40] sm:$0xff] %v1778
        %1781 = vst [vmem:[%s257 + $0x48] sm:$0xff] %v1779
        %s1782 = sadd.s32 %s1717, 5
        %s1783 = sld [smem:[#allocation4 + %s1782]]
        %v1784 = vmul.f32 %v1533, %v1722
        %v1785 = vmul.f32 %v1553, %v1722
        %v1786 = vadd.f32 %v1784, %v1729
        %v1787 = vadd.f32 %v1785, %v1729
        %v1788 = vstv %s1783
        %v1789 = vmul.f32 %v1786, %v1788
        %v1790 = vmul.f32 %v1787, %v1788
        %1791 = vst [vmem:[%s257 + $0x50] sm:$0xff] %v1789
        %1792 = vst [vmem:[%s257 + $0x58] sm:$0xff] %v1790
        %s1793 = sadd.s32 %s1717, 6
        %s1794 = sld [smem:[#allocation4 + %s1793]]
        %v1795 = vmul.f32 %v1573, %v1722
        %v1796 = vmul.f32 %v1593, %v1722
        %v1797 = vadd.f32 %v1795, %v1729
        %v1798 = vadd.f32 %v1796, %v1729
        %v1799 = vstv %s1794
        %v1800 = vmul.f32 %v1797, %v1799
        %v1801 = vmul.f32 %v1798, %v1799
        %1802 = vst [vmem:[%s257 + $0x60] sm:$0xff] %v1800
        %1803 = vst [vmem:[%s257 + $0x68] sm:$0xff] %v1801
        %s1804 = sadd.s32 %s1717, 7
        %s1805 = sld [smem:[#allocation4 + %s1804]]
        %v1806 = vmul.f32 %v1613, %v1722
        %v1807 = vmul.f32 %v1633, %v1722
        %v1808 = vadd.f32 %v1806, %v1729
        %v1809 = vadd.f32 %v1807, %v1729
        %v1810 = vstv %s1805
        %v1811 = vmul.f32 %v1808, %v1810
        %v1812 = vmul.f32 %v1809, %v1810
        %1813 = vst [vmem:[%s257 + $0x70] sm:$0xff] %v1811
        %1814 = vst [vmem:[%s257 + $0x78] sm:$0xff] %v1812
        %s1815 = sadd.s32 %s1717, 8
        %s1816 = sld [smem:[#allocation4 + %s1815]]
        %v1817 = vmul.f32 %v1653, %v1722
        %v1818 = vmul.f32 %v1673, %v1722
        %v1819 = vadd.f32 %v1817, %v1729
        %v1820 = vadd.f32 %v1818, %v1729
        %v1821 = vstv %s1816
        %v1822 = vmul.f32 %v1819, %v1821
        %v1823 = vmul.f32 %v1820, %v1821
        %1824 = vst [vmem:[%s257 + $0x80] sm:$0xff] %v1822
        %1825 = vst [vmem:[%s257 + $0x88] sm:$0xff] %v1823
        %s1826 = sadd.s32 %s1717, 9
        %s1827 = sld [smem:[#allocation4 + %s1826]]
        %v1828 = vmul.f32 %v1693, %v1722
        %v1829 = vmul.f32 %v1713, %v1722
        %v1830 = vadd.f32 %v1828, %v1729
        %v1831 = vadd.f32 %v1829, %v1729
        %v1832 = vstv %s1827
        %v1833 = vmul.f32 %v1830, %v1832
        %v1834 = vmul.f32 %v1831, %v1832
        %1835 = vst [vmem:[%s257 + $0x90] sm:$0xff] %v1833
        %1836 = vst [vmem:[%s257 + $0x98] sm:$0xff] %v1834
        %s1837 = smul.u32 10, %s26
        %p1838 = scmp.lt.s32.totalorder %s1837, 19
        %s1839 = scalar_select %p1838, %s1837, 19
        %s1840 = smul.addr %s1839, 2
        %s1841 = smul.addr %s1840, 8
        %s1842 = scalar_lea.vmem %s6, %s1841
        // Predicated region
        $region45: #{tebn_layer_forward.1} parent=39 // pred_check
          %p1843 = pneg %p154
        $region46: #{tebn_layer_forward.1} parent=39 // pred_check_branch
          %1845 = sbr.rel (%p1843) target = $region48
        $region47: #{tebn_layer_forward.1} parent=39 // pred_region
          %s1846 = smul.u32 10, %s26
        $region48: #{tebn_layer_forward.1} parent=39 // pred_fallthru
          _
      $region40: #{tebn_layer_forward.1} parent=5 // pred_fallthru
        _
      %p1847 = scmp.le.s32.totalorder 2, %s21
      // Predicated region
      $region49: #{tebn_layer_forward.1} parent=5 // pred_check
        %p1848 = pneg %p1847
      $region50: #{tebn_layer_forward.1} parent=5 // pred_check_branch
        %1850 = sbr.rel (%p1848) target = $region52
      $region51: #{tebn_layer_forward.1} parent=5 // pred_region
        %s1851 = ssub.s32 %s21, 2
        // Predicated region
        $region53: #{tebn_layer_forward.1} parent=51 // pred_check
          %p1852 = pneg %p160
        $region54: #{tebn_layer_forward.1} parent=51 // pred_check_branch
          %1854 = sbr.rel (%p1852) target = $region56
        $region55: #{tebn_layer_forward.1} parent=51 // pred_region
          %s1855 = smul.u32 10, %s27
          %p1856 = scmp.lt.s32.totalorder %s1855, 19
          %s1857 = scalar_select %p1856, %s1855, 19
          %s1858 = smul.addr %s1857, 2
          %s1859 = smul.addr %s1858, 8
          %s1860 = scalar_lea.vmem %s6, %s1859
        $region56: #{tebn_layer_forward.1} parent=51 // pred_fallthru
          _
      $region52: #{tebn_layer_forward.1} parent=5 // pred_fallthru
        _
    $region6: #{tebn_layer_forward.1} parent=1 // loop_footer
      %s25 = sadd.s32 1, %s21
    $region7: #{tebn_layer_forward.1} parent=1 // loop_footer_branch
      %20 = sbr.rel target = $region3
    $region8: #{tebn_layer_forward.1} parent=1 // loop_exit
      _
    %1861 = vsyncpa [#allocation6], 1
    %s1862 = scalar_lea.sflag [#allocation6], 1
    %1863 = vsyncpa %s1862, 1

</llo_original>
